<compile_context>
chip_gen: v7x
topology: tpu7x:2x2x1
jax: 0.10.0
libtpu: 0.0.40
codegen_flags: <defaults>
</compile_context>

<pallas_src>
import functools
import math
from typing import NamedTuple

import jax
import jax.numpy as jnp
import numpy as np
from jax.experimental import pallas as pl
from jax.experimental.pallas import tpu as pltpu

LANE = 128
COMPUTE_DTYPE = jnp.bfloat16  # MXU input dtype; accumulation is always f32.


class ModelCfg(NamedTuple):
    h1: int    # image size (square), multiple of 4
    cin1: int  # padded input-channel count for conv1's packed layout
    c1p: int   # padded output-channel counts per conv stage
    c2p: int
    c3p: int
    tb: int    # batch-block size (images per grid step)


# ------------------------------ packing helpers ------------------------------
# Runs once at init in plain JAX/numpy; the kernel only sees pre-padded,
# pre-permuted, lane-dense arrays.

def _round_up(x, m):
    return ((x + m - 1) // m) * m


def _cout_pad(c_out, w_out):
    """Smallest padded channel count so w_out * c_pad is a multiple of 128."""
    m = max(LANE // math.gcd(w_out, LANE), 8)
    return _round_up(max(c_out, 1), m)


def _pack_conv(w_pt, b, w_out, cin_pad, cout_pad):
    """PyTorch conv weight (Co,Ci,3,3) -> 3 'tap' matrices for implicit GEMM.

    big[kh, (x+kw)*cin_pad + ci, x*cout_pad + co] = w_pt[co, ci, kh, kw]
    so   acc[r, x*cout_pad+co] = sum_kh  P[r+kh, :] @ big[kh]
    is exactly the pad=1 3x3 conv on the packed zero-padded input P (per image row block).
    """
    co, ci, _, _ = w_pt.shape
    wp = w_out + 2
    taps = jnp.transpose(w_pt, (2, 3, 1, 0)).astype(jnp.float32)       # (kh, kw, ci, co)
    taps = jnp.pad(taps, ((0, 0), (0, 0), (0, cin_pad - ci), (0, cout_pad - co)))
    ix = jnp.arange(wp)[None, :, None]
    x = jnp.arange(w_out)[None, None, :]
    kw = jnp.arange(3)[:, None, None]
    sel = (ix == x + kw).astype(jnp.float32)                           # (kw, ix, x)
    big = jnp.einsum("kwx,hkcd->hwcxd", sel, taps)
    big = big.reshape(3, wp * cin_pad, w_out * cout_pad).astype(COMPUTE_DTYPE)
    b_row = jnp.tile(jnp.pad(b, (0, cout_pad - co)), w_out)[None, :].astype(jnp.float32)
    return big, b_row


def _pack_pool_stacked(h_in, w_in, c_pad, tb):
    """0/1 selection matrices (bf16): stacked running-max map -> next conv's packed input.

    The stacked conv output has per-image blocks of (h_in+2) rows (rows y<h_in valid); sr picks
    m-row i*(h_in+2)+2*py (the 2x2 row max of image i) and places it at padded row py+1 of the
    next stage's per-image (h_in//2+2)-row block, dropping cross-image garbage rows for free.
    """
    h_out, w_out = h_in // 2, w_in // 2
    hp_in, hp_out = h_in + 2, h_out + 2
    k_rows = tb * hp_in - 3                       # rows of the row-max map m
    sr = np.zeros((tb * hp_out, k_rows), np.float32)
    for i in range(tb):
        for py in range(h_out):
            sr[i * hp_out + py + 1, i * hp_in + 2 * py] = 1.0
    n_in = (w_in - 1) * c_pad                     # lanes of the column-max map
    sl = np.zeros((n_in, (w_out + 2) * c_pad), np.float32)
    for px in range(w_out):
        for c in range(c_pad):
            sl[(2 * px) * c_pad + c, (px + 1) * c_pad + c] = 1.0
    return jnp.asarray(sr, COMPUTE_DTYPE), jnp.asarray(sl, COMPUTE_DTYPE)


def _pack_fc_select(h3, tb):
    """0/1 matrix compacting the valid stacked conv3 rows into yy-major (h3*tb, N) order."""
    hp = h3 + 2
    k_rows = tb * hp - 2
    sf = np.zeros((h3 * tb, k_rows), np.float32)
    for yy in range(h3):
        for i in range(tb):
            sf[yy * tb + i, i * hp + yy] = 1.0
    return jnp.asarray(sf, COMPUTE_DTYPE)


def _pack_fc1(fc1_w, fc1_b, c_out, c_pad, hw):
    """fc1 weight permuted so it consumes the kernel's (y, x*c_pad+c) layout directly
    (absorbs torch's NCHW flatten order -> no transpose in the forward path)."""
    d_out = fc1_w.shape[0]
    w = fc1_w.reshape(d_out, c_out, hw, hw)        # (o, c, y, x) == torch.flatten order
    w = jnp.transpose(w, (2, 3, 1, 0))             # (y, x, c, o)
    w = jnp.pad(w, ((0, 0), (0, 0), (0, c_pad - c_out), (0, 0)))
    w = w.reshape(hw, hw * c_pad, d_out).astype(COMPUTE_DTYPE)
    return w, fc1_b[None, :].astype(jnp.float32)


def _pack_fc2(fc2_w, fc2_b, n_pad=LANE):
    """fc2 weight transposed + zero-padded 10 -> 128 output lanes (lane-dense store)."""
    d_out, d_in = fc2_w.shape
    w = jnp.zeros((d_in, n_pad), jnp.float32).at[:, :d_out].set(fc2_w.T)
    b = jnp.zeros((1, n_pad), jnp.float32).at[0, :d_out].set(fc2_b)
    return w.astype(COMPUTE_DTYPE), b


def _pack_input(x_nchw, cin_pad):
    """(B,1,H,W) -> (B, H+2, (W+2)*cin_pad) bf16: spatial zero pad + channel-lane packing."""
    b, _, h, w = x_nchw.shape
    xp = jnp.pad(x_nchw[:, 0], ((0, 0), (1, 1), (1, 1)))
    xp = jnp.pad(xp[..., None], ((0, 0), (0, 0), (0, 0), (0, cin_pad - 1)))
    return xp.reshape(b, h + 2, (w + 2) * cin_pad).astype(COMPUTE_DTYPE)


# ------------------------------- parameters ---------------------------------

def _uniform(key, shape, bound):
    return jax.random.uniform(key, shape, jnp.float32, -bound, bound)


def init_params(key, first_channels, image_size):
    """Deterministic PyTorch-default-style init, torch (NCHW / out,in) layouts."""
    fc = first_channels
    fis = image_size // 4
    ks = jax.random.split(key, 10)
    params = {}

    def conv_init(kw_, kb_, cout, cin):
        bound = 1.0 / math.sqrt(cin * 9.0)
        return _uniform(kw_, (cout, cin, 3, 3), bound), _uniform(kb_, (cout,), bound)

    def lin_init(kw_, kb_, dout, din):
        bound = 1.0 / math.sqrt(float(din))
        return _uniform(kw_, (dout, din), bound), _uniform(kb_, (dout,), bound)

    params["conv1_w"], params["conv1_b"] = conv_init(ks[0], ks[1], fc, 1)
    params["conv2_w"], params["conv2_b"] = conv_init(ks[2], ks[3], 2 * fc, fc)
    params["conv3_w"], params["conv3_b"] = conv_init(ks[4], ks[5], 4 * fc, 2 * fc)
    params["fc1_w"], params["fc1_b"] = lin_init(ks[6], ks[7], 128, 4 * fc * fis * fis)
    params["fc2_w"], params["fc2_b"] = lin_init(ks[8], ks[9], 10, 128)
    return params


def pack_params(params, image_size, tb=8):
    """One-time repack of PyTorch-layout params into kernel-ready arrays (batch-block size tb)."""
    assert image_size % 4 == 0, "model assumes image_size divisible by 4"
    h1 = image_size
    h2, h3 = h1 // 2, h1 // 4
    c1 = params["conv1_w"].shape[0]
    c2 = params["conv2_w"].shape[0]
    c3 = params["conv3_w"].shape[0]
    cin1 = 8                                   # pad the single input channel -> K % 8 == 0
    c1p, c2p, c3p = _cout_pad(c1, h1), _cout_pad(c2, h2), _cout_pad(c3, h3)

    w1, b1 = _pack_conv(params["conv1_w"], params["conv1_b"], h1, cin1, c1p)
    sr1, sl1 = _pack_pool_stacked(h1, h1, c1p, tb)
    w2, b2 = _pack_conv(params["conv2_w"], params["conv2_b"], h2, c1p, c2p)
    sr2, sl2 = _pack_pool_stacked(h2, h2, c2p, tb)
    w3, b3 = _pack_conv(params["conv3_w"], params["conv3_b"], h3, c2p, c3p)
    sf3 = _pack_fc_select(h3, tb)
    wf1, bf1 = _pack_fc1(params["fc1_w"], params["fc1_b"], c3, c3p, h3)
    wf2, bf2 = _pack_fc2(params["fc2_w"], params["fc2_b"])

    weights = dict(w1=w1, b1=b1, sr1=sr1, sl1=sl1, w2=w2, b2=b2, sr2=sr2, sl2=sl2,
                   w3=w3, b3=b3, sf3=sf3, wf1=wf1, bf1=bf1, wf2=wf2, bf2=bf2)
    return weights, ModelCfg(h1=h1, cin1=cin1, c1p=c1p, c2p=c2p, c3p=c3p, tb=tb)


# ------------------------------ fused kernel ---------------------------------

def _fused_forward_kernel(x_ref, w1_ref, b1_ref, sr1_ref, sl1_ref,
                          w2_ref, b2_ref, sr2_ref, sl2_ref,
                          w3_ref, b3_ref, sf3_ref, wf1_ref, bf1_ref,
                          wf2_ref, bf2_ref, out_ref, *, tb, h1, c1p, c2p):
    """Whole forward pass for TB images; one grid step == one batch block of TB images."""
    f32 = jnp.float32

    def conv_relu(p, w_ref, b_ref):
        # implicit-GEMM 3x3 conv, pad=1, batched in M: one MXU dot per kh tap.
        # p: bf16 (tb*(h+2), (w+2)*c_in_pad) stacked padded inputs (per-image zero-pad rows).
        m_rows = p.shape[0] - 2
        acc = jnp.zeros((m_rows, w_ref.shape[-1]), f32)
        for kh in range(3):
            acc = acc + jnp.dot(p[kh:kh + m_rows, :], w_ref[kh],
                                preferred_element_type=f32)
        return jnp.maximum(acc + b_ref[...], 0.0)

    def pool_pack(y, c_pad, sr_ref, sl_ref):
        # fused 2x2 max-pool + repack into the next conv's stacked zero-padded layout.
        # Selection dots run in bf16 (exact 0/1 matrices, values already bf16-bound downstream).
        m = jnp.maximum(y[:-1, :], y[1:, :])               # rows:  max(y, y+1)
        m = jnp.maximum(m[:, :-c_pad], m[:, c_pad:]).astype(COMPUTE_DTYPE)  # lanes: max(x, x+1)
        t = jnp.dot(sr_ref[...], m, preferred_element_type=f32).astype(COMPUTE_DTYPE)
        return jnp.dot(t, sl_ref[...], preferred_element_type=f32).astype(COMPUTE_DTYPE)

    p1 = x_ref[0]                                          # bf16 (tb*(H+2), (W+2)*cin1)
    y1 = conv_relu(p1, w1_ref, b1_ref)                     # f32  (tb*(H+2)-2,   W*c1p)
    p2 = pool_pack(y1, c1p, sr1_ref, sl1_ref)              # bf16 (tb*(H/2+2),  (W/2+2)*c1p)
    y2 = conv_relu(p2, w2_ref, b2_ref)                     # f32  (tb*(H/2+2)-2, W/2*c2p)
    p3 = pool_pack(y2, c2p, sr2_ref, sl2_ref)              # bf16 (tb*(H/4+2),  (W/4+2)*c2p)
    y3 = conv_relu(p3, w3_ref, b3_ref)                     # f32  (tb*(H/4+2)-2, W/4*c3p)

    # fc1: compact valid conv3 rows into yy-major (hw*tb, N) order with one tiny 0/1 dot,
    # then hw batched dots of (tb, N) x (N, 128) — no rank-1 matmuls anywhere.
    hw = h1 // 4
    compact = jnp.dot(sf3_ref[...], y3.astype(COMPUTE_DTYPE),
                      preferred_element_type=f32).astype(COMPUTE_DTYPE)
    hid = jnp.zeros((tb, wf1_ref.shape[-1]), f32)
    for yy in range(hw):
        hid = hid + jnp.dot(compact[yy * tb:(yy + 1) * tb, :], wf1_ref[yy],
                            preferred_element_type=f32)
    hid = jnp.maximum(hid + bf1_ref[...], 0.0)

    # fc2 (output padded to 128 lanes; sliced back to 10 outside the kernel).
    # TODO(synk): nn.Dropout(0.4) applied as identity (inference/eval semantics).
    logits = jnp.dot(hid.astype(COMPUTE_DTYPE), wf2_ref[...],
                     preferred_element_type=f32) + bf2_ref[...]
    out_ref[0] = logits                                    # dense (tb, 128) store


_CONST_NAMES = ("w1", "b1", "sr1", "sl1", "w2", "b2", "sr2", "sl2",
                "w3", "b3", "sf3", "wf1", "bf1", "wf2", "bf2")


@functools.partial(jax.jit, static_argnames=("cfg",))
def forward(weights, x_nchw, *, cfg):
    """x_nchw: (B, 1, H, W) float32 -> logits (B, 10) float32."""
    batch = x_nchw.shape[0]
    assert x_nchw.shape[1] == 1 and x_nchw.shape[2] == x_nchw.shape[3] == cfg.h1
    tb = cfg.tb
    nb = -(-batch // tb)                        # number of grid steps (batch blocks)
    batch_p = nb * tb

    xp = _pack_input(x_nchw, cfg.cin1)          # (B, H+2, (W+2)*cin1) bf16
    if batch_p != batch:
        xp = jnp.pad(xp, ((0, batch_p - batch), (0, 0), (0, 0)))
    k1 = xp.shape[-1]
    rows = tb * (cfg.h1 + 2)
    xp = xp.reshape(nb, rows, k1)               # stack TB images along the sublane axis

    consts = [weights[k] for k in _CONST_NAMES]

    def full_spec(a):
        return pl.BlockSpec(a.shape, lambda i: (0,) * a.ndim)

    kernel = functools.partial(_fused_forward_kernel,
                               tb=tb, h1=cfg.h1, c1p=cfg.c1p, c2p=cfg.c2p)
    out = pl.pallas_call(
        kernel,
        out_shape=jax.ShapeDtypeStruct((nb, tb, LANE), jnp.float32),
        grid=(nb,),
        in_specs=[pl.BlockSpec((1, rows, k1), lambda i: (i, 0, 0))]
                 + [full_spec(a) for a in consts],
        out_specs=pl.BlockSpec((1, tb, LANE), lambda i: (i, 0, 0)),
        compiler_params=pltpu.CompilerParams(dimension_semantics=("parallel",)),
    )(xp, *consts)
    return out.reshape(batch_p, LANE)[:batch, :10]


# ------------------------- pure-JAX reference (check) ------------------------

def reference_forward(params, x_nchw):
    """Mirror of the PyTorch forward, same bf16-input / f32-accumulate precision."""
    f32, c = jnp.float32, COMPUTE_DTYPE

    def conv_relu(x, w_pt, b):
        w = jnp.transpose(w_pt, (2, 3, 1, 0)).astype(c)    # HWIO
        y = jax.lax.conv_general_dilated(
            x.astype(c), w, window_strides=(1, 1), padding=((1, 1), (1, 1)),
            dimension_numbers=("NHWC", "HWIO", "NHWC"), preferred_element_type=f32)
        return jnp.maximum(y + b, 0.0)

    def pool(x):
        n, h, w, ch = x.shape
        return x.reshape(n, h // 2, 2, w // 2, 2, ch).max(axis=(2, 4))

    x = jnp.transpose(x_nchw, (0, 2, 3, 1)).astype(f32)
    x = pool(conv_relu(x, params["conv1_w"], params["conv1_b"]))
    x = pool(conv_relu(x, params["conv2_w"], params["conv2_b"]))
    x = conv_relu(x, params["conv3_w"], params["conv3_b"])
    x = jnp.transpose(x, (0, 3, 1, 2)).reshape(x.shape[0], -1)   # torch.flatten order
    x = jnp.maximum(jnp.dot(x.astype(c), params["fc1_w"].T.astype(c),
                            preferred_element_type=f32) + params["fc1_b"], 0.0)
    x = jnp.dot(x.astype(c), params["fc2_w"].T.astype(c),
                preferred_element_type=f32) + params["fc2_b"]
    return x


# ----------------------------------- main ------------------------------------

if __name__ == "__main__":
    image_size = 16
    first_channels = 4
    batch = 16
    tb = 8          # images per grid step -> grid=(2,), splits across v7x's two TensorCores

    key = jax.random.PRNGKey(0)
    k_x, k_p = jax.random.split(key)
    x = jax.random.normal(k_x, (batch, 1, image_size, image_size), jnp.float32)
    params = init_params(k_p, first_channels, image_size)
    weights, cfg = pack_params(params, image_size, tb=tb)

    out = jax.block_until_ready(forward(weights, x, cfg=cfg))
    assert out.shape == (batch, 10), out.shape

    # Numerical sanity check against the pure-JAX mirror (same mixed precision).
    ref = jax.block_until_ready(reference_forward(params, x))
    np.testing.assert_allclose(np.asarray(out), np.asarray(ref), rtol=1e-2, atol=1e-2)

    print("KERNEL_OK")
</pallas_src>

<mosaic_0001>
module attributes {stable_mosaic.version = 11 : i64} {
  func.func @_fused_forward_kernel(%arg0: i32, %arg1: memref<1x144x144xbf16, #tpu.memory_space<vmem>>, %arg2: memref<3x144x128xbf16, #tpu.memory_space<vmem>>, %arg3: memref<1x128xf32, #tpu.memory_space<vmem>>, %arg4: memref<80x141xbf16, #tpu.memory_space<vmem>>, %arg5: memref<120x80xbf16, #tpu.memory_space<vmem>>, %arg6: memref<3x80x128xbf16, #tpu.memory_space<vmem>>, %arg7: memref<1x128xf32, #tpu.memory_space<vmem>>, %arg8: memref<48x77xbf16, #tpu.memory_space<vmem>>, %arg9: memref<112x96xbf16, #tpu.memory_space<vmem>>, %arg10: memref<3x96x128xbf16, #tpu.memory_space<vmem>>, %arg11: memref<1x128xf32, #tpu.memory_space<vmem>>, %arg12: memref<32x46xbf16, #tpu.memory_space<vmem>>, %arg13: memref<4x128x128xbf16, #tpu.memory_space<vmem>>, %arg14: memref<1x128xf32, #tpu.memory_space<vmem>>, %arg15: memref<128x128xbf16, #tpu.memory_space<vmem>>, %arg16: memref<1x128xf32, #tpu.memory_space<vmem>>, %arg17: memref<1x8x128xf32, #tpu.memory_space<vmem>>) attributes {dimension_semantics = [#tpu.dimension_semantics<parallel>], iteration_bounds = array<i64: 2>, scalar_prefetch = 0 : i64, scratch_operands = 0 : i64, tpu.core_type = #tpu.core_type<tc>, window_params = [{transform_indices = @transform_0, window_bounds = array<i64: 1, 144, 144>}, {pipeline_mode = #tpu.pipeline_mode<synchronous>, transform_indices = @transform_1, window_bounds = array<i64: 3, 144, 128>}, {pipeline_mode = #tpu.pipeline_mode<synchronous>, transform_indices = @transform_2, window_bounds = array<i64: 1, 128>}, {pipeline_mode = #tpu.pipeline_mode<synchronous>, transform_indices = @transform_3, window_bounds = array<i64: 80, 141>}, {pipeline_mode = #tpu.pipeline_mode<synchronous>, transform_indices = @transform_4, window_bounds = array<i64: 120, 80>}, {pipeline_mode = #tpu.pipeline_mode<synchronous>, transform_indices = @transform_5, window_bounds = array<i64: 3, 80, 128>}, {pipeline_mode = #tpu.pipeline_mode<synchronous>, transform_indices = @transform_6, window_bounds = array<i64: 1, 128>}, {pipeline_mode = #tpu.pipeline_mode<synchronous>, transform_indices = @transform_7, window_bounds = array<i64: 48, 77>}, {pipeline_mode = #tpu.pipeline_mode<synchronous>, transform_indices = @transform_8, window_bounds = array<i64: 112, 96>}, {pipeline_mode = #tpu.pipeline_mode<synchronous>, transform_indices = @transform_9, window_bounds = array<i64: 3, 96, 128>}, {pipeline_mode = #tpu.pipeline_mode<synchronous>, transform_indices = @transform_10, window_bounds = array<i64: 1, 128>}, {pipeline_mode = #tpu.pipeline_mode<synchronous>, transform_indices = @transform_11, window_bounds = array<i64: 32, 46>}, {pipeline_mode = #tpu.pipeline_mode<synchronous>, transform_indices = @transform_12, window_bounds = array<i64: 4, 128, 128>}, {pipeline_mode = #tpu.pipeline_mode<synchronous>, transform_indices = @transform_13, window_bounds = array<i64: 1, 128>}, {pipeline_mode = #tpu.pipeline_mode<synchronous>, transform_indices = @transform_14, window_bounds = array<i64: 128, 128>}, {pipeline_mode = #tpu.pipeline_mode<synchronous>, transform_indices = @transform_15, window_bounds = array<i64: 1, 128>}, {transform_indices = @transform_16, window_bounds = array<i64: 1, 8, 128>}]} {
    %c0 = arith.constant 0 : index
    %c0_0 = arith.constant 0 : index
    %c0_1 = arith.constant 0 : index
    %0 = vector.load %arg1[%c0, %c0_0, %c0_1] : memref<1x144x144xbf16, #tpu.memory_space<vmem>>, vector<1x144x144xbf16>
    %1 = vector.shape_cast %0 : vector<1x144x144xbf16> to vector<144x144xbf16>
    %cst = arith.constant 0.000000e+00 : f32
    %2 = vector.broadcast %cst : f32 to vector<142x128xf32>
    %3 = vector.extract_strided_slice %1 {offsets = [0, 0], sizes = [142, 144], strides = [1, 1]} : vector<144x144xbf16> to vector<142x144xbf16>
    %c0_2 = arith.constant 0 : index
    %c0_3 = arith.constant 0 : index
    %c0_4 = arith.constant 0 : index
    %4 = vector.load %arg2[%c0_2, %c0_3, %c0_4] : memref<3x144x128xbf16, #tpu.memory_space<vmem>>, vector<1x144x128xbf16>
    %5 = vector.shape_cast %4 : vector<1x144x128xbf16> to vector<144x128xbf16>
    %cst_5 = arith.constant dense<0.000000e+00> : vector<142x128xf32>
    %6 = tpu.matmul %3, %5, %cst_5 {dimension_numbers = #tpu.dot_dimension_numbers<[1], [0], [0], [1], [0, 0, 1, 1], [], []>} : vector<142x144xbf16>, vector<144x128xbf16>, vector<142x128xf32> -> vector<142x128xf32>
    %7 = arith.addf %2, %6 : vector<142x128xf32>
    %8 = vector.extract_strided_slice %1 {offsets = [1, 0], sizes = [142, 144], strides = [1, 1]} : vector<144x144xbf16> to vector<142x144xbf16>
    %c1 = arith.constant 1 : index
    %c0_6 = arith.constant 0 : index
    %c0_7 = arith.constant 0 : index
    %9 = vector.load %arg2[%c1, %c0_6, %c0_7] : memref<3x144x128xbf16, #tpu.memory_space<vmem>>, vector<1x144x128xbf16>
    %10 = vector.shape_cast %9 : vector<1x144x128xbf16> to vector<144x128xbf16>
    %cst_8 = arith.constant dense<0.000000e+00> : vector<142x128xf32>
    %11 = tpu.matmul %8, %10, %cst_8 {dimension_numbers = #tpu.dot_dimension_numbers<[1], [0], [0], [1], [0, 0, 1, 1], [], []>} : vector<142x144xbf16>, vector<144x128xbf16>, vector<142x128xf32> -> vector<142x128xf32>
    %12 = arith.addf %7, %11 : vector<142x128xf32>
    %13 = vector.extract_strided_slice %1 {offsets = [2, 0], sizes = [142, 144], strides = [1, 1]} : vector<144x144xbf16> to vector<142x144xbf16>
    %c2 = arith.constant 2 : index
    %c0_9 = arith.constant 0 : index
    %c0_10 = arith.constant 0 : index
    %14 = vector.load %arg2[%c2, %c0_9, %c0_10] : memref<3x144x128xbf16, #tpu.memory_space<vmem>>, vector<1x144x128xbf16>
    %15 = vector.shape_cast %14 : vector<1x144x128xbf16> to vector<144x128xbf16>
    %cst_11 = arith.constant dense<0.000000e+00> : vector<142x128xf32>
    %16 = tpu.matmul %13, %15, %cst_11 {dimension_numbers = #tpu.dot_dimension_numbers<[1], [0], [0], [1], [0, 0, 1, 1], [], []>} : vector<142x144xbf16>, vector<144x128xbf16>, vector<142x128xf32> -> vector<142x128xf32>
    %17 = arith.addf %12, %16 : vector<142x128xf32>
    %c0_12 = arith.constant 0 : index
    %c0_13 = arith.constant 0 : index
    %18 = vector.load %arg3[%c0_12, %c0_13] : memref<1x128xf32, #tpu.memory_space<vmem>>, vector<1x128xf32>
    %19 = vector.broadcast %18 : vector<1x128xf32> to vector<142x128xf32>
    %20 = arith.addf %17, %19 : vector<142x128xf32>
    %cst_14 = arith.constant 0.000000e+00 : f32
    %21 = vector.broadcast %cst_14 : f32 to vector<142x128xf32>
    %22 = arith.maximumf %20, %21 : vector<142x128xf32>
    %23 = vector.extract_strided_slice %22 {offsets = [0, 0], sizes = [141, 128], strides = [1, 1]} : vector<142x128xf32> to vector<141x128xf32>
    %24 = vector.extract_strided_slice %22 {offsets = [1, 0], sizes = [141, 128], strides = [1, 1]} : vector<142x128xf32> to vector<141x128xf32>
    %25 = arith.maximumf %23, %24 : vector<141x128xf32>
    %26 = vector.extract_strided_slice %25 {offsets = [0, 0], sizes = [141, 120], strides = [1, 1]} : vector<141x128xf32> to vector<141x120xf32>
    %27 = vector.extract_strided_slice %25 {offsets = [0, 8], sizes = [141, 120], strides = [1, 1]} : vector<141x128xf32> to vector<141x120xf32>
    %28 = arith.maximumf %26, %27 : vector<141x120xf32>
    %29 = arith.truncf %28 : vector<141x120xf32> to vector<141x120xbf16>
    %c0_15 = arith.constant 0 : index
    %c0_16 = arith.constant 0 : index
    %30 = vector.load %arg4[%c0_15, %c0_16] : memref<80x141xbf16, #tpu.memory_space<vmem>>, vector<80x141xbf16>
    %cst_17 = arith.constant dense<0.000000e+00> : vector<80x120xf32>
    %31 = tpu.matmul %30, %29, %cst_17 {dimension_numbers = #tpu.dot_dimension_numbers<[1], [0], [0], [1], [0, 0, 1, 1], [], []>} : vector<80x141xbf16>, vector<141x120xbf16>, vector<80x120xf32> -> vector<80x120xf32>
    %32 = arith.truncf %31 : vector<80x120xf32> to vector<80x120xbf16>
    %c0_18 = arith.constant 0 : index
    %c0_19 = arith.constant 0 : index
    %33 = vector.load %arg5[%c0_18, %c0_19] : memref<120x80xbf16, #tpu.memory_space<vmem>>, vector<120x80xbf16>
    %cst_20 = arith.constant dense<0.000000e+00> : vector<80x80xf32>
    %34 = tpu.matmul %32, %33, %cst_20 {dimension_numbers = #tpu.dot_dimension_numbers<[1], [0], [0], [1], [0, 0, 1, 1], [], []>} : vector<80x120xbf16>, vector<120x80xbf16>, vector<80x80xf32> -> vector<80x80xf32>
    %35 = arith.truncf %34 : vector<80x80xf32> to vector<80x80xbf16>
    %cst_21 = arith.constant 0.000000e+00 : f32
    %36 = vector.broadcast %cst_21 : f32 to vector<78x128xf32>
    %37 = vector.extract_strided_slice %35 {offsets = [0, 0], sizes = [78, 80], strides = [1, 1]} : vector<80x80xbf16> to vector<78x80xbf16>
    %c0_22 = arith.constant 0 : index
    %c0_23 = arith.constant 0 : index
    %c0_24 = arith.constant 0 : index
    %38 = vector.load %arg6[%c0_22, %c0_23, %c0_24] : memref<3x80x128xbf16, #tpu.memory_space<vmem>>, vector<1x80x128xbf16>
    %39 = vector.shape_cast %38 : vector<1x80x128xbf16> to vector<80x128xbf16>
    %cst_25 = arith.constant dense<0.000000e+00> : vector<78x128xf32>
    %40 = tpu.matmul %37, %39, %cst_25 {dimension_numbers = #tpu.dot_dimension_numbers<[1], [0], [0], [1], [0, 0, 1, 1], [], []>} : vector<78x80xbf16>, vector<80x128xbf16>, vector<78x128xf32> -> vector<78x128xf32>
    %41 = arith.addf %36, %40 : vector<78x128xf32>
    %42 = vector.extract_strided_slice %35 {offsets = [1, 0], sizes = [78, 80], strides = [1, 1]} : vector<80x80xbf16> to vector<78x80xbf16>
    %c1_26 = arith.constant 1 : index
    %c0_27 = arith.constant 0 : index
    %c0_28 = arith.constant 0 : index
    %43 = vector.load %arg6[%c1_26, %c0_27, %c0_28] : memref<3x80x128xbf16, #tpu.memory_space<vmem>>, vector<1x80x128xbf16>
    %44 = vector.shape_cast %43 : vector<1x80x128xbf16> to vector<80x128xbf16>
    %cst_29 = arith.constant dense<0.000000e+00> : vector<78x128xf32>
    %45 = tpu.matmul %42, %44, %cst_29 {dimension_numbers = #tpu.dot_dimension_numbers<[1], [0], [0], [1], [0, 0, 1, 1], [], []>} : vector<78x80xbf16>, vector<80x128xbf16>, vector<78x128xf32> -> vector<78x128xf32>
    %46 = arith.addf %41, %45 : vector<78x128xf32>
    %47 = vector.extract_strided_slice %35 {offsets = [2, 0], sizes = [78, 80], strides = [1, 1]} : vector<80x80xbf16> to vector<78x80xbf16>
    %c2_30 = arith.constant 2 : index
    %c0_31 = arith.constant 0 : index
    %c0_32 = arith.constant 0 : index
    %48 = vector.load %arg6[%c2_30, %c0_31, %c0_32] : memref<3x80x128xbf16, #tpu.memory_space<vmem>>, vector<1x80x128xbf16>
    %49 = vector.shape_cast %48 : vector<1x80x128xbf16> to vector<80x128xbf16>
    %cst_33 = arith.constant dense<0.000000e+00> : vector<78x128xf32>
    %50 = tpu.matmul %47, %49, %cst_33 {dimension_numbers = #tpu.dot_dimension_numbers<[1], [0], [0], [1], [0, 0, 1, 1], [], []>} : vector<78x80xbf16>, vector<80x128xbf16>, vector<78x128xf32> -> vector<78x128xf32>
    %51 = arith.addf %46, %50 : vector<78x128xf32>
    %c0_34 = arith.constant 0 : index
    %c0_35 = arith.constant 0 : index
    %52 = vector.load %arg7[%c0_34, %c0_35] : memref<1x128xf32, #tpu.memory_space<vmem>>, vector<1x128xf32>
    %53 = vector.broadcast %52 : vector<1x128xf32> to vector<78x128xf32>
    %54 = arith.addf %51, %53 : vector<78x128xf32>
    %cst_36 = arith.constant 0.000000e+00 : f32
    %55 = vector.broadcast %cst_36 : f32 to vector<78x128xf32>
    %56 = arith.maximumf %54, %55 : vector<78x128xf32>
    %57 = vector.extract_strided_slice %56 {offsets = [0, 0], sizes = [77, 128], strides = [1, 1]} : vector<78x128xf32> to vector<77x128xf32>
    %58 = vector.extract_strided_slice %56 {offsets = [1, 0], sizes = [77, 128], strides = [1, 1]} : vector<78x128xf32> to vector<77x128xf32>
    %59 = arith.maximumf %57, %58 : vector<77x128xf32>
    %60 = vector.extract_strided_slice %59 {offsets = [0, 0], sizes = [77, 112], strides = [1, 1]} : vector<77x128xf32> to vector<77x112xf32>
    %61 = vector.extract_strided_slice %59 {offsets = [0, 16], sizes = [77, 112], strides = [1, 1]} : vector<77x128xf32> to vector<77x112xf32>
    %62 = arith.maximumf %60, %61 : vector<77x112xf32>
    %63 = arith.truncf %62 : vector<77x112xf32> to vector<77x112xbf16>
    %c0_37 = arith.constant 0 : index
    %c0_38 = arith.constant 0 : index
    %64 = vector.load %arg8[%c0_37, %c0_38] : memref<48x77xbf16, #tpu.memory_space<vmem>>, vector<48x77xbf16>
    %cst_39 = arith.constant dense<0.000000e+00> : vector<48x112xf32>
    %65 = tpu.matmul %64, %63, %cst_39 {dimension_numbers = #tpu.dot_dimension_numbers<[1], [0], [0], [1], [0, 0, 1, 1], [], []>} : vector<48x77xbf16>, vector<77x112xbf16>, vector<48x112xf32> -> vector<48x112xf32>
    %66 = arith.truncf %65 : vector<48x112xf32> to vector<48x112xbf16>
    %c0_40 = arith.constant 0 : index
    %c0_41 = arith.constant 0 : index
    %67 = vector.load %arg9[%c0_40, %c0_41] : memref<112x96xbf16, #tpu.memory_space<vmem>>, vector<112x96xbf16>
    %cst_42 = arith.constant dense<0.000000e+00> : vector<48x96xf32>
    %68 = tpu.matmul %66, %67, %cst_42 {dimension_numbers = #tpu.dot_dimension_numbers<[1], [0], [0], [1], [0, 0, 1, 1], [], []>} : vector<48x112xbf16>, vector<112x96xbf16>, vector<48x96xf32> -> vector<48x96xf32>
    %69 = arith.truncf %68 : vector<48x96xf32> to vector<48x96xbf16>
    %cst_43 = arith.constant 0.000000e+00 : f32
    %70 = vector.broadcast %cst_43 : f32 to vector<46x128xf32>
    %71 = vector.extract_strided_slice %69 {offsets = [0, 0], sizes = [46, 96], strides = [1, 1]} : vector<48x96xbf16> to vector<46x96xbf16>
    %c0_44 = arith.constant 0 : index
    %c0_45 = arith.constant 0 : index
    %c0_46 = arith.constant 0 : index
    %72 = vector.load %arg10[%c0_44, %c0_45, %c0_46] : memref<3x96x128xbf16, #tpu.memory_space<vmem>>, vector<1x96x128xbf16>
    %73 = vector.shape_cast %72 : vector<1x96x128xbf16> to vector<96x128xbf16>
    %cst_47 = arith.constant dense<0.000000e+00> : vector<46x128xf32>
    %74 = tpu.matmul %71, %73, %cst_47 {dimension_numbers = #tpu.dot_dimension_numbers<[1], [0], [0], [1], [0, 0, 1, 1], [], []>} : vector<46x96xbf16>, vector<96x128xbf16>, vector<46x128xf32> -> vector<46x128xf32>
    %75 = arith.addf %70, %74 : vector<46x128xf32>
    %76 = vector.extract_strided_slice %69 {offsets = [1, 0], sizes = [46, 96], strides = [1, 1]} : vector<48x96xbf16> to vector<46x96xbf16>
    %c1_48 = arith.constant 1 : index
    %c0_49 = arith.constant 0 : index
    %c0_50 = arith.constant 0 : index
    %77 = vector.load %arg10[%c1_48, %c0_49, %c0_50] : memref<3x96x128xbf16, #tpu.memory_space<vmem>>, vector<1x96x128xbf16>
    %78 = vector.shape_cast %77 : vector<1x96x128xbf16> to vector<96x128xbf16>
    %cst_51 = arith.constant dense<0.000000e+00> : vector<46x128xf32>
    %79 = tpu.matmul %76, %78, %cst_51 {dimension_numbers = #tpu.dot_dimension_numbers<[1], [0], [0], [1], [0, 0, 1, 1], [], []>} : vector<46x96xbf16>, vector<96x128xbf16>, vector<46x128xf32> -> vector<46x128xf32>
    %80 = arith.addf %75, %79 : vector<46x128xf32>
    %81 = vector.extract_strided_slice %69 {offsets = [2, 0], sizes = [46, 96], strides = [1, 1]} : vector<48x96xbf16> to vector<46x96xbf16>
    %c2_52 = arith.constant 2 : index
    %c0_53 = arith.constant 0 : index
    %c0_54 = arith.constant 0 : index
    %82 = vector.load %arg10[%c2_52, %c0_53, %c0_54] : memref<3x96x128xbf16, #tpu.memory_space<vmem>>, vector<1x96x128xbf16>
    %83 = vector.shape_cast %82 : vector<1x96x128xbf16> to vector<96x128xbf16>
    %cst_55 = arith.constant dense<0.000000e+00> : vector<46x128xf32>
    %84 = tpu.matmul %81, %83, %cst_55 {dimension_numbers = #tpu.dot_dimension_numbers<[1], [0], [0], [1], [0, 0, 1, 1], [], []>} : vector<46x96xbf16>, vector<96x128xbf16>, vector<46x128xf32> -> vector<46x128xf32>
    %85 = arith.addf %80, %84 : vector<46x128xf32>
    %c0_56 = arith.constant 0 : index
    %c0_57 = arith.constant 0 : index
    %86 = vector.load %arg11[%c0_56, %c0_57] : memref<1x128xf32, #tpu.memory_space<vmem>>, vector<1x128xf32>
    %87 = vector.broadcast %86 : vector<1x128xf32> to vector<46x128xf32>
    %88 = arith.addf %85, %87 : vector<46x128xf32>
    %cst_58 = arith.constant 0.000000e+00 : f32
    %89 = vector.broadcast %cst_58 : f32 to vector<46x128xf32>
    %90 = arith.maximumf %88, %89 : vector<46x128xf32>
    %c0_59 = arith.constant 0 : index
    %c0_60 = arith.constant 0 : index
    %91 = vector.load %arg12[%c0_59, %c0_60] : memref<32x46xbf16, #tpu.memory_space<vmem>>, vector<32x46xbf16>
    %92 = arith.truncf %90 : vector<46x128xf32> to vector<46x128xbf16>
    %cst_61 = arith.constant dense<0.000000e+00> : vector<32x128xf32>
    %93 = tpu.matmul %91, %92, %cst_61 {dimension_numbers = #tpu.dot_dimension_numbers<[1], [0], [0], [1], [0, 0, 1, 1], [], []>} : vector<32x46xbf16>, vector<46x128xbf16>, vector<32x128xf32> -> vector<32x128xf32>
    %94 = arith.truncf %93 : vector<32x128xf32> to vector<32x128xbf16>
    %cst_62 = arith.constant 0.000000e+00 : f32
    %95 = vector.broadcast %cst_62 : f32 to vector<8x128xf32>
    %96 = vector.extract_strided_slice %94 {offsets = [0, 0], sizes = [8, 128], strides = [1, 1]} : vector<32x128xbf16> to vector<8x128xbf16>
    %c0_63 = arith.constant 0 : index
    %c0_64 = arith.constant 0 : index
    %c0_65 = arith.constant 0 : index
    %97 = vector.load %arg13[%c0_63, %c0_64, %c0_65] : memref<4x128x128xbf16, #tpu.memory_space<vmem>>, vector<1x128x128xbf16>
    %98 = vector.shape_cast %97 : vector<1x128x128xbf16> to vector<128x128xbf16>
    %cst_66 = arith.constant dense<0.000000e+00> : vector<8x128xf32>
    %99 = tpu.matmul %96, %98, %cst_66 {dimension_numbers = #tpu.dot_dimension_numbers<[1], [0], [0], [1], [0, 0, 1, 1], [], []>} : vector<8x128xbf16>, vector<128x128xbf16>, vector<8x128xf32> -> vector<8x128xf32>
    %100 = arith.addf %95, %99 : vector<8x128xf32>
    %101 = vector.extract_strided_slice %94 {offsets = [8, 0], sizes = [8, 128], strides = [1, 1]} : vector<32x128xbf16> to vector<8x128xbf16>
    %c1_67 = arith.constant 1 : index
    %c0_68 = arith.constant 0 : index
    %c0_69 = arith.constant 0 : index
    %102 = vector.load %arg13[%c1_67, %c0_68, %c0_69] : memref<4x128x128xbf16, #tpu.memory_space<vmem>>, vector<1x128x128xbf16>
    %103 = vector.shape_cast %102 : vector<1x128x128xbf16> to vector<128x128xbf16>
    %cst_70 = arith.constant dense<0.000000e+00> : vector<8x128xf32>
    %104 = tpu.matmul %101, %103, %cst_70 {dimension_numbers = #tpu.dot_dimension_numbers<[1], [0], [0], [1], [0, 0, 1, 1], [], []>} : vector<8x128xbf16>, vector<128x128xbf16>, vector<8x128xf32> -> vector<8x128xf32>
    %105 = arith.addf %100, %104 : vector<8x128xf32>
    %106 = vector.extract_strided_slice %94 {offsets = [16, 0], sizes = [8, 128], strides = [1, 1]} : vector<32x128xbf16> to vector<8x128xbf16>
    %c2_71 = arith.constant 2 : index
    %c0_72 = arith.constant 0 : index
    %c0_73 = arith.constant 0 : index
    %107 = vector.load %arg13[%c2_71, %c0_72, %c0_73] : memref<4x128x128xbf16, #tpu.memory_space<vmem>>, vector<1x128x128xbf16>
    %108 = vector.shape_cast %107 : vector<1x128x128xbf16> to vector<128x128xbf16>
    %cst_74 = arith.constant dense<0.000000e+00> : vector<8x128xf32>
    %109 = tpu.matmul %106, %108, %cst_74 {dimension_numbers = #tpu.dot_dimension_numbers<[1], [0], [0], [1], [0, 0, 1, 1], [], []>} : vector<8x128xbf16>, vector<128x128xbf16>, vector<8x128xf32> -> vector<8x128xf32>
    %110 = arith.addf %105, %109 : vector<8x128xf32>
    %111 = vector.extract_strided_slice %94 {offsets = [24, 0], sizes = [8, 128], strides = [1, 1]} : vector<32x128xbf16> to vector<8x128xbf16>
    %c3 = arith.constant 3 : index
    %c0_75 = arith.constant 0 : index
    %c0_76 = arith.constant 0 : index
    %112 = vector.load %arg13[%c3, %c0_75, %c0_76] : memref<4x128x128xbf16, #tpu.memory_space<vmem>>, vector<1x128x128xbf16>
    %113 = vector.shape_cast %112 : vector<1x128x128xbf16> to vector<128x128xbf16>
    %cst_77 = arith.constant dense<0.000000e+00> : vector<8x128xf32>
    %114 = tpu.matmul %111, %113, %cst_77 {dimension_numbers = #tpu.dot_dimension_numbers<[1], [0], [0], [1], [0, 0, 1, 1], [], []>} : vector<8x128xbf16>, vector<128x128xbf16>, vector<8x128xf32> -> vector<8x128xf32>
    %115 = arith.addf %110, %114 : vector<8x128xf32>
    %c0_78 = arith.constant 0 : index
    %c0_79 = arith.constant 0 : index
    %116 = vector.load %arg14[%c0_78, %c0_79] : memref<1x128xf32, #tpu.memory_space<vmem>>, vector<1x128xf32>
    %117 = vector.broadcast %116 : vector<1x128xf32> to vector<8x128xf32>
    %118 = arith.addf %115, %117 : vector<8x128xf32>
    %cst_80 = arith.constant 0.000000e+00 : f32
    %119 = vector.broadcast %cst_80 : f32 to vector<8x128xf32>
    %120 = arith.maximumf %118, %119 : vector<8x128xf32>
    %121 = arith.truncf %120 : vector<8x128xf32> to vector<8x128xbf16>
    %c0_81 = arith.constant 0 : index
    %c0_82 = arith.constant 0 : index
    %122 = vector.load %arg15[%c0_81, %c0_82] : memref<128x128xbf16, #tpu.memory_space<vmem>>, vector<128x128xbf16>
    %cst_83 = arith.constant dense<0.000000e+00> : vector<8x128xf32>
    %123 = tpu.matmul %121, %122, %cst_83 {dimension_numbers = #tpu.dot_dimension_numbers<[1], [0], [0], [1], [0, 0, 1, 1], [], []>} : vector<8x128xbf16>, vector<128x128xbf16>, vector<8x128xf32> -> vector<8x128xf32>
    %c0_84 = arith.constant 0 : index
    %c0_85 = arith.constant 0 : index
    %124 = vector.load %arg16[%c0_84, %c0_85] : memref<1x128xf32, #tpu.memory_space<vmem>>, vector<1x128xf32>
    %125 = vector.broadcast %124 : vector<1x128xf32> to vector<8x128xf32>
    %126 = arith.addf %123, %125 : vector<8x128xf32>
    %c0_86 = arith.constant 0 : index
    %c0_87 = arith.constant 0 : index
    %c0_88 = arith.constant 0 : index
    %127 = vector.load %arg17[%c0_86, %c0_87, %c0_88] : memref<1x8x128xf32, #tpu.memory_space<vmem>>, vector<1x8x128xf32>
    %128 = vector.shape_cast %127 : vector<1x8x128xf32> to vector<8x128xf32>
    %129 = vector.shape_cast %126 : vector<8x128xf32> to vector<1x8x128xf32>
    tpu.vector_store %arg17[%c0_86, %c0_87, %c0_88], %129 {strides = array<i32>} : memref<1x8x128xf32, #tpu.memory_space<vmem>>, vector<1x8x128xf32>,
    return
  }
  func.func @transform_0(%arg0: i32) -> (i32, i32, i32) {
    %c0_i32 = arith.constant 0 : i32
    %c0_i32_0 = arith.constant 0 : i32
    %c0_i32_1 = arith.constant 0 : i32
    return %arg0, %c0_i32, %c0_i32_0 : i32, i32, i32
  }
  func.func @transform_1(%arg0: i32) -> (i32, i32, i32) {
    %c0_i32 = arith.constant 0 : i32
    %c0_i32_0 = arith.constant 0 : i32
    %c0_i32_1 = arith.constant 0 : i32
    %c0_i32_2 = arith.constant 0 : i32
    return %c0_i32, %c0_i32_0, %c0_i32_1 : i32, i32, i32
  }
  func.func @transform_2(%arg0: i32) -> (i32, i32) {
    %c0_i32 = arith.constant 0 : i32
    %c0_i32_0 = arith.constant 0 : i32
    %c0_i32_1 = arith.constant 0 : i32
    return %c0_i32, %c0_i32_0 : i32, i32
  }
  func.func @transform_3(%arg0: i32) -> (i32, i32) {
    %c0_i32 = arith.constant 0 : i32
    %c0_i32_0 = arith.constant 0 : i32
    %c0_i32_1 = arith.constant 0 : i32
    return %c0_i32, %c0_i32_0 : i32, i32
  }
  func.func @transform_4(%arg0: i32) -> (i32, i32) {
    %c0_i32 = arith.constant 0 : i32
    %c0_i32_0 = arith.constant 0 : i32
    %c0_i32_1 = arith.constant 0 : i32
    return %c0_i32, %c0_i32_0 : i32, i32
  }
  func.func @transform_5(%arg0: i32) -> (i32, i32, i32) {
    %c0_i32 = arith.constant 0 : i32
    %c0_i32_0 = arith.constant 0 : i32
    %c0_i32_1 = arith.constant 0 : i32
    %c0_i32_2 = arith.constant 0 : i32
    return %c0_i32, %c0_i32_0, %c0_i32_1 : i32, i32, i32
  }
  func.func @transform_6(%arg0: i32) -> (i32, i32) {
    %c0_i32 = arith.constant 0 : i32
    %c0_i32_0 = arith.constant 0 : i32
    %c0_i32_1 = arith.constant 0 : i32
    return %c0_i32, %c0_i32_0 : i32, i32
  }
  func.func @transform_7(%arg0: i32) -> (i32, i32) {
    %c0_i32 = arith.constant 0 : i32
    %c0_i32_0 = arith.constant 0 : i32
    %c0_i32_1 = arith.constant 0 : i32
    return %c0_i32, %c0_i32_0 : i32, i32
  }
  func.func @transform_8(%arg0: i32) -> (i32, i32) {
    %c0_i32 = arith.constant 0 : i32
    %c0_i32_0 = arith.constant 0 : i32
    %c0_i32_1 = arith.constant 0 : i32
    return %c0_i32, %c0_i32_0 : i32, i32
  }
  func.func @transform_9(%arg0: i32) -> (i32, i32, i32) {
    %c0_i32 = arith.constant 0 : i32
    %c0_i32_0 = arith.constant 0 : i32
    %c0_i32_1 = arith.constant 0 : i32
    %c0_i32_2 = arith.constant 0 : i32
    return %c0_i32, %c0_i32_0, %c0_i32_1 : i32, i32, i32
  }
  func.func @transform_10(%arg0: i32) -> (i32, i32) {
    %c0_i32 = arith.constant 0 : i32
    %c0_i32_0 = arith.constant 0 : i32
    %c0_i32_1 = arith.constant 0 : i32
    return %c0_i32, %c0_i32_0 : i32, i32
  }
  func.func @transform_11(%arg0: i32) -> (i32, i32) {
    %c0_i32 = arith.constant 0 : i32
    %c0_i32_0 = arith.constant 0 : i32
    %c0_i32_1 = arith.constant 0 : i32
    return %c0_i32, %c0_i32_0 : i32, i32
  }
  func.func @transform_12(%arg0: i32) -> (i32, i32, i32) {
    %c0_i32 = arith.constant 0 : i32
    %c0_i32_0 = arith.constant 0 : i32
    %c0_i32_1 = arith.constant 0 : i32
    %c0_i32_2 = arith.constant 0 : i32
    return %c0_i32, %c0_i32_0, %c0_i32_1 : i32, i32, i32
  }
  func.func @transform_13(%arg0: i32) -> (i32, i32) {
    %c0_i32 = arith.constant 0 : i32
    %c0_i32_0 = arith.constant 0 : i32
    %c0_i32_1 = arith.constant 0 : i32
    return %c0_i32, %c0_i32_0 : i32, i32
  }
  func.func @transform_14(%arg0: i32) -> (i32, i32) {
    %c0_i32 = arith.constant 0 : i32
    %c0_i32_0 = arith.constant 0 : i32
    %c0_i32_1 = arith.constant 0 : i32
    return %c0_i32, %c0_i32_0 : i32, i32
  }
  func.func @transform_15(%arg0: i32) -> (i32, i32) {
    %c0_i32 = arith.constant 0 : i32
    %c0_i32_0 = arith.constant 0 : i32
    %c0_i32_1 = arith.constant 0 : i32
    return %c0_i32, %c0_i32_0 : i32, i32
  }
  func.func @transform_16(%arg0: i32) -> (i32, i32, i32) {
    %c0_i32 = arith.constant 0 : i32
    %c0_i32_0 = arith.constant 0 : i32
    %c0_i32_1 = arith.constant 0 : i32
    return %arg0, %c0_i32, %c0_i32_0 : i32, i32, i32
  }
}

</mosaic_0001>

<llo_original>
// kernel: forward.1
$region0: #{forward.1}
  #allocation0 [shape = 'u32[]', space=smem, size = 0x4, offset = 0x4, fixed_abs, tag = 'smem constant byte address 0x4 - core index']
  #allocation1 [shape = 'u32[144,128]{1,0:T(1,128)}', space=vmem, size = 0x12000, scoped, tag = 'internal scratch']
  %s0 = inlined_call_operand.vmem [shape: bf16[2,144,144], index: 0, kind: input, shape index: {}]
  %s1 = inlined_call_operand.vmem [shape: bf16[3,144,128], index: 1, kind: input, shape index: {}]
  %s2 = inlined_call_operand.vmem [shape: f32[1,128], index: 2, kind: input, shape index: {}]
  %s3 = inlined_call_operand.vmem [shape: bf16[80,141], index: 3, kind: input, shape index: {}]
  %s4 = inlined_call_operand.vmem [shape: bf16[120,80], index: 4, kind: input, shape index: {}]
  %s5 = inlined_call_operand.vmem [shape: bf16[3,80,128], index: 5, kind: input, shape index: {}]
  %s6 = inlined_call_operand.vmem [shape: f32[1,128], index: 6, kind: input, shape index: {}]
  %s7 = inlined_call_operand.vmem [shape: bf16[48,77], index: 7, kind: input, shape index: {}]
  %s8 = inlined_call_operand.vmem [shape: bf16[112,96], index: 8, kind: input, shape index: {}]
  %s9 = inlined_call_operand.vmem [shape: bf16[3,96,128], index: 9, kind: input, shape index: {}]
  %s10 = inlined_call_operand.vmem [shape: f32[1,128], index: 10, kind: input, shape index: {}]
  %s11 = inlined_call_operand.vmem [shape: bf16[32,46], index: 11, kind: input, shape index: {}]
  %s12 = inlined_call_operand.vmem [shape: bf16[4,128,128], index: 12, kind: input, shape index: {}]
  %s13 = inlined_call_operand.vmem [shape: f32[1,128], index: 13, kind: input, shape index: {}]
  %s14 = inlined_call_operand.vmem [shape: bf16[128,128], index: 14, kind: input, shape index: {}]
  %s15 = inlined_call_operand.vmem [shape: f32[1,128], index: 15, kind: input, shape index: {}]
  %s16 = inlined_call_operand.hbm [shape: f32[2,8,128], index: 16, kind: output, shape index: {}]
  %s17 = sld [smem:[#allocation0]]
  $region97: #{forward.1} parent=0
    _
  %s19 = ssub.s32 1, %s17
  %s20 = scalar_select 0, %s19, %s17
  $region1: #{forward.1} parent=0
    #allocation2 [shape = 'u8[8192]{0}', space=vmem, size = 0x2000, scoped, tag = 'output window, operand 0']
    #allocation3 [shape = 's32[2]{0}', space=sflag, size = 0x8, scoped, tag = 'scoped memory for forward.1']
    %21 = vsyncpa [#allocation3], 0
    %s22 = scalar_lea.sflag [#allocation3], 1
    %23 = vsyncpa %s22, 0
    loop: start=0, step=1, limit=4
    $region2: #{forward.1} parent=1 // loop_pre_header
      _
    $region3: #{forward.1} parent=1 // loop_header
      %s25 = sphi 0, %s29
      %p26 = scmp.ge.s32.totalorder %s25, 4
      %s35 = sphi 0, %s37
      %s38 = sphi 0, %s35
      %s39 = sphi 0, %s38
      %s55 = sphi 0, %s39
      %s59 = sphi 0, %s59
      %s61 = sphi 0, %s59
      %s62 = sphi 0, %s61
      %s76 = sphi 0, %s62
      %s80 = sphi 0, %s80
      %s82 = sphi 0, %s80
      %s83 = sphi 0, %s82
      %s97 = sphi 0, %s83
      %s101 = sphi 0, %s101
      %s103 = sphi 0, %s101
      %s104 = sphi 0, %s103
      %s118 = sphi 0, %s104
      %s122 = sphi 0, %s122
      %s124 = sphi 0, %s122
      %s125 = sphi 0, %s124
      %s139 = sphi 0, %s125
      %s143 = sphi 0, %s143
      %s145 = sphi 0, %s143
      %s146 = sphi 0, %s145
      %s160 = sphi 0, %s146
      %s164 = sphi 0, %s164
      %s166 = sphi 0, %s164
      %s167 = sphi 0, %s166
      %s181 = sphi 0, %s167
      %s185 = sphi 0, %s185
      %s187 = sphi 0, %s185
      %s188 = sphi 0, %s187
      %s202 = sphi 0, %s188
      %s206 = sphi 0, %s206
      %s208 = sphi 0, %s206
      %s209 = sphi 0, %s208
      %s223 = sphi 0, %s209
      %s227 = sphi 0, %s227
      %s229 = sphi 0, %s227
      %s230 = sphi 0, %s229
      %s244 = sphi 0, %s230
      %s248 = sphi 0, %s248
      %s250 = sphi 0, %s248
      %s251 = sphi 0, %s250
      %s265 = sphi 0, %s251
      %s269 = sphi 0, %s269
      %s271 = sphi 0, %s269
      %s272 = sphi 0, %s271
      %s286 = sphi 0, %s272
      %s290 = sphi 0, %s290
      %s292 = sphi 0, %s290
      %s293 = sphi 0, %s292
      %s307 = sphi 0, %s293
      %s311 = sphi 0, %s311
      %s313 = sphi 0, %s311
      %s314 = sphi 0, %s313
      %s328 = sphi 0, %s314
      %s332 = sphi 0, %s332
      %s334 = sphi 0, %s332
      %s335 = sphi 0, %s334
      %s349 = sphi 0, %s335
      %s353 = sphi 0, %s353
      %s355 = sphi 0, %s353
      %s356 = sphi 0, %s355
      %s370 = sphi 0, %s356
      %s376 = sphi 0, %s378
      %s379 = sphi 0, %s376
      %s380 = sphi 0, %s379
      %s396 = sphi 0, %s380
    $region4: #{forward.1} parent=1 // loop_header_branch
      %28 = sbr.rel (%p26) target = $region8
    $region5: #{forward.1} parent=1 // loop_body
      %s30 = ssub.s32 %s25, 1
      %s31 = ssub.s32 %s25, 2
      %s32 = sadd.s32 %s25, 1
      %s33 = ssub.s32 %s25, %s32
      %p34 = scmp.eq.s32.totalorder %s33, 0
      %s36 = sadd.s32 %s35, 1
      %s37 = scalar_select %p34, %s35, %s36
      %p40 = pneg %p34
      %p41 = scmp.eq.s32.totalorder %s25, 1
      %p42 = por %p40, %p41
      %p43 = scmp.ne.s32.totalorder %s35, %s38
      %p44 = scmp.eq.s32.totalorder %s25, 0
      %p45 = por %p43, %p44
      %p46 = scmp.ne.s32.totalorder %s35, %s38
      %p47 = scmp.eq.s32.totalorder %s30, 1
      %p48 = por %p46, %p47
      %p49 = scmp.ne.s32.totalorder %s38, %s39
      %p50 = scmp.eq.s32.totalorder %s30, 0
      %p51 = por %p49, %p50
      %p52 = scmp.ne.s32.totalorder %s38, %s39
      %p53 = scmp.eq.s32.totalorder %s31, 1
      %p54 = por %p52, %p53
      %p56 = scmp.ne.s32.totalorder %s39, %s55
      %p57 = scmp.eq.s32.totalorder %s31, 0
      %p58 = por %p56, %p57
      %s60 = sadd.s32 %s59, 1
      %p63 = scmp.eq.s32.totalorder %s25, 1
      %p64 = scmp.ne.s32.totalorder %s59, %s61
      %p65 = scmp.eq.s32.totalorder %s25, 0
      %p66 = por %p64, %p65
      %p67 = scmp.ne.s32.totalorder %s59, %s61
      %p68 = scmp.eq.s32.totalorder %s30, 1
      %p69 = por %p67, %p68
      %p70 = scmp.ne.s32.totalorder %s61, %s62
      %p71 = scmp.eq.s32.totalorder %s30, 0
      %p72 = por %p70, %p71
      %p73 = scmp.ne.s32.totalorder %s61, %s62
      %p74 = scmp.eq.s32.totalorder %s31, 1
      %p75 = por %p73, %p74
      %p77 = scmp.ne.s32.totalorder %s62, %s76
      %p78 = scmp.eq.s32.totalorder %s31, 0
      %p79 = por %p77, %p78
      %s81 = sadd.s32 %s80, 1
      %p84 = scmp.eq.s32.totalorder %s25, 1
      %p85 = scmp.ne.s32.totalorder %s80, %s82
      %p86 = scmp.eq.s32.totalorder %s25, 0
      %p87 = por %p85, %p86
      %p88 = scmp.ne.s32.totalorder %s80, %s82
      %p89 = scmp.eq.s32.totalorder %s30, 1
      %p90 = por %p88, %p89
      %p91 = scmp.ne.s32.totalorder %s82, %s83
      %p92 = scmp.eq.s32.totalorder %s30, 0
      %p93 = por %p91, %p92
      %p94 = scmp.ne.s32.totalorder %s82, %s83
      %p95 = scmp.eq.s32.totalorder %s31, 1
      %p96 = por %p94, %p95
      %p98 = scmp.ne.s32.totalorder %s83, %s97
      %p99 = scmp.eq.s32.totalorder %s31, 0
      %p100 = por %p98, %p99
      %s102 = sadd.s32 %s101, 1
      %p105 = scmp.eq.s32.totalorder %s25, 1
      %p106 = scmp.ne.s32.totalorder %s101, %s103
      %p107 = scmp.eq.s32.totalorder %s25, 0
      %p108 = por %p106, %p107
      %p109 = scmp.ne.s32.totalorder %s101, %s103
      %p110 = scmp.eq.s32.totalorder %s30, 1
      %p111 = por %p109, %p110
      %p112 = scmp.ne.s32.totalorder %s103, %s104
      %p113 = scmp.eq.s32.totalorder %s30, 0
      %p114 = por %p112, %p113
      %p115 = scmp.ne.s32.totalorder %s103, %s104
      %p116 = scmp.eq.s32.totalorder %s31, 1
      %p117 = por %p115, %p116
      %p119 = scmp.ne.s32.totalorder %s104, %s118
      %p120 = scmp.eq.s32.totalorder %s31, 0
      %p121 = por %p119, %p120
      %s123 = sadd.s32 %s122, 1
      %p126 = scmp.eq.s32.totalorder %s25, 1
      %p127 = scmp.ne.s32.totalorder %s122, %s124
      %p128 = scmp.eq.s32.totalorder %s25, 0
      %p129 = por %p127, %p128
      %p130 = scmp.ne.s32.totalorder %s122, %s124
      %p131 = scmp.eq.s32.totalorder %s30, 1
      %p132 = por %p130, %p131
      %p133 = scmp.ne.s32.totalorder %s124, %s125
      %p134 = scmp.eq.s32.totalorder %s30, 0
      %p135 = por %p133, %p134
      %p136 = scmp.ne.s32.totalorder %s124, %s125
      %p137 = scmp.eq.s32.totalorder %s31, 1
      %p138 = por %p136, %p137
      %p140 = scmp.ne.s32.totalorder %s125, %s139
      %p141 = scmp.eq.s32.totalorder %s31, 0
      %p142 = por %p140, %p141
      %s144 = sadd.s32 %s143, 1
      %p147 = scmp.eq.s32.totalorder %s25, 1
      %p148 = scmp.ne.s32.totalorder %s143, %s145
      %p149 = scmp.eq.s32.totalorder %s25, 0
      %p150 = por %p148, %p149
      %p151 = scmp.ne.s32.totalorder %s143, %s145
      %p152 = scmp.eq.s32.totalorder %s30, 1
      %p153 = por %p151, %p152
      %p154 = scmp.ne.s32.totalorder %s145, %s146
      %p155 = scmp.eq.s32.totalorder %s30, 0
      %p156 = por %p154, %p155
      %p157 = scmp.ne.s32.totalorder %s145, %s146
      %p158 = scmp.eq.s32.totalorder %s31, 1
      %p159 = por %p157, %p158
      %p161 = scmp.ne.s32.totalorder %s146, %s160
      %p162 = scmp.eq.s32.totalorder %s31, 0
      %p163 = por %p161, %p162
      %s165 = sadd.s32 %s164, 1
      %p168 = scmp.eq.s32.totalorder %s25, 1
      %p169 = scmp.ne.s32.totalorder %s164, %s166
      %p170 = scmp.eq.s32.totalorder %s25, 0
      %p171 = por %p169, %p170
      %p172 = scmp.ne.s32.totalorder %s164, %s166
      %p173 = scmp.eq.s32.totalorder %s30, 1
      %p174 = por %p172, %p173
      %p175 = scmp.ne.s32.totalorder %s166, %s167
      %p176 = scmp.eq.s32.totalorder %s30, 0
      %p177 = por %p175, %p176
      %p178 = scmp.ne.s32.totalorder %s166, %s167
      %p179 = scmp.eq.s32.totalorder %s31, 1
      %p180 = por %p178, %p179
      %p182 = scmp.ne.s32.totalorder %s167, %s181
      %p183 = scmp.eq.s32.totalorder %s31, 0
      %p184 = por %p182, %p183
      %s186 = sadd.s32 %s185, 1
      %p189 = scmp.eq.s32.totalorder %s25, 1
      %p190 = scmp.ne.s32.totalorder %s185, %s187
      %p191 = scmp.eq.s32.totalorder %s25, 0
      %p192 = por %p190, %p191
      %p193 = scmp.ne.s32.totalorder %s185, %s187
      %p194 = scmp.eq.s32.totalorder %s30, 1
      %p195 = por %p193, %p194
      %p196 = scmp.ne.s32.totalorder %s187, %s188
      %p197 = scmp.eq.s32.totalorder %s30, 0
      %p198 = por %p196, %p197
      %p199 = scmp.ne.s32.totalorder %s187, %s188
      %p200 = scmp.eq.s32.totalorder %s31, 1
      %p201 = por %p199, %p200
      %p203 = scmp.ne.s32.totalorder %s188, %s202
      %p204 = scmp.eq.s32.totalorder %s31, 0
      %p205 = por %p203, %p204
      %s207 = sadd.s32 %s206, 1
      %p210 = scmp.eq.s32.totalorder %s25, 1
      %p211 = scmp.ne.s32.totalorder %s206, %s208
      %p212 = scmp.eq.s32.totalorder %s25, 0
      %p213 = por %p211, %p212
      %p214 = scmp.ne.s32.totalorder %s206, %s208
      %p215 = scmp.eq.s32.totalorder %s30, 1
      %p216 = por %p214, %p215
      %p217 = scmp.ne.s32.totalorder %s208, %s209
      %p218 = scmp.eq.s32.totalorder %s30, 0
      %p219 = por %p217, %p218
      %p220 = scmp.ne.s32.totalorder %s208, %s209
      %p221 = scmp.eq.s32.totalorder %s31, 1
      %p222 = por %p220, %p221
      %p224 = scmp.ne.s32.totalorder %s209, %s223
      %p225 = scmp.eq.s32.totalorder %s31, 0
      %p226 = por %p224, %p225
      %s228 = sadd.s32 %s227, 1
      %p231 = scmp.eq.s32.totalorder %s25, 1
      %p232 = scmp.ne.s32.totalorder %s227, %s229
      %p233 = scmp.eq.s32.totalorder %s25, 0
      %p234 = por %p232, %p233
      %p235 = scmp.ne.s32.totalorder %s227, %s229
      %p236 = scmp.eq.s32.totalorder %s30, 1
      %p237 = por %p235, %p236
      %p238 = scmp.ne.s32.totalorder %s229, %s230
      %p239 = scmp.eq.s32.totalorder %s30, 0
      %p240 = por %p238, %p239
      %p241 = scmp.ne.s32.totalorder %s229, %s230
      %p242 = scmp.eq.s32.totalorder %s31, 1
      %p243 = por %p241, %p242
      %p245 = scmp.ne.s32.totalorder %s230, %s244
      %p246 = scmp.eq.s32.totalorder %s31, 0
      %p247 = por %p245, %p246
      %s249 = sadd.s32 %s248, 1
      %p252 = scmp.eq.s32.totalorder %s25, 1
      %p253 = scmp.ne.s32.totalorder %s248, %s250
      %p254 = scmp.eq.s32.totalorder %s25, 0
      %p255 = por %p253, %p254
      %p256 = scmp.ne.s32.totalorder %s248, %s250
      %p257 = scmp.eq.s32.totalorder %s30, 1
      %p258 = por %p256, %p257
      %p259 = scmp.ne.s32.totalorder %s250, %s251
      %p260 = scmp.eq.s32.totalorder %s30, 0
      %p261 = por %p259, %p260
      %p262 = scmp.ne.s32.totalorder %s250, %s251
      %p263 = scmp.eq.s32.totalorder %s31, 1
      %p264 = por %p262, %p263
      %p266 = scmp.ne.s32.totalorder %s251, %s265
      %p267 = scmp.eq.s32.totalorder %s31, 0
      %p268 = por %p266, %p267
      %s270 = sadd.s32 %s269, 1
      %p273 = scmp.eq.s32.totalorder %s25, 1
      %p274 = scmp.ne.s32.totalorder %s269, %s271
      %p275 = scmp.eq.s32.totalorder %s25, 0
      %p276 = por %p274, %p275
      %p277 = scmp.ne.s32.totalorder %s269, %s271
      %p278 = scmp.eq.s32.totalorder %s30, 1
      %p279 = por %p277, %p278
      %p280 = scmp.ne.s32.totalorder %s271, %s272
      %p281 = scmp.eq.s32.totalorder %s30, 0
      %p282 = por %p280, %p281
      %p283 = scmp.ne.s32.totalorder %s271, %s272
      %p284 = scmp.eq.s32.totalorder %s31, 1
      %p285 = por %p283, %p284
      %p287 = scmp.ne.s32.totalorder %s272, %s286
      %p288 = scmp.eq.s32.totalorder %s31, 0
      %p289 = por %p287, %p288
      %s291 = sadd.s32 %s290, 1
      %p294 = scmp.eq.s32.totalorder %s25, 1
      %p295 = scmp.ne.s32.totalorder %s290, %s292
      %p296 = scmp.eq.s32.totalorder %s25, 0
      %p297 = por %p295, %p296
      %p298 = scmp.ne.s32.totalorder %s290, %s292
      %p299 = scmp.eq.s32.totalorder %s30, 1
      %p300 = por %p298, %p299
      %p301 = scmp.ne.s32.totalorder %s292, %s293
      %p302 = scmp.eq.s32.totalorder %s30, 0
      %p303 = por %p301, %p302
      %p304 = scmp.ne.s32.totalorder %s292, %s293
      %p305 = scmp.eq.s32.totalorder %s31, 1
      %p306 = por %p304, %p305
      %p308 = scmp.ne.s32.totalorder %s293, %s307
      %p309 = scmp.eq.s32.totalorder %s31, 0
      %p310 = por %p308, %p309
      %s312 = sadd.s32 %s311, 1
      %p315 = scmp.eq.s32.totalorder %s25, 1
      %p316 = scmp.ne.s32.totalorder %s311, %s313
      %p317 = scmp.eq.s32.totalorder %s25, 0
      %p318 = por %p316, %p317
      %p319 = scmp.ne.s32.totalorder %s311, %s313
      %p320 = scmp.eq.s32.totalorder %s30, 1
      %p321 = por %p319, %p320
      %p322 = scmp.ne.s32.totalorder %s313, %s314
      %p323 = scmp.eq.s32.totalorder %s30, 0
      %p324 = por %p322, %p323
      %p325 = scmp.ne.s32.totalorder %s313, %s314
      %p326 = scmp.eq.s32.totalorder %s31, 1
      %p327 = por %p325, %p326
      %p329 = scmp.ne.s32.totalorder %s314, %s328
      %p330 = scmp.eq.s32.totalorder %s31, 0
      %p331 = por %p329, %p330
      %s333 = sadd.s32 %s332, 1
      %p336 = scmp.eq.s32.totalorder %s25, 1
      %p337 = scmp.ne.s32.totalorder %s332, %s334
      %p338 = scmp.eq.s32.totalorder %s25, 0
      %p339 = por %p337, %p338
      %p340 = scmp.ne.s32.totalorder %s332, %s334
      %p341 = scmp.eq.s32.totalorder %s30, 1
      %p342 = por %p340, %p341
      %p343 = scmp.ne.s32.totalorder %s334, %s335
      %p344 = scmp.eq.s32.totalorder %s30, 0
      %p345 = por %p343, %p344
      %p346 = scmp.ne.s32.totalorder %s334, %s335
      %p347 = scmp.eq.s32.totalorder %s31, 1
      %p348 = por %p346, %p347
      %p350 = scmp.ne.s32.totalorder %s335, %s349
      %p351 = scmp.eq.s32.totalorder %s31, 0
      %p352 = por %p350, %p351
      %s354 = sadd.s32 %s353, 1
      %p357 = scmp.eq.s32.totalorder %s25, 1
      %p358 = scmp.ne.s32.totalorder %s353, %s355
      %p359 = scmp.eq.s32.totalorder %s25, 0
      %p360 = por %p358, %p359
      %p361 = scmp.ne.s32.totalorder %s353, %s355
      %p362 = scmp.eq.s32.totalorder %s30, 1
      %p363 = por %p361, %p362
      %p364 = scmp.ne.s32.totalorder %s355, %s356
      %p365 = scmp.eq.s32.totalorder %s30, 0
      %p366 = por %p364, %p365
      %p367 = scmp.ne.s32.totalorder %s355, %s356
      %p368 = scmp.eq.s32.totalorder %s31, 1
      %p369 = por %p367, %p368
      %p371 = scmp.ne.s32.totalorder %s356, %s370
      %p372 = scmp.eq.s32.totalorder %s31, 0
      %p373 = por %p371, %p372
      %s374 = ssub.s32 %s25, %s32
      %p375 = scmp.eq.s32.totalorder %s374, 0
      %s377 = sadd.s32 %s376, 1
      %s378 = scalar_select %p375, %s376, %s377
      %p381 = pneg %p375
      %p382 = scmp.eq.s32.totalorder %s25, 1
      %p383 = por %p381, %p382
      %p384 = scmp.ne.s32.totalorder %s376, %s379
      %p385 = scmp.eq.s32.totalorder %s25, 0
      %p386 = por %p384, %p385
      %p387 = scmp.ne.s32.totalorder %s376, %s379
      %p388 = scmp.eq.s32.totalorder %s30, 1
      %p389 = por %p387, %p388
      %p390 = scmp.ne.s32.totalorder %s379, %s380
      %p391 = scmp.eq.s32.totalorder %s30, 0
      %p392 = por %p390, %p391
      %p393 = scmp.ne.s32.totalorder %s379, %s380
      %p394 = scmp.eq.s32.totalorder %s31, 1
      %p395 = por %p393, %p394
      %p397 = scmp.ne.s32.totalorder %s380, %s396
      %p398 = scmp.eq.s32.totalorder %s31, 0
      %p399 = por %p397, %p398
      %p400 = scmp.le.s32.totalorder 1, %s25
      %p401 = scmp.lt.s32.totalorder %s25, 3
      %p402 = pnand %p400, %p401
      %p403 = pneg %p402
      // Predicated region
      $region9: #{forward.1} parent=5 // pred_check
        _
      $region10: #{forward.1} parent=5 // pred_check_branch
        %405 = sbr.rel (%p402) target = $region12
      $region11: #{forward.1} parent=5 // pred_region
        %s406 = ssub.s32 %s25, 1
        // Predicated region
        $region13: #{forward.1} parent=11 // pred_check
          %p407 = pneg %p72
        $region14: #{forward.1} parent=11 // pred_check_branch
          %409 = sbr.rel (%p407) target = $region16
        $region15: #{forward.1} parent=11 // pred_region
          _
        $region16: #{forward.1} parent=11 // pred_fallthru
          _
        // Predicated region
        $region17: #{forward.1} parent=11 // pred_check
          %p410 = pneg %p93
        $region18: #{forward.1} parent=11 // pred_check_branch
          %412 = sbr.rel (%p410) target = $region20
        $region19: #{forward.1} parent=11 // pred_region
          _
        $region20: #{forward.1} parent=11 // pred_fallthru
          _
        // Predicated region
        $region21: #{forward.1} parent=11 // pred_check
          %p413 = pneg %p114
        $region22: #{forward.1} parent=11 // pred_check_branch
          %415 = sbr.rel (%p413) target = $region24
        $region23: #{forward.1} parent=11 // pred_region
          _
        $region24: #{forward.1} parent=11 // pred_fallthru
          _
        // Predicated region
        $region25: #{forward.1} parent=11 // pred_check
          %p416 = pneg %p135
        $region26: #{forward.1} parent=11 // pred_check_branch
          %418 = sbr.rel (%p416) target = $region28
        $region27: #{forward.1} parent=11 // pred_region
          _
        $region28: #{forward.1} parent=11 // pred_fallthru
          _
        // Predicated region
        $region29: #{forward.1} parent=11 // pred_check
          %p419 = pneg %p156
        $region30: #{forward.1} parent=11 // pred_check_branch
          %421 = sbr.rel (%p419) target = $region32
        $region31: #{forward.1} parent=11 // pred_region
          _
        $region32: #{forward.1} parent=11 // pred_fallthru
          _
        // Predicated region
        $region33: #{forward.1} parent=11 // pred_check
          %p422 = pneg %p177
        $region34: #{forward.1} parent=11 // pred_check_branch
          %424 = sbr.rel (%p422) target = $region36
        $region35: #{forward.1} parent=11 // pred_region
          _
        $region36: #{forward.1} parent=11 // pred_fallthru
          _
        // Predicated region
        $region37: #{forward.1} parent=11 // pred_check
          %p425 = pneg %p198
        $region38: #{forward.1} parent=11 // pred_check_branch
          %427 = sbr.rel (%p425) target = $region40
        $region39: #{forward.1} parent=11 // pred_region
          _
        $region40: #{forward.1} parent=11 // pred_fallthru
          _
        // Predicated region
        $region41: #{forward.1} parent=11 // pred_check
          %p428 = pneg %p219
        $region42: #{forward.1} parent=11 // pred_check_branch
          %430 = sbr.rel (%p428) target = $region44
        $region43: #{forward.1} parent=11 // pred_region
          _
        $region44: #{forward.1} parent=11 // pred_fallthru
          _
        // Predicated region
        $region45: #{forward.1} parent=11 // pred_check
          %p431 = pneg %p240
        $region46: #{forward.1} parent=11 // pred_check_branch
          %433 = sbr.rel (%p431) target = $region48
        $region47: #{forward.1} parent=11 // pred_region
          _
        $region48: #{forward.1} parent=11 // pred_fallthru
          _
        // Predicated region
        $region49: #{forward.1} parent=11 // pred_check
          %p434 = pneg %p261
        $region50: #{forward.1} parent=11 // pred_check_branch
          %436 = sbr.rel (%p434) target = $region52
        $region51: #{forward.1} parent=11 // pred_region
          _
        $region52: #{forward.1} parent=11 // pred_fallthru
          _
        // Predicated region
        $region53: #{forward.1} parent=11 // pred_check
          %p437 = pneg %p282
        $region54: #{forward.1} parent=11 // pred_check_branch
          %439 = sbr.rel (%p437) target = $region56
        $region55: #{forward.1} parent=11 // pred_region
          _
        $region56: #{forward.1} parent=11 // pred_fallthru
          _
        // Predicated region
        $region57: #{forward.1} parent=11 // pred_check
          %p440 = pneg %p303
        $region58: #{forward.1} parent=11 // pred_check_branch
          %442 = sbr.rel (%p440) target = $region60
        $region59: #{forward.1} parent=11 // pred_region
          _
        $region60: #{forward.1} parent=11 // pred_fallthru
          _
        // Predicated region
        $region61: #{forward.1} parent=11 // pred_check
          %p443 = pneg %p324
        $region62: #{forward.1} parent=11 // pred_check_branch
          %445 = sbr.rel (%p443) target = $region64
        $region63: #{forward.1} parent=11 // pred_region
          _
        $region64: #{forward.1} parent=11 // pred_fallthru
          _
        // Predicated region
        $region65: #{forward.1} parent=11 // pred_check
          %p446 = pneg %p345
        $region66: #{forward.1} parent=11 // pred_check_branch
          %448 = sbr.rel (%p446) target = $region68
        $region67: #{forward.1} parent=11 // pred_region
          _
        $region68: #{forward.1} parent=11 // pred_fallthru
          _
        // Predicated region
        $region69: #{forward.1} parent=11 // pred_check
          %p449 = pneg %p366
        $region70: #{forward.1} parent=11 // pred_check_branch
          %451 = sbr.rel (%p449) target = $region72
        $region71: #{forward.1} parent=11 // pred_region
          _
        $region72: #{forward.1} parent=11 // pred_fallthru
          _
      $region12: #{forward.1} parent=5 // pred_fallthru
        _
      %p452 = scmp.lt.s32.totalorder %s25, 2
      // Predicated region
      $region73: #{forward.1} parent=5 // pred_check
        %p453 = pneg %p452
      $region74: #{forward.1} parent=5 // pred_check_branch
        %455 = sbr.rel (%p453) target = $region76
      $region75: #{forward.1} parent=5 // pred_region
        // Predicated region
        $region77: #{forward.1} parent=75 // pred_check
          %p456 = pneg %p45
        $region78: #{forward.1} parent=75 // pred_check_branch
          %458 = sbr.rel (%p456) target = $region80
        $region79: #{forward.1} parent=75 // pred_region
          %p459 = scmp.lt.s32.totalorder %s25, 1
          %s460 = scalar_select %p459, %s25, 1
          %s461 = smul.addr %s460, 36
          %s462 = smul.addr %s461, 4
          %s463 = scalar_lea.vmem %s0, %s462
        $region80: #{forward.1} parent=75 // pred_fallthru
          _
      $region76: #{forward.1} parent=5 // pred_fallthru
        _
      %p464 = scmp.le.s32.totalorder 1, %s25
      %p465 = scmp.lt.s32.totalorder %s25, 3
      %p466 = pnand %p464, %p465
      %p467 = pneg %p466
      // Predicated region
      $region81: #{forward.1} parent=5 // pred_check
        _
      $region82: #{forward.1} parent=5 // pred_check_branch
        %469 = sbr.rel (%p466) target = $region84
      $region83: #{forward.1} parent=5 // pred_region
        %s470 = ssub.s32 %s25, 1
        %p471 = scmp.lt.s32.totalorder %s30, 1
        %s472 = scalar_select %p471, %s30, 1
        %s473 = smul.addr %s472, 36
        %s474 = smul.addr %s473, 4
        %s475 = scalar_lea.vmem %s0, %s474
        %p476 = pneg %p51
        %p477 = pneg %p48
        %p478 = pneg %p72
        %p479 = pneg %p69
        %p480 = pneg %p93
        %p481 = pneg %p90
        %p482 = pneg %p114
        %p483 = pneg %p111
        %p484 = pneg %p135
        %p485 = pneg %p132
        %p486 = pneg %p156
        %p487 = pneg %p153
        %p488 = pneg %p177
        %p489 = pneg %p174
        %p490 = pneg %p198
        %p491 = pneg %p195
        %p492 = pneg %p219
        %p493 = pneg %p216
        %p494 = pneg %p240
        %p495 = pneg %p237
        %p496 = pneg %p261
        %p497 = pneg %p258
        %p498 = pneg %p282
        %p499 = pneg %p279
        %p500 = pneg %p303
        %p501 = pneg %p300
        %p502 = pneg %p324
        %p503 = pneg %p321
        %p504 = pneg %p345
        %p505 = pneg %p342
        %p506 = pneg %p366
        %p507 = pneg %p363
        %p508 = pneg %p392
        %p509 = pneg %p389
        %s510 = sand.u32 %s379, 1
        %s511 = scalar_lea.sflag [#allocation3], %s510
        %s512 = sand.u32 %s379, 1
        %s513 = smul.addr %s512, 8
        %s514 = scalar_lea.vmem [#allocation2], %s513
        %p515 = scmp.lt.s32.totalorder %s30, 1
        %s516 = scalar_select %p515, %s30, 1
        %s517 = smul.addr %s516, 36
        %s518 = smul.addr %s517, 4
        %s519 = scalar_lea.vmem %s0, %s518
        %v521 = vld [vmem:[%s519] sm:$0xff]
        %v522 = vld [vmem:[%s519 + $0x8] sm:$0xff]
        %v523 = vld [vmem:[%s519 + $0x10] sm:$0xff]
        %v524 = vld [vmem:[%s519 + $0x18] sm:$0xff]
        %v525 = vld [vmem:[%s519 + $0x20] sm:$0xff]
        %v526 = vld [vmem:[%s519 + $0x28] sm:$0xff]
        %v527 = vld [vmem:[%s519 + $0x30] sm:$0xff]
        %v528 = vld [vmem:[%s519 + $0x38] sm:$0xff]
        %v529 = vld [vmem:[%s519 + $0x40] sm:$0xff]
        %v530 = vld [vmem:[%s519 + $0x48] sm:$0xff]
        %v531 = vld [vmem:[%s519 + $0x50] sm:$0xff]
        %v532 = vld [vmem:[%s519 + $0x58] sm:$0xff]
        %v533 = vld [vmem:[%s519 + $0x60] sm:$0xff]
        %v534 = vld [vmem:[%s519 + $0x68] sm:$0xff]
        %v535 = vld [vmem:[%s519 + $0x70] sm:$0xff]
        %v536 = vld [vmem:[%s519 + $0x78] sm:$0xff]
        %v537 = vld [vmem:[%s519 + $0x80] sm:$0xff]
        %v538 = vld [vmem:[%s519 + $0x88] sm:$0xff]
        %v539 = vld [vmem:[%s1] sm:$0xf]
        %v540 = vld [vmem:[%s1 + $0x4] sm:$0xf]
        %v541 = vld [vmem:[%s1 + $0x8] sm:$0xf]
        %v542 = vld [vmem:[%s1 + $0xc] sm:$0xf]
        %v543 = vld [vmem:[%s1 + $0x10] sm:$0xf]
        %v544 = vld [vmem:[%s1 + $0x14] sm:$0xf]
        %v545 = vld [vmem:[%s1 + $0x18] sm:$0xf]
        %v546 = vld [vmem:[%s1 + $0x1c] sm:$0xf]
        %v547 = vld [vmem:[%s1 + $0x20] sm:$0xf]
        %v548 = vld [vmem:[%s1 + $0x24] sm:$0xf]
        %v549 = vld [vmem:[%s1 + $0x28] sm:$0xf]
        %v550 = vld [vmem:[%s1 + $0x2c] sm:$0xf]
        %v551 = vld [vmem:[%s1 + $0x30] sm:$0xf]
        %v552 = vld [vmem:[%s1 + $0x34] sm:$0xf]
        %v553 = vld [vmem:[%s1 + $0x38] sm:$0xf]
        %v554 = vld [vmem:[%s1 + $0x3c] sm:$0xf]
        %v555 = vld [vmem:[%s1 + $0x40] sm:$0xf]
        %v556 = vld [vmem:[%s1 + $0x44] sm:$0xf]
        %s557 = scalar_lea.vmem %s1, 72
        %v558 = vld [vmem:[%s557] sm:$0xf]
        %v559 = vld [vmem:[%s557 + $0x4] sm:$0xf]
        %v560 = vld [vmem:[%s557 + $0x8] sm:$0xf]
        %v561 = vld [vmem:[%s557 + $0xc] sm:$0xf]
        %v562 = vld [vmem:[%s557 + $0x10] sm:$0xf]
        %v563 = vld [vmem:[%s557 + $0x14] sm:$0xf]
        %v564 = vld [vmem:[%s557 + $0x18] sm:$0xf]
        %v565 = vld [vmem:[%s557 + $0x1c] sm:$0xf]
        %v566 = vld [vmem:[%s557 + $0x20] sm:$0xf]
        %v567 = vld [vmem:[%s557 + $0x24] sm:$0xf]
        %v568 = vld [vmem:[%s557 + $0x28] sm:$0xf]
        %v569 = vld [vmem:[%s557 + $0x2c] sm:$0xf]
        %v570 = vld [vmem:[%s557 + $0x30] sm:$0xf]
        %v571 = vld [vmem:[%s557 + $0x34] sm:$0xf]
        %v572 = vld [vmem:[%s557 + $0x38] sm:$0xf]
        %v573 = vld [vmem:[%s557 + $0x3c] sm:$0xf]
        %v574 = vld [vmem:[%s557 + $0x40] sm:$0xf]
        %v575 = vld [vmem:[%s557 + $0x44] sm:$0xf]
        %v594 = vunpack.c.l.b16 %v521
        %v595 = vunpack.c.h.b16 %v521
        %v596 = vunpack.c.l.b16 %v522
        %v597 = vunpack.c.h.b16 %v522
        %v598 = vunpack.c.l.b16 %v523
        %v599 = vunpack.c.h.b16 %v523
        %v600 = vunpack.c.l.b16 %v524
        %v601 = vunpack.c.h.b16 %v524
        %v602 = vunpack.c.l.b16 %v525
        %v603 = vunpack.c.h.b16 %v525
        %v604 = vunpack.c.l.b16 %v526
        %v605 = vunpack.c.h.b16 %v526
        %v606 = vunpack.c.l.b16 %v527
        %v607 = vunpack.c.h.b16 %v527
        %v608 = vunpack.c.l.b16 %v528
        %v609 = vunpack.c.h.b16 %v528
        %v610 = vunpack.c.l.b16 %v529
        %v611 = vunpack.c.h.b16 %v529
        %v612 = vunpack.c.l.b16 %v530
        %v613 = vunpack.c.h.b16 %v530
        %v614 = vunpack.c.l.b16 %v531
        %v615 = vunpack.c.h.b16 %v531
        %v616 = vunpack.c.l.b16 %v532
        %v617 = vunpack.c.h.b16 %v532
        %v618 = vunpack.c.l.b16 %v533
        %v619 = vunpack.c.h.b16 %v533
        %v620 = vunpack.c.l.b16 %v534
        %v621 = vunpack.c.h.b16 %v534
        %v622 = vunpack.c.l.b16 %v535
        %v623 = vunpack.c.h.b16 %v535
        %v624 = vunpack.c.l.b16 %v536
        %v625 = vunpack.c.h.b16 %v536
        %v626 = vunpack.c.l.b16 %v537
        %v627 = vunpack.c.h.b16 %v537
        %v628 = vunpack.c.l.b16 %v538
        %v629 = vunpack.c.h.b16 %v538
        %v630 = vpack.c.b16 %v596, %v594
        %v631 = vpack.c.b16 %v597, %v595
        %v632 = vpack.c.b16 %v600, %v598
        %v633 = vpack.c.b16 %v601, %v599
        %v634 = vpack.c.b16 %v604, %v602
        %v635 = vpack.c.b16 %v605, %v603
        %v636 = vpack.c.b16 %v608, %v606
        %v637 = vpack.c.b16 %v609, %v607
        %v638 = vpack.c.b16 %v612, %v610
        %v639 = vpack.c.b16 %v613, %v611
        %v640 = vpack.c.b16 %v616, %v614
        %v641 = vpack.c.b16 %v617, %v615
        %v642 = vpack.c.b16 %v620, %v618
        %v643 = vpack.c.b16 %v621, %v619
        %v644 = vpack.c.b16 %v624, %v622
        %v645 = vpack.c.b16 %v625, %v623
        %v646 = vpack.c.b16 %v628, %v626
        %v647 = vpack.c.b16 %v629, %v627
        %vm648 = vsmask.f32 7424
        %v650 = vshrl.u32 %v630, 16
        %v652 = vshll.u32 %v630, 16
        %v654 = vrot.slane %v652, 1
        %v655 = vor.u32 %v650, %v654
        %v657 = vshll.u32 %v632, 16
        %v659 = vrot.slane %v657, 1
        %v660 = vsel %vm648, %v655, %v659
        %v662 = vshrl.u32 %v631, 16
        %v664 = vshll.u32 %v631, 16
        %v666 = vrot.slane %v664, 1
        %v667 = vor.u32 %v662, %v666
        %v669 = vshll.u32 %v633, 16
        %v671 = vrot.slane %v669, 1
        %v672 = vsel %vm648, %v667, %v671
        %v673 = vshrl.u32 %v632, 16
        %v675 = vor.u32 %v673, %v659
        %v677 = vshll.u32 %v634, 16
        %v679 = vrot.slane %v677, 1
        %v680 = vsel %vm648, %v675, %v679
        %v681 = vshrl.u32 %v633, 16
        %v683 = vor.u32 %v681, %v671
        %v685 = vshll.u32 %v635, 16
        %v687 = vrot.slane %v685, 1
        %v688 = vsel %vm648, %v683, %v687
        %v689 = vshrl.u32 %v634, 16
        %v691 = vor.u32 %v689, %v679
        %v693 = vshll.u32 %v636, 16
        %v695 = vrot.slane %v693, 1
        %v696 = vsel %vm648, %v691, %v695
        %v697 = vshrl.u32 %v635, 16
        %v699 = vor.u32 %v697, %v687
        %v701 = vshll.u32 %v637, 16
        %v703 = vrot.slane %v701, 1
        %v704 = vsel %vm648, %v699, %v703
        %v705 = vshrl.u32 %v636, 16
        %v707 = vor.u32 %v705, %v695
        %v709 = vshll.u32 %v638, 16
        %v711 = vrot.slane %v709, 1
        %v712 = vsel %vm648, %v707, %v711
        %v713 = vshrl.u32 %v637, 16
        %v715 = vor.u32 %v713, %v703
        %v717 = vshll.u32 %v639, 16
        %v719 = vrot.slane %v717, 1
        %v720 = vsel %vm648, %v715, %v719
        %v721 = vshrl.u32 %v638, 16
        %v723 = vor.u32 %v721, %v711
        %v725 = vshll.u32 %v640, 16
        %v727 = vrot.slane %v725, 1
        %v728 = vsel %vm648, %v723, %v727
        %v729 = vshrl.u32 %v639, 16
        %v731 = vor.u32 %v729, %v719
        %v733 = vshll.u32 %v641, 16
        %v735 = vrot.slane %v733, 1
        %v736 = vsel %vm648, %v731, %v735
        %v737 = vshrl.u32 %v640, 16
        %v739 = vor.u32 %v737, %v727
        %v741 = vshll.u32 %v642, 16
        %v743 = vrot.slane %v741, 1
        %v744 = vsel %vm648, %v739, %v743
        %v745 = vshrl.u32 %v641, 16
        %v747 = vor.u32 %v745, %v735
        %v749 = vshll.u32 %v643, 16
        %v751 = vrot.slane %v749, 1
        %v752 = vsel %vm648, %v747, %v751
        %v753 = vshrl.u32 %v642, 16
        %v755 = vor.u32 %v753, %v743
        %v757 = vshll.u32 %v644, 16
        %v759 = vrot.slane %v757, 1
        %v760 = vsel %vm648, %v755, %v759
        %v761 = vshrl.u32 %v643, 16
        %v763 = vor.u32 %v761, %v751
        %v765 = vshll.u32 %v645, 16
        %v767 = vrot.slane %v765, 1
        %v768 = vsel %vm648, %v763, %v767
        %v769 = vshrl.u32 %v644, 16
        %v771 = vor.u32 %v769, %v759
        %v773 = vshll.u32 %v646, 16
        %v775 = vrot.slane %v773, 1
        %v776 = vsel %vm648, %v771, %v775
        %v777 = vshrl.u32 %v645, 16
        %v779 = vor.u32 %v777, %v767
        %v781 = vshll.u32 %v647, 16
        %v783 = vrot.slane %v781, 1
        %v784 = vsel %vm648, %v779, %v783
        %v785 = vshrl.u32 %v646, 16
        %v787 = vor.u32 %v785, %v775
        %v788 = vshrl.u32 %v647, 16
        %v790 = vor.u32 %v788, %v783
        %v818 = vunpack.c.l.b16 %v558
        %v819 = vunpack.c.l.b16 %v559
        %v820 = vunpack.c.l.b16 %v560
        %v821 = vunpack.c.l.b16 %v561
        %v822 = vunpack.c.l.b16 %v562
        %v823 = vunpack.c.l.b16 %v563
        %v824 = vunpack.c.l.b16 %v564
        %v825 = vunpack.c.l.b16 %v565
        %v826 = vunpack.c.l.b16 %v566
        %v827 = vunpack.c.l.b16 %v567
        %v828 = vunpack.c.l.b16 %v568
        %v829 = vunpack.c.l.b16 %v569
        %v830 = vunpack.c.l.b16 %v570
        %v831 = vunpack.c.l.b16 %v571
        %v832 = vunpack.c.l.b16 %v572
        %v833 = vunpack.c.l.b16 %v573
        %v834 = vunpack.c.l.b16 %v574
        %v835 = vunpack.c.l.b16 %v575
        %v836 = vpack.c.b16 %v819, %v818
        %v837 = vpack.c.b16 %v821, %v820
        %v838 = vpack.c.b16 %v823, %v822
        %v839 = vpack.c.b16 %v825, %v824
        %v840 = vpack.c.b16 %v827, %v826
        %v841 = vpack.c.b16 %v829, %v828
        %v842 = vpack.c.b16 %v831, %v830
        %v843 = vpack.c.b16 %v833, %v832
        %v844 = vpack.c.b16 %v835, %v834
        %vm854 = vcmask 130048
        %v856 = vsel %vm854, %v672, 0
        %v859 = vsel %vm854, %v688, 0
        %v862 = vsel %vm854, %v704, 0
        %v865 = vsel %vm854, %v720, 0
        %v868 = vsel %vm854, %v736, 0
        %v871 = vsel %vm854, %v752, 0
        %v874 = vsel %vm854, %v768, 0
        %v877 = vsel %vm854, %v784, 0
        %v880 = vsel %vm854, %v790, 0
        %882 = vmatprep.subr.bf16.mxu0 0
        %883 = vmatpush1.bf16.msra.mxu0 %v836
        %884 = vmatprep.subr.bf16.mxu0 0
        %885 = vmatpush1.bf16.msra.mxu0 %v837
        %886 = vmatprep.subr.bf16.mxu0 0
        %887 = vmatpush1.bf16.msra.mxu0 %v838
        %888 = vmatprep.subr.bf16.mxu0 0
        %889 = vmatpush1.bf16.msra.mxu0 %v839
        %890 = vmatprep.subr.bf16.mxu0 0
        %891 = vmatpush1.bf16.msra.mxu0 %v840
        %892 = vmatprep.subr.bf16.mxu0 0
        %893 = vmatpush1.bf16.msra.mxu0 %v841
        %894 = vmatprep.subr.bf16.mxu0 0
        %895 = vmatpush1.bf16.msra.mxu0 %v842
        %896 = vmatprep.subr.bf16.mxu0 0
        %897 = vmatpush1.bf16.msra.mxu0 %v843
        %898 = vmatprep.subr.bf16.mxu0 0
        %899 = vmatpush1.bf16.msra.mxu0 %v844
        %900 = vmatprep.subr.bf16.mxu0 0
        %901 = vmatpush1.bf16.msra.mxu0 0
        %902 = vmatprep.subr.bf16.mxu0 0
        %903 = vmatpush1.bf16.msra.mxu0 0
        %904 = vmatprep.subr.bf16.mxu0 0
        %905 = vmatpush1.bf16.msra.mxu0 0
        %906 = vmatprep.subr.bf16.mxu0 0
        %907 = vmatpush1.bf16.msra.mxu0 0
        %908 = vmatprep.subr.bf16.mxu0 0
        %909 = vmatpush1.bf16.msra.mxu0 0
        %910 = vmatprep.subr.bf16.mxu0 0
        %911 = vmatpush1.bf16.msra.mxu0 0
        %912 = vmatprep.subr.bf16.mxu0 0
        %913 = vmatpush1.bf16.msra.mxu0 0
        %914 = vmatprep.mubr.bf16.mxu0 %v856
        %915 = vmatmul.mubr.bf16.gmra.mrb[0].mxu0 %v660
        %v916 = vpop.f32.mrb[0].mxu0
        %v917 = vadd.f32 0.0, %v916
        %v918 = vpop.f32.mrb[0].mxu0
        %v919 = vpop.f32.mrb[0].mxu0
        %v920 = vadd.f32 0.0, %v919
        %v921 = vpop.f32.mrb[0].mxu0
        %922 = vmatprep.mubr.bf16.mxu0 %v859
        %923 = vmatmul.mubr.bf16.gmra.mrb[0].mxu0 %v680
        %v924 = vpop.f32.mrb[0].mxu0
        %v925 = vadd.f32 0.0, %v924
        %v926 = vpop.f32.mrb[0].mxu0
        %v927 = vpop.f32.mrb[0].mxu0
        %v928 = vadd.f32 0.0, %v927
        %v929 = vpop.f32.mrb[0].mxu0
        %930 = vmatprep.mubr.bf16.mxu0 %v862
        %931 = vmatmul.mubr.bf16.gmra.mrb[0].mxu0 %v696
        %v932 = vpop.f32.mrb[0].mxu0
        %v933 = vadd.f32 0.0, %v932
        %v934 = vpop.f32.mrb[0].mxu0
        %v935 = vpop.f32.mrb[0].mxu0
        %v936 = vadd.f32 0.0, %v935
        %v937 = vpop.f32.mrb[0].mxu0
        %938 = vmatprep.mubr.bf16.mxu0 %v865
        %939 = vmatmul.mubr.bf16.gmra.mrb[0].mxu0 %v712
        %v940 = vpop.f32.mrb[0].mxu0
        %v941 = vadd.f32 0.0, %v940
        %v942 = vpop.f32.mrb[0].mxu0
        %v943 = vpop.f32.mrb[0].mxu0
        %v944 = vadd.f32 0.0, %v943
        %v945 = vpop.f32.mrb[0].mxu0
        %946 = vmatprep.mubr.bf16.mxu0 %v868
        %947 = vmatmul.mubr.bf16.gmra.mrb[0].mxu0 %v728
        %v948 = vpop.f32.mrb[0].mxu0
        %v949 = vadd.f32 0.0, %v948
        %v950 = vpop.f32.mrb[0].mxu0
        %v951 = vpop.f32.mrb[0].mxu0
        %v952 = vadd.f32 0.0, %v951
        %v953 = vpop.f32.mrb[0].mxu0
        %954 = vmatprep.mubr.bf16.mxu0 %v871
        %955 = vmatmul.mubr.bf16.gmra.mrb[0].mxu0 %v744
        %v956 = vpop.f32.mrb[0].mxu0
        %v957 = vadd.f32 0.0, %v956
        %v958 = vpop.f32.mrb[0].mxu0
        %v959 = vpop.f32.mrb[0].mxu0
        %v960 = vadd.f32 0.0, %v959
        %v961 = vpop.f32.mrb[0].mxu0
        %962 = vmatprep.mubr.bf16.mxu0 %v874
        %963 = vmatmul.mubr.bf16.gmra.mrb[0].mxu0 %v760
        %v964 = vpop.f32.mrb[0].mxu0
        %v965 = vadd.f32 0.0, %v964
        %v966 = vpop.f32.mrb[0].mxu0
        %v967 = vpop.f32.mrb[0].mxu0
        %v968 = vadd.f32 0.0, %v967
        %v969 = vpop.f32.mrb[0].mxu0
        %970 = vmatprep.mubr.bf16.mxu0 %v877
        %971 = vmatmul.mubr.bf16.gmra.mrb[0].mxu0 %v776
        %v972 = vpop.f32.mrb[0].mxu0
        %v973 = vadd.f32 0.0, %v972
        %v974 = vpop.f32.mrb[0].mxu0
        %v975 = vpop.f32.mrb[0].mxu0
        %v976 = vadd.f32 0.0, %v975
        %v977 = vpop.f32.mrb[0].mxu0
        %978 = vmatprep.mubr.bf16.mxu0 %v880
        %979 = vmatmul.mubr.bf16.gmra.mrb[0].mxu0 %v787
        %v980 = vpop.f32.mrb[0].mxu0
        %v981 = vadd.f32 0.0, %v980
        %v982 = vpop.f32.mrb[0].mxu0
        %v983 = vpop.f32.mrb[0].mxu0
        %v984 = vadd.f32 0.0, %v983
        %v985 = vpop.f32.mrb[0].mxu0
        %986 = vdwg.mxu0
        %v1014 = vunpack.c.l.b16 %v539
        %v1015 = vunpack.c.l.b16 %v540
        %v1016 = vunpack.c.l.b16 %v541
        %v1017 = vunpack.c.l.b16 %v542
        %v1018 = vunpack.c.l.b16 %v543
        %v1019 = vunpack.c.l.b16 %v544
        %v1020 = vunpack.c.l.b16 %v545
        %v1021 = vunpack.c.l.b16 %v546
        %v1022 = vunpack.c.l.b16 %v547
        %v1023 = vunpack.c.l.b16 %v548
        %v1024 = vunpack.c.l.b16 %v549
        %v1025 = vunpack.c.l.b16 %v550
        %v1026 = vunpack.c.l.b16 %v551
        %v1027 = vunpack.c.l.b16 %v552
        %v1028 = vunpack.c.l.b16 %v553
        %v1029 = vunpack.c.l.b16 %v554
        %v1030 = vunpack.c.l.b16 %v555
        %v1031 = vunpack.c.l.b16 %v556
        %v1032 = vpack.c.b16 %v1015, %v1014
        %v1033 = vpack.c.b16 %v1017, %v1016
        %v1034 = vpack.c.b16 %v1019, %v1018
        %v1035 = vpack.c.b16 %v1021, %v1020
        %v1036 = vpack.c.b16 %v1023, %v1022
        %v1037 = vpack.c.b16 %v1025, %v1024
        %v1038 = vpack.c.b16 %v1027, %v1026
        %v1039 = vpack.c.b16 %v1029, %v1028
        %v1040 = vpack.c.b16 %v1031, %v1030
        %v1050 = vsel %vm854, %v631, 0
        %v1052 = vsel %vm854, %v633, 0
        %v1054 = vsel %vm854, %v635, 0
        %v1056 = vsel %vm854, %v637, 0
        %v1058 = vsel %vm854, %v639, 0
        %v1060 = vsel %vm854, %v641, 0
        %v1062 = vsel %vm854, %v643, 0
        %v1064 = vsel %vm854, %v645, 0
        %v1066 = vsel %vm854, %v647, 0
        %1068 = vmatprep.subr.bf16.mxu0 0
        %1069 = vmatpush1.bf16.msra.mxu0 %v1032
        %1070 = vmatprep.subr.bf16.mxu0 0
        %1071 = vmatpush1.bf16.msra.mxu0 %v1033
        %1072 = vmatprep.subr.bf16.mxu0 0
        %1073 = vmatpush1.bf16.msra.mxu0 %v1034
        %1074 = vmatprep.subr.bf16.mxu0 0
        %1075 = vmatpush1.bf16.msra.mxu0 %v1035
        %1076 = vmatprep.subr.bf16.mxu0 0
        %1077 = vmatpush1.bf16.msra.mxu0 %v1036
        %1078 = vmatprep.subr.bf16.mxu0 0
        %1079 = vmatpush1.bf16.msra.mxu0 %v1037
        %1080 = vmatprep.subr.bf16.mxu0 0
        %1081 = vmatpush1.bf16.msra.mxu0 %v1038
        %1082 = vmatprep.subr.bf16.mxu0 0
        %1083 = vmatpush1.bf16.msra.mxu0 %v1039
        %1084 = vmatprep.subr.bf16.mxu0 0
        %1085 = vmatpush1.bf16.msra.mxu0 %v1040
        %1086 = vmatprep.subr.bf16.mxu0 0
        %1087 = vmatpush1.bf16.msra.mxu0 0
        %1088 = vmatprep.subr.bf16.mxu0 0
        %1089 = vmatpush1.bf16.msra.mxu0 0
        %1090 = vmatprep.subr.bf16.mxu0 0
        %1091 = vmatpush1.bf16.msra.mxu0 0
        %1092 = vmatprep.subr.bf16.mxu0 0
        %1093 = vmatpush1.bf16.msra.mxu0 0
        %1094 = vmatprep.subr.bf16.mxu0 0
        %1095 = vmatpush1.bf16.msra.mxu0 0
        %1096 = vmatprep.subr.bf16.mxu0 0
        %1097 = vmatpush1.bf16.msra.mxu0 0
        %1098 = vmatprep.subr.bf16.mxu0 0
        %1099 = vmatpush1.bf16.msra.mxu0 0
        %1100 = vmatprep.mubr.bf16.mxu0 %v1050
        %1101 = vmatmul.mubr.bf16.gmra.mrb[0].mxu0 %v630
        %v1102 = vpop.f32.mrb[0].mxu0
        %v1103 = vadd.f32 %v917, %v1102
        %v1104 = vpop.f32.mrb[0].mxu0
        %v1105 = vpop.f32.mrb[0].mxu0
        %v1106 = vadd.f32 %v920, %v1105
        %v1107 = vpop.f32.mrb[0].mxu0
        %1108 = vmatprep.mubr.bf16.mxu0 %v1052
        %1109 = vmatmul.mubr.bf16.gmra.mrb[0].mxu0 %v632
        %v1110 = vpop.f32.mrb[0].mxu0
        %v1111 = vadd.f32 %v925, %v1110
        %v1112 = vpop.f32.mrb[0].mxu0
        %v1113 = vpop.f32.mrb[0].mxu0
        %v1114 = vadd.f32 %v928, %v1113
        %v1115 = vpop.f32.mrb[0].mxu0
        %1116 = vmatprep.mubr.bf16.mxu0 %v1054
        %1117 = vmatmul.mubr.bf16.gmra.mrb[0].mxu0 %v634
        %v1118 = vpop.f32.mrb[0].mxu0
        %v1119 = vadd.f32 %v933, %v1118
        %v1120 = vpop.f32.mrb[0].mxu0
        %v1121 = vpop.f32.mrb[0].mxu0
        %v1122 = vadd.f32 %v936, %v1121
        %v1123 = vpop.f32.mrb[0].mxu0
        %1124 = vmatprep.mubr.bf16.mxu0 %v1056
        %1125 = vmatmul.mubr.bf16.gmra.mrb[0].mxu0 %v636
        %v1126 = vpop.f32.mrb[0].mxu0
        %v1127 = vadd.f32 %v941, %v1126
        %v1128 = vpop.f32.mrb[0].mxu0
        %v1129 = vpop.f32.mrb[0].mxu0
        %v1130 = vadd.f32 %v944, %v1129
        %v1131 = vpop.f32.mrb[0].mxu0
        %1132 = vmatprep.mubr.bf16.mxu0 %v1058
        %1133 = vmatmul.mubr.bf16.gmra.mrb[0].mxu0 %v638
        %v1134 = vpop.f32.mrb[0].mxu0
        %v1135 = vadd.f32 %v949, %v1134
        %v1136 = vpop.f32.mrb[0].mxu0
        %v1137 = vpop.f32.mrb[0].mxu0
        %v1138 = vadd.f32 %v952, %v1137
        %v1139 = vpop.f32.mrb[0].mxu0
        %1140 = vmatprep.mubr.bf16.mxu0 %v1060
        %1141 = vmatmul.mubr.bf16.gmra.mrb[0].mxu0 %v640
        %v1142 = vpop.f32.mrb[0].mxu0
        %v1143 = vadd.f32 %v957, %v1142
        %v1144 = vpop.f32.mrb[0].mxu0
        %v1145 = vpop.f32.mrb[0].mxu0
        %v1146 = vadd.f32 %v960, %v1145
        %v1147 = vpop.f32.mrb[0].mxu0
        %1148 = vmatprep.mubr.bf16.mxu0 %v1062
        %1149 = vmatmul.mubr.bf16.gmra.mrb[0].mxu0 %v642
        %v1150 = vpop.f32.mrb[0].mxu0
        %v1151 = vadd.f32 %v965, %v1150
        %v1152 = vpop.f32.mrb[0].mxu0
        %v1153 = vpop.f32.mrb[0].mxu0
        %v1154 = vadd.f32 %v968, %v1153
        %v1155 = vpop.f32.mrb[0].mxu0
        %1156 = vmatprep.mubr.bf16.mxu0 %v1064
        %1157 = vmatmul.mubr.bf16.gmra.mrb[0].mxu0 %v644
        %v1158 = vpop.f32.mrb[0].mxu0
        %v1159 = vadd.f32 %v973, %v1158
        %v1160 = vpop.f32.mrb[0].mxu0
        %v1161 = vpop.f32.mrb[0].mxu0
        %v1162 = vadd.f32 %v976, %v1161
        %v1163 = vpop.f32.mrb[0].mxu0
        %1164 = vmatprep.mubr.bf16.mxu0 %v1066
        %1165 = vmatmul.mubr.bf16.gmra.mrb[0].mxu0 %v646
        %v1166 = vpop.f32.mrb[0].mxu0
        %v1167 = vadd.f32 %v981, %v1166
        %v1168 = vpop.f32.mrb[0].mxu0
        %v1169 = vpop.f32.mrb[0].mxu0
        %v1170 = vadd.f32 %v984, %v1169
        %v1171 = vpop.f32.mrb[0].mxu0
        %1172 = vdwg.mxu0
        %s1173 = scalar_lea.vmem %s1, 144
        %v1174 = vld [vmem:[%s1173] sm:$0xf]
        %v1175 = vld [vmem:[%s1173 + $0x4] sm:$0xf]
        %v1176 = vld [vmem:[%s1173 + $0x8] sm:$0xf]
        %v1177 = vld [vmem:[%s1173 + $0xc] sm:$0xf]
        %v1178 = vld [vmem:[%s1173 + $0x10] sm:$0xf]
        %v1179 = vld [vmem:[%s1173 + $0x14] sm:$0xf]
        %v1180 = vld [vmem:[%s1173 + $0x18] sm:$0xf]
        %v1181 = vld [vmem:[%s1173 + $0x1c] sm:$0xf]
        %v1182 = vld [vmem:[%s1173 + $0x20] sm:$0xf]
        %v1183 = vld [vmem:[%s1173 + $0x24] sm:$0xf]
        %v1184 = vld [vmem:[%s1173 + $0x28] sm:$0xf]
        %v1185 = vld [vmem:[%s1173 + $0x2c] sm:$0xf]
        %v1186 = vld [vmem:[%s1173 + $0x30] sm:$0xf]
        %v1187 = vld [vmem:[%s1173 + $0x34] sm:$0xf]
        %v1188 = vld [vmem:[%s1173 + $0x38] sm:$0xf]
        %v1189 = vld [vmem:[%s1173 + $0x3c] sm:$0xf]
        %v1190 = vld [vmem:[%s1173 + $0x40] sm:$0xf]
        %v1191 = vld [vmem:[%s1173 + $0x44] sm:$0xf]
        %vm1192 = vcmask 1046528
        %v1193 = vrot.slane %v630, 1
        %v1194 = vrot.slane %v632, 1
        %v1195 = vsel %vm1192, %v1193, %v1194
        %v1196 = vrot.slane %v631, 1
        %v1197 = vrot.slane %v633, 1
        %v1198 = vsel %vm1192, %v1196, %v1197
        %v1199 = vrot.slane %v634, 1
        %v1200 = vsel %vm1192, %v1194, %v1199
        %v1201 = vrot.slane %v635, 1
        %v1202 = vsel %vm1192, %v1197, %v1201
        %v1203 = vrot.slane %v636, 1
        %v1204 = vsel %vm1192, %v1199, %v1203
        %v1205 = vrot.slane %v637, 1
        %v1206 = vsel %vm1192, %v1201, %v1205
        %v1207 = vrot.slane %v638, 1
        %v1208 = vsel %vm1192, %v1203, %v1207
        %v1209 = vrot.slane %v639, 1
        %v1210 = vsel %vm1192, %v1205, %v1209
        %v1211 = vrot.slane %v640, 1
        %v1212 = vsel %vm1192, %v1207, %v1211
        %v1213 = vrot.slane %v641, 1
        %v1214 = vsel %vm1192, %v1209, %v1213
        %v1215 = vrot.slane %v642, 1
        %v1216 = vsel %vm1192, %v1211, %v1215
        %v1217 = vrot.slane %v643, 1
        %v1218 = vsel %vm1192, %v1213, %v1217
        %v1219 = vrot.slane %v644, 1
        %v1220 = vsel %vm1192, %v1215, %v1219
        %v1221 = vrot.slane %v645, 1
        %v1222 = vsel %vm1192, %v1217, %v1221
        %v1223 = vrot.slane %v646, 1
        %v1224 = vsel %vm1192, %v1219, %v1223
        %v1225 = vrot.slane %v647, 1
        %v1226 = vsel %vm1192, %v1221, %v1225
        %v1254 = vunpack.c.l.b16 %v1174
        %v1255 = vunpack.c.l.b16 %v1175
        %v1256 = vunpack.c.l.b16 %v1176
        %v1257 = vunpack.c.l.b16 %v1177
        %v1258 = vunpack.c.l.b16 %v1178
        %v1259 = vunpack.c.l.b16 %v1179
        %v1260 = vunpack.c.l.b16 %v1180
        %v1261 = vunpack.c.l.b16 %v1181
        %v1262 = vunpack.c.l.b16 %v1182
        %v1263 = vunpack.c.l.b16 %v1183
        %v1264 = vunpack.c.l.b16 %v1184
        %v1265 = vunpack.c.l.b16 %v1185
        %v1266 = vunpack.c.l.b16 %v1186
        %v1267 = vunpack.c.l.b16 %v1187
        %v1268 = vunpack.c.l.b16 %v1188
        %v1269 = vunpack.c.l.b16 %v1189
        %v1270 = vunpack.c.l.b16 %v1190
        %v1271 = vunpack.c.l.b16 %v1191
        %v1272 = vpack.c.b16 %v1255, %v1254
        %v1273 = vpack.c.b16 %v1257, %v1256
        %v1274 = vpack.c.b16 %v1259, %v1258
        %v1275 = vpack.c.b16 %v1261, %v1260
        %v1276 = vpack.c.b16 %v1263, %v1262
        %v1277 = vpack.c.b16 %v1265, %v1264
        %v1278 = vpack.c.b16 %v1267, %v1266
        %v1279 = vpack.c.b16 %v1269, %v1268
        %v1280 = vpack.c.b16 %v1271, %v1270
        %v1291 = vsel %vm854, %v1198, 0
        %v1294 = vsel %vm854, %v1202, 0
        %v1297 = vsel %vm854, %v1206, 0
        %v1300 = vsel %vm854, %v1210, 0
        %v1303 = vsel %vm854, %v1214, 0
        %v1306 = vsel %vm854, %v1218, 0
        %v1309 = vsel %vm854, %v1222, 0
        %v1312 = vsel %vm854, %v1226, 0
        %v1315 = vsel %vm854, %v1225, 0
        %1317 = vmatprep.subr.bf16.mxu0 0
        %1318 = vmatpush1.bf16.msra.mxu0 %v1272
        %1319 = vmatprep.subr.bf16.mxu0 0
        %1320 = vmatpush1.bf16.msra.mxu0 %v1273
        %1321 = vmatprep.subr.bf16.mxu0 0
        %1322 = vmatpush1.bf16.msra.mxu0 %v1274
        %1323 = vmatprep.subr.bf16.mxu0 0
        %1324 = vmatpush1.bf16.msra.mxu0 %v1275
        %1325 = vmatprep.subr.bf16.mxu0 0
        %1326 = vmatpush1.bf16.msra.mxu0 %v1276
        %1327 = vmatprep.subr.bf16.mxu0 0
        %1328 = vmatpush1.bf16.msra.mxu0 %v1277
        %1329 = vmatprep.subr.bf16.mxu0 0
        %1330 = vmatpush1.bf16.msra.mxu0 %v1278
        %1331 = vmatprep.subr.bf16.mxu0 0
        %1332 = vmatpush1.bf16.msra.mxu0 %v1279
        %1333 = vmatprep.subr.bf16.mxu0 0
        %1334 = vmatpush1.bf16.msra.mxu0 %v1280
        %1335 = vmatprep.subr.bf16.mxu0 0
        %1336 = vmatpush1.bf16.msra.mxu0 0
        %1337 = vmatprep.subr.bf16.mxu0 0
        %1338 = vmatpush1.bf16.msra.mxu0 0
        %1339 = vmatprep.subr.bf16.mxu0 0
        %1340 = vmatpush1.bf16.msra.mxu0 0
        %1341 = vmatprep.subr.bf16.mxu0 0
        %1342 = vmatpush1.bf16.msra.mxu0 0
        %1343 = vmatprep.subr.bf16.mxu0 0
        %1344 = vmatpush1.bf16.msra.mxu0 0
        %1345 = vmatprep.subr.bf16.mxu0 0
        %1346 = vmatpush1.bf16.msra.mxu0 0
        %1347 = vmatprep.subr.bf16.mxu0 0
        %1348 = vmatpush1.bf16.msra.mxu0 0
        %1349 = vmatprep.mubr.bf16.mxu0 %v1291
        %1350 = vmatmul.mubr.bf16.gmra.mrb[0].mxu0 %v1195
        %v1351 = vpop.f32.mrb[0].mxu0
        %v1352 = vadd.f32 0.0, %v1351
        %v1353 = vpop.f32.mrb[0].mxu0
        %v1354 = vpop.f32.mrb[0].mxu0
        %v1355 = vadd.f32 0.0, %v1354
        %v1356 = vpop.f32.mrb[0].mxu0
        %1357 = vmatprep.mubr.bf16.mxu0 %v1294
        %1358 = vmatmul.mubr.bf16.gmra.mrb[0].mxu0 %v1200
        %v1359 = vpop.f32.mrb[0].mxu0
        %v1360 = vadd.f32 0.0, %v1359
        %v1361 = vpop.f32.mrb[0].mxu0
        %v1362 = vpop.f32.mrb[0].mxu0
        %v1363 = vadd.f32 0.0, %v1362
        %v1364 = vpop.f32.mrb[0].mxu0
        %1365 = vmatprep.mubr.bf16.mxu0 %v1297
        %1366 = vmatmul.mubr.bf16.gmra.mrb[0].mxu0 %v1204
        %v1367 = vpop.f32.mrb[0].mxu0
        %v1368 = vadd.f32 0.0, %v1367
        %v1369 = vpop.f32.mrb[0].mxu0
        %v1370 = vpop.f32.mrb[0].mxu0
        %v1371 = vadd.f32 0.0, %v1370
        %v1372 = vpop.f32.mrb[0].mxu0
        %1373 = vmatprep.mubr.bf16.mxu0 %v1300
        %1374 = vmatmul.mubr.bf16.gmra.mrb[0].mxu0 %v1208
        %v1375 = vpop.f32.mrb[0].mxu0
        %v1376 = vadd.f32 0.0, %v1375
        %v1377 = vpop.f32.mrb[0].mxu0
        %v1378 = vpop.f32.mrb[0].mxu0
        %v1379 = vadd.f32 0.0, %v1378
        %v1380 = vpop.f32.mrb[0].mxu0
        %1381 = vmatprep.mubr.bf16.mxu0 %v1303
        %1382 = vmatmul.mubr.bf16.gmra.mrb[0].mxu0 %v1212
        %v1383 = vpop.f32.mrb[0].mxu0
        %v1384 = vadd.f32 0.0, %v1383
        %v1385 = vpop.f32.mrb[0].mxu0
        %v1386 = vpop.f32.mrb[0].mxu0
        %v1387 = vadd.f32 0.0, %v1386
        %v1388 = vpop.f32.mrb[0].mxu0
        %1389 = vmatprep.mubr.bf16.mxu0 %v1306
        %1390 = vmatmul.mubr.bf16.gmra.mrb[0].mxu0 %v1216
        %v1391 = vpop.f32.mrb[0].mxu0
        %v1392 = vadd.f32 0.0, %v1391
        %v1393 = vpop.f32.mrb[0].mxu0
        %v1394 = vpop.f32.mrb[0].mxu0
        %v1395 = vadd.f32 0.0, %v1394
        %v1396 = vpop.f32.mrb[0].mxu0
        %1397 = vmatprep.mubr.bf16.mxu0 %v1309
        %1398 = vmatmul.mubr.bf16.gmra.mrb[0].mxu0 %v1220
        %v1399 = vpop.f32.mrb[0].mxu0
        %v1400 = vadd.f32 0.0, %v1399
        %v1401 = vpop.f32.mrb[0].mxu0
        %v1402 = vpop.f32.mrb[0].mxu0
        %v1403 = vadd.f32 0.0, %v1402
        %v1404 = vpop.f32.mrb[0].mxu0
        %1405 = vmatprep.mubr.bf16.mxu0 %v1312
        %1406 = vmatmul.mubr.bf16.gmra.mrb[0].mxu0 %v1224
        %v1407 = vpop.f32.mrb[0].mxu0
        %v1408 = vadd.f32 0.0, %v1407
        %v1409 = vpop.f32.mrb[0].mxu0
        %v1410 = vpop.f32.mrb[0].mxu0
        %v1411 = vadd.f32 0.0, %v1410
        %v1412 = vpop.f32.mrb[0].mxu0
        %1413 = vmatprep.mubr.bf16.mxu0 %v1315
        %1414 = vmatmul.mubr.bf16.gmra.mrb[0].mxu0 %v1223
        %v1415 = vpop.f32.mrb[0].mxu0
        %v1416 = vadd.f32 0.0, %v1415
        %v1417 = vpop.f32.mrb[0].mxu0
        %v1418 = vpop.f32.mrb[0].mxu0
        %v1419 = vadd.f32 0.0, %v1418
        %v1420 = vpop.f32.mrb[0].mxu0
        %1421 = vdwg.mxu0
        %v1422 = vadd.f32 %v1103, %v1352
        %v1423 = vadd.f32 %v1106, %v1355
        %v1424 = vadd.f32 %v1111, %v1360
        %v1425 = vadd.f32 %v1114, %v1363
        %v1426 = vadd.f32 %v1119, %v1368
        %v1427 = vadd.f32 %v1122, %v1371
        %v1428 = vadd.f32 %v1127, %v1376
        %v1429 = vadd.f32 %v1130, %v1379
        %v1430 = vadd.f32 %v1135, %v1384
        %v1431 = vadd.f32 %v1138, %v1387
        %v1432 = vadd.f32 %v1143, %v1392
        %v1433 = vadd.f32 %v1146, %v1395
        %v1434 = vadd.f32 %v1151, %v1400
        %v1435 = vadd.f32 %v1154, %v1403
        %v1436 = vadd.f32 %v1159, %v1408
        %v1437 = vadd.f32 %v1162, %v1411
        %v1438 = vadd.f32 %v1167, %v1416
        %v1439 = vadd.f32 %v1170, %v1419
        %v1440 = vld [vmem:[%s2] sm:$0x1]
        %v1442 = vlaneseq
        %v1443 = vshrl.u32 %v1442, 7
        %v1444 = vsub.s32 0, %v1443
        %v1445 = vrot.slane %v1440, %v1444
        %v1447 = vadd.f32 %v1422, %v1445
        %v1448 = vadd.f32 %v1423, %v1445
        %v1449 = vadd.f32 %v1424, %v1445
        %v1450 = vadd.f32 %v1425, %v1445
        %v1451 = vadd.f32 %v1426, %v1445
        %v1452 = vadd.f32 %v1427, %v1445
        %v1453 = vadd.f32 %v1428, %v1445
        %v1454 = vadd.f32 %v1429, %v1445
        %v1455 = vadd.f32 %v1430, %v1445
        %v1456 = vadd.f32 %v1431, %v1445
        %v1457 = vadd.f32 %v1432, %v1445
        %v1458 = vadd.f32 %v1433, %v1445
        %v1459 = vadd.f32 %v1434, %v1445
        %v1460 = vadd.f32 %v1435, %v1445
        %v1461 = vadd.f32 %v1436, %v1445
        %v1462 = vadd.f32 %v1437, %v1445
        %v1463 = vadd.f32 %v1438, %v1445
        %v1464 = vadd.f32 %v1439, %v1445
        %v1465 = vmax.f32 %v1447, 0.0
        %v1466 = vmax.f32 %v1448, 0.0
        %v1467 = vmax.f32 %v1449, 0.0
        %v1468 = vmax.f32 %v1450, 0.0
        %v1469 = vmax.f32 %v1451, 0.0
        %v1470 = vmax.f32 %v1452, 0.0
        %v1471 = vmax.f32 %v1453, 0.0
        %v1472 = vmax.f32 %v1454, 0.0
        %v1473 = vmax.f32 %v1455, 0.0
        %v1474 = vmax.f32 %v1456, 0.0
        %v1475 = vmax.f32 %v1457, 0.0
        %v1476 = vmax.f32 %v1458, 0.0
        %v1477 = vmax.f32 %v1459, 0.0
        %v1478 = vmax.f32 %v1460, 0.0
        %v1479 = vmax.f32 %v1461, 0.0
        %v1480 = vmax.f32 %v1462, 0.0
        %v1481 = vmax.f32 %v1463, 0.0
        %v1482 = vmax.f32 %v1464, 0.0
        %vm1501 = vcmask 1046528
        %v1502 = vrot.slane %v1465, 1
        %v1503 = vrot.slane %v1466, 1
        %v1504 = vsel %vm1501, %v1502, %v1503
        %v1505 = vrot.slane %v1467, 1
        %v1506 = vsel %vm1501, %v1503, %v1505
        %v1507 = vrot.slane %v1468, 1
        %v1508 = vsel %vm1501, %v1505, %v1507
        %v1509 = vrot.slane %v1469, 1
        %v1510 = vsel %vm1501, %v1507, %v1509
        %v1511 = vrot.slane %v1470, 1
        %v1512 = vsel %vm1501, %v1509, %v1511
        %v1513 = vrot.slane %v1471, 1
        %v1514 = vsel %vm1501, %v1511, %v1513
        %v1515 = vrot.slane %v1472, 1
        %v1516 = vsel %vm1501, %v1513, %v1515
        %v1517 = vrot.slane %v1473, 1
        %v1518 = vsel %vm1501, %v1515, %v1517
        %v1519 = vrot.slane %v1474, 1
        %v1520 = vsel %vm1501, %v1517, %v1519
        %v1521 = vrot.slane %v1475, 1
        %v1522 = vsel %vm1501, %v1519, %v1521
        %v1523 = vrot.slane %v1476, 1
        %v1524 = vsel %vm1501, %v1521, %v1523
        %v1525 = vrot.slane %v1477, 1
        %v1526 = vsel %vm1501, %v1523, %v1525
        %v1527 = vrot.slane %v1478, 1
        %v1528 = vsel %vm1501, %v1525, %v1527
        %v1529 = vrot.slane %v1479, 1
        %v1530 = vsel %vm1501, %v1527, %v1529
        %v1531 = vrot.slane %v1480, 1
        %v1532 = vsel %vm1501, %v1529, %v1531
        %v1533 = vrot.slane %v1481, 1
        %v1534 = vsel %vm1501, %v1531, %v1533
        %v1535 = vrot.slane %v1482, 1
        %v1536 = vsel %vm1501, %v1533, %v1535
        %v1555 = vmax.f32 %v1465, %v1504
        %v1556 = vmax.f32 %v1466, %v1506
        %v1557 = vmax.f32 %v1467, %v1508
        %v1558 = vmax.f32 %v1468, %v1510
        %v1559 = vmax.f32 %v1469, %v1512
        %v1560 = vmax.f32 %v1470, %v1514
        %v1561 = vmax.f32 %v1471, %v1516
        %v1562 = vmax.f32 %v1472, %v1518
        %v1563 = vmax.f32 %v1473, %v1520
        %v1564 = vmax.f32 %v1474, %v1522
        %v1565 = vmax.f32 %v1475, %v1524
        %v1566 = vmax.f32 %v1476, %v1526
        %v1567 = vmax.f32 %v1477, %v1528
        %v1568 = vmax.f32 %v1478, %v1530
        %v1569 = vmax.f32 %v1479, %v1532
        %v1570 = vmax.f32 %v1480, %v1534
        %v1571 = vmax.f32 %v1481, %v1536
        %v1572 = vmax.f32 %v1482, %v1535
        %1591 = vrot.lane.b32.xlu0 %v1555, 120
        %v1592 = vpop.permute.xlu0 %1591
        %1593 = vrot.lane.b32.xlu0 %v1556, 120
        %v1594 = vpop.permute.xlu0 %1593
        %1595 = vrot.lane.b32.xlu0 %v1557, 120
        %v1596 = vpop.permute.xlu0 %1595
        %1597 = vrot.lane.b32.xlu0 %v1558, 120
        %v1598 = vpop.permute.xlu0 %1597
        %1599 = vrot.lane.b32.xlu0 %v1559, 120
        %v1600 = vpop.permute.xlu0 %1599
        %1601 = vrot.lane.b32.xlu0 %v1560, 120
        %v1602 = vpop.permute.xlu0 %1601
        %1603 = vrot.lane.b32.xlu0 %v1561, 120
        %v1604 = vpop.permute.xlu0 %1603
        %1605 = vrot.lane.b32.xlu0 %v1562, 120
        %v1606 = vpop.permute.xlu0 %1605
        %1607 = vrot.lane.b32.xlu0 %v1563, 120
        %v1608 = vpop.permute.xlu0 %1607
        %1609 = vrot.lane.b32.xlu0 %v1564, 120
        %v1610 = vpop.permute.xlu0 %1609
        %1611 = vrot.lane.b32.xlu0 %v1565, 120
        %v1612 = vpop.permute.xlu0 %1611
        %1613 = vrot.lane.b32.xlu0 %v1566, 120
        %v1614 = vpop.permute.xlu0 %1613
        %1615 = vrot.lane.b32.xlu0 %v1567, 120
        %v1616 = vpop.permute.xlu0 %1615
        %1617 = vrot.lane.b32.xlu0 %v1568, 120
        %v1618 = vpop.permute.xlu0 %1617
        %1619 = vrot.lane.b32.xlu0 %v1569, 120
        %v1620 = vpop.permute.xlu0 %1619
        %1621 = vrot.lane.b32.xlu0 %v1570, 120
        %v1622 = vpop.permute.xlu0 %1621
        %1623 = vrot.lane.b32.xlu0 %v1571, 120
        %v1624 = vpop.permute.xlu0 %1623
        %1625 = vrot.lane.b32.xlu0 %v1572, 120
        %v1626 = vpop.permute.xlu0 %1625
        %v1645 = vmax.f32 %v1555, %v1592
        %v1646 = vmax.f32 %v1556, %v1594
        %v1647 = vmax.f32 %v1557, %v1596
        %v1648 = vmax.f32 %v1558, %v1598
        %v1649 = vmax.f32 %v1559, %v1600
        %v1650 = vmax.f32 %v1560, %v1602
        %v1651 = vmax.f32 %v1561, %v1604
        %v1652 = vmax.f32 %v1562, %v1606
        %v1653 = vmax.f32 %v1563, %v1608
        %v1654 = vmax.f32 %v1564, %v1610
        %v1655 = vmax.f32 %v1565, %v1612
        %v1656 = vmax.f32 %v1566, %v1614
        %v1657 = vmax.f32 %v1567, %v1616
        %v1658 = vmax.f32 %v1568, %v1618
        %v1659 = vmax.f32 %v1569, %v1620
        %v1660 = vmax.f32 %v1570, %v1622
        %v1661 = vmax.f32 %v1571, %v1624
        %v1662 = vmax.f32 %v1572, %v1626
        %v1663 = vpack.c.bf16 %v1646, %v1645
        %v1664 = vpack.c.bf16 %v1648, %v1647
        %v1665 = vpack.c.bf16 %v1650, %v1649
        %v1666 = vpack.c.bf16 %v1652, %v1651
        %v1667 = vpack.c.bf16 %v1654, %v1653
        %v1668 = vpack.c.bf16 %v1656, %v1655
        %v1669 = vpack.c.bf16 %v1658, %v1657
        %v1670 = vpack.c.bf16 %v1660, %v1659
        %v1671 = vpack.c.bf16 %v1662, %v1661
        %v1672 = vld [vmem:[%s3] sm:$0xff]
        %v1673 = vld [vmem:[%s3 + $0x8] sm:$0xff]
        %v1674 = vld [vmem:[%s3 + $0x10] sm:$0xff]
        %v1675 = vld [vmem:[%s3 + $0x18] sm:$0xff]
        %v1676 = vld [vmem:[%s3 + $0x20] sm:$0xff]
        %v1677 = vld [vmem:[%s3 + $0x28] sm:$0xff]
        %v1678 = vld [vmem:[%s3 + $0x30] sm:$0xff]
        %v1679 = vld [vmem:[%s3 + $0x38] sm:$0xff]
        %v1680 = vld [vmem:[%s3 + $0x40] sm:$0xff]
        %v1681 = vld [vmem:[%s3 + $0x48] sm:$0xff]
        %v1692 = vunpack.c.l.b16 %v1672
        %v1693 = vunpack.c.h.b16 %v1672
        %v1694 = vunpack.c.l.b16 %v1673
        %v1695 = vunpack.c.h.b16 %v1673
        %v1696 = vunpack.c.l.b16 %v1674
        %v1697 = vunpack.c.h.b16 %v1674
        %v1698 = vunpack.c.l.b16 %v1675
        %v1699 = vunpack.c.h.b16 %v1675
        %v1700 = vunpack.c.l.b16 %v1676
        %v1701 = vunpack.c.h.b16 %v1676
        %v1702 = vunpack.c.l.b16 %v1677
        %v1703 = vunpack.c.h.b16 %v1677
        %v1704 = vunpack.c.l.b16 %v1678
        %v1705 = vunpack.c.h.b16 %v1678
        %v1706 = vunpack.c.l.b16 %v1679
        %v1707 = vunpack.c.h.b16 %v1679
        %v1708 = vunpack.c.l.b16 %v1680
        %v1709 = vunpack.c.h.b16 %v1680
        %v1710 = vunpack.c.l.b16 %v1681
        %v1711 = vunpack.c.h.b16 %v1681
        %v1712 = vpack.c.b16 %v1694, %v1692
        %v1713 = vpack.c.b16 %v1695, %v1693
        %v1714 = vpack.c.b16 %v1698, %v1696
        %v1715 = vpack.c.b16 %v1699, %v1697
        %v1716 = vpack.c.b16 %v1702, %v1700
        %v1717 = vpack.c.b16 %v1703, %v1701
        %v1718 = vpack.c.b16 %v1706, %v1704
        %v1719 = vpack.c.b16 %v1707, %v1705
        %v1720 = vpack.c.b16 %v1710, %v1708
        %v1721 = vpack.c.b16 %v1711, %v1709
        %vm1727 = vcmask 105472
        %v1729 = vsel %vm1727, %v1713, 0
        %v1732 = vsel %vm1727, %v1715, 0
        %v1735 = vsel %vm1727, %v1717, 0
        %v1738 = vsel %vm1727, %v1719, 0
        %v1741 = vsel %vm1727, %v1721, 0
        %vm1743 = vcmask 1045504
        %v1744 = vsel %vm1743, 4294967295, 65535
        %v1745 = vsel %vm1501, %v1744, 0
        %v1747 = vand.u32 %v1671, %v1745
        %1749 = vmatprep.subr.bf16.mxu0 0
        %1750 = vmatpush1.bf16.msra.mxu0 %v1663
        %1751 = vmatprep.subr.bf16.mxu0 0
        %1752 = vmatpush1.bf16.msra.mxu0 %v1664
        %1753 = vmatprep.subr.bf16.mxu0 0
        %1754 = vmatpush1.bf16.msra.mxu0 %v1665
        %1755 = vmatprep.subr.bf16.mxu0 0
        %1756 = vmatpush1.bf16.msra.mxu0 %v1666
        %1757 = vmatprep.subr.bf16.mxu0 0
        %1758 = vmatpush1.bf16.msra.mxu0 %v1667
        %1759 = vmatprep.subr.bf16.mxu0 0
        %1760 = vmatpush1.bf16.msra.mxu0 %v1668
        %1761 = vmatprep.subr.bf16.mxu0 0
        %1762 = vmatpush1.bf16.msra.mxu0 %v1669
        %1763 = vmatprep.subr.bf16.mxu0 0
        %1764 = vmatpush1.bf16.msra.mxu0 %v1670
        %1765 = vmatprep.subr.bf16.mxu0 0
        %1766 = vmatpush1.bf16.msra.mxu0 %v1747
        %1767 = vmatprep.subr.bf16.mxu0 0
        %1768 = vmatpush1.bf16.msra.mxu0 0
        %1769 = vmatprep.subr.bf16.mxu0 0
        %1770 = vmatpush1.bf16.msra.mxu0 0
        %1771 = vmatprep.subr.bf16.mxu0 0
        %1772 = vmatpush1.bf16.msra.mxu0 0
        %1773 = vmatprep.subr.bf16.mxu0 0
        %1774 = vmatpush1.bf16.msra.mxu0 0
        %1775 = vmatprep.subr.bf16.mxu0 0
        %1776 = vmatpush1.bf16.msra.mxu0 0
        %1777 = vmatprep.subr.bf16.mxu0 0
        %1778 = vmatpush1.bf16.msra.mxu0 0
        %1779 = vmatprep.subr.bf16.mxu0 0
        %1780 = vmatpush1.bf16.msra.mxu0 0
        %1781 = vmatprep.mubr.bf16.mxu0 %v1729
        %1782 = vmatmul.mubr.bf16.gmra.mrb[0].mxu0 %v1712
        %v1783 = vpop.f32.mrb[0].mxu0
        %v1784 = vadd.f32 0.0, %v1783
        %v1785 = vpop.f32.mrb[0].mxu0
        %v1786 = vpop.f32.mrb[0].mxu0
        %v1787 = vadd.f32 0.0, %v1786
        %v1788 = vpop.f32.mrb[0].mxu0
        %1789 = vmatprep.mubr.bf16.mxu0 %v1732
        %1790 = vmatmul.mubr.bf16.gmra.mrb[0].mxu0 %v1714
        %v1791 = vpop.f32.mrb[0].mxu0
        %v1792 = vadd.f32 0.0, %v1791
        %v1793 = vpop.f32.mrb[0].mxu0
        %v1794 = vpop.f32.mrb[0].mxu0
        %v1795 = vadd.f32 0.0, %v1794
        %v1796 = vpop.f32.mrb[0].mxu0
        %1797 = vmatprep.mubr.bf16.mxu0 %v1735
        %1798 = vmatmul.mubr.bf16.gmra.mrb[0].mxu0 %v1716
        %v1799 = vpop.f32.mrb[0].mxu0
        %v1800 = vadd.f32 0.0, %v1799
        %v1801 = vpop.f32.mrb[0].mxu0
        %v1802 = vpop.f32.mrb[0].mxu0
        %v1803 = vadd.f32 0.0, %v1802
        %v1804 = vpop.f32.mrb[0].mxu0
        %1805 = vmatprep.mubr.bf16.mxu0 %v1738
        %1806 = vmatmul.mubr.bf16.gmra.mrb[0].mxu0 %v1718
        %v1807 = vpop.f32.mrb[0].mxu0
        %v1808 = vadd.f32 0.0, %v1807
        %v1809 = vpop.f32.mrb[0].mxu0
        %v1810 = vpop.f32.mrb[0].mxu0
        %v1811 = vadd.f32 0.0, %v1810
        %v1812 = vpop.f32.mrb[0].mxu0
        %1813 = vmatprep.mubr.bf16.mxu0 %v1741
        %1814 = vmatmul.mubr.bf16.gmra.mrb[0].mxu0 %v1720
        %v1815 = vpop.f32.mrb[0].mxu0
        %v1816 = vadd.f32 0.0, %v1815
        %v1817 = vpop.f32.mrb[0].mxu0
        %v1818 = vpop.f32.mrb[0].mxu0
        %v1819 = vadd.f32 0.0, %v1818
        %v1820 = vpop.f32.mrb[0].mxu0
        %1821 = vdwg.mxu0
        %v1822 = vpack.c.bf16 %v1787, %v1784
        %v1823 = vpack.c.bf16 %v1795, %v1792
        %v1824 = vpack.c.bf16 %v1803, %v1800
        %v1825 = vpack.c.bf16 %v1811, %v1808
        %v1826 = vpack.c.bf16 %v1819, %v1816
        %v1827 = vld [vmem:[%s4] sm:$0xf]
        %v1828 = vld [vmem:[%s4 + $0x4] sm:$0xf]
        %v1829 = vld [vmem:[%s4 + $0x8] sm:$0xf]
        %v1830 = vld [vmem:[%s4 + $0xc] sm:$0xf]
        %v1831 = vld [vmem:[%s4 + $0x10] sm:$0xf]
        %v1832 = vld [vmem:[%s4 + $0x14] sm:$0xf]
        %v1833 = vld [vmem:[%s4 + $0x18] sm:$0xf]
        %v1834 = vld [vmem:[%s4 + $0x1c] sm:$0xf]
        %v1835 = vld [vmem:[%s4 + $0x20] sm:$0xf]
        %v1836 = vld [vmem:[%s4 + $0x24] sm:$0xf]
        %v1837 = vld [vmem:[%s4 + $0x28] sm:$0xf]
        %v1838 = vld [vmem:[%s4 + $0x2c] sm:$0xf]
        %v1839 = vld [vmem:[%s4 + $0x30] sm:$0xf]
        %v1840 = vld [vmem:[%s4 + $0x34] sm:$0xf]
        %v1841 = vld [vmem:[%s4 + $0x38] sm:$0xf]
        %v1857 = vunpack.c.l.b16 %v1827
        %v1858 = vunpack.c.l.b16 %v1828
        %v1859 = vunpack.c.l.b16 %v1829
        %v1860 = vunpack.c.l.b16 %v1830
        %v1861 = vunpack.c.l.b16 %v1831
        %v1862 = vunpack.c.l.b16 %v1832
        %v1863 = vunpack.c.l.b16 %v1833
        %v1864 = vunpack.c.l.b16 %v1834
        %v1865 = vunpack.c.l.b16 %v1835
        %v1866 = vunpack.c.l.b16 %v1836
        %v1867 = vunpack.c.l.b16 %v1837
        %v1868 = vunpack.c.l.b16 %v1838
        %v1869 = vunpack.c.l.b16 %v1839
        %v1870 = vunpack.c.l.b16 %v1840
        %v1871 = vunpack.c.l.b16 %v1841
        %v1872 = vpack.c.b16 %v1858, %v1857
        %v1873 = vpack.c.b16 %v1860, %v1859
        %v1874 = vpack.c.b16 %v1862, %v1861
        %v1875 = vpack.c.b16 %v1864, %v1863
        %v1876 = vpack.c.b16 %v1866, %v1865
        %v1877 = vpack.c.b16 %v1868, %v1867
        %v1878 = vpack.c.b16 %v1870, %v1869
        %v1879 = vpack.c.b16 %v1871, %v1871
        %vm1887 = vcmask 982016
        %v1889 = vsel %vm1887, %v1822, 0
        %v1892 = vsel %vm1887, %v1823, 0
        %v1895 = vsel %vm1887, %v1824, 0
        %v1898 = vsel %vm1887, %v1825, 0
        %v1901 = vsel %vm1887, %v1826, 0
        %vm1903 = vcmask 1043456
        %v1905 = vsel %vm1903, %v1879, 0
        %1907 = vmatprep.subr.bf16.mxu0 0
        %1908 = vmatpush1.bf16.msra.mxu0 %v1872
        %1909 = vmatprep.subr.bf16.mxu0 0
        %1910 = vmatpush1.bf16.msra.mxu0 %v1873
        %1911 = vmatprep.subr.bf16.mxu0 0
        %1912 = vmatpush1.bf16.msra.mxu0 %v1874
        %1913 = vmatprep.subr.bf16.mxu0 0
        %1914 = vmatpush1.bf16.msra.mxu0 %v1875
        %1915 = vmatprep.subr.bf16.mxu0 0
        %1916 = vmatpush1.bf16.msra.mxu0 %v1876
        %1917 = vmatprep.subr.bf16.mxu0 0
        %1918 = vmatpush1.bf16.msra.mxu0 %v1877
        %1919 = vmatprep.subr.bf16.mxu0 0
        %1920 = vmatpush1.bf16.msra.mxu0 %v1878
        %1921 = vmatprep.subr.bf16.mxu0 0
        %1922 = vmatpush1.bf16.msra.mxu0 %v1905
        %1923 = vmatprep.subr.bf16.mxu0 0
        %1924 = vmatpush1.bf16.msra.mxu0 0
        %1925 = vmatprep.subr.bf16.mxu0 0
        %1926 = vmatpush1.bf16.msra.mxu0 0
        %1927 = vmatprep.subr.bf16.mxu0 0
        %1928 = vmatpush1.bf16.msra.mxu0 0
        %1929 = vmatprep.subr.bf16.mxu0 0
        %1930 = vmatpush1.bf16.msra.mxu0 0
        %1931 = vmatprep.subr.bf16.mxu0 0
        %1932 = vmatpush1.bf16.msra.mxu0 0
        %1933 = vmatprep.subr.bf16.mxu0 0
        %1934 = vmatpush1.bf16.msra.mxu0 0
        %1935 = vmatprep.subr.bf16.mxu0 0
        %1936 = vmatpush1.bf16.msra.mxu0 0
        %1937 = vmatprep.subr.bf16.mxu0 0
        %1938 = vmatpush1.bf16.msra.mxu0 0
        %1939 = vmatprep.mubr.bf16.mxu0 0
        %1940 = vmatmul.mubr.bf16.gmra.mrb[0].mxu0 %v1889
        %v1941 = vpop.f32.mrb[0].mxu0
        %v1942 = vadd.f32 0.0, %v1941
        %v1943 = vpop.f32.mrb[0].mxu0
        %v1944 = vpop.f32.mrb[0].mxu0
        %v1945 = vadd.f32 0.0, %v1944
        %v1946 = vpop.f32.mrb[0].mxu0
        %1947 = vmatprep.mubr.bf16.mxu0 0
        %1948 = vmatmul.mubr.bf16.gmra.mrb[0].mxu0 %v1892
        %v1949 = vpop.f32.mrb[0].mxu0
        %v1950 = vadd.f32 0.0, %v1949
        %v1951 = vpop.f32.mrb[0].mxu0
        %v1952 = vpop.f32.mrb[0].mxu0
        %v1953 = vadd.f32 0.0, %v1952
        %v1954 = vpop.f32.mrb[0].mxu0
        %1955 = vmatprep.mubr.bf16.mxu0 0
        %1956 = vmatmul.mubr.bf16.gmra.mrb[0].mxu0 %v1895
        %v1957 = vpop.f32.mrb[0].mxu0
        %v1958 = vadd.f32 0.0, %v1957
        %v1959 = vpop.f32.mrb[0].mxu0
        %v1960 = vpop.f32.mrb[0].mxu0
        %v1961 = vadd.f32 0.0, %v1960
        %v1962 = vpop.f32.mrb[0].mxu0
        %1963 = vmatprep.mubr.bf16.mxu0 0
        %1964 = vmatmul.mubr.bf16.gmra.mrb[0].mxu0 %v1898
        %v1965 = vpop.f32.mrb[0].mxu0
        %v1966 = vadd.f32 0.0, %v1965
        %v1967 = vpop.f32.mrb[0].mxu0
        %v1968 = vpop.f32.mrb[0].mxu0
        %v1969 = vadd.f32 0.0, %v1968
        %v1970 = vpop.f32.mrb[0].mxu0
        %1971 = vmatprep.mubr.bf16.mxu0 0
        %1972 = vmatmul.mubr.bf16.gmra.mrb[0].mxu0 %v1901
        %v1973 = vpop.f32.mrb[0].mxu0
        %v1974 = vadd.f32 0.0, %v1973
        %v1975 = vpop.f32.mrb[0].mxu0
        %v1976 = vpop.f32.mrb[0].mxu0
        %v1977 = vadd.f32 0.0, %v1976
        %v1978 = vpop.f32.mrb[0].mxu0
        %1979 = vdwg.mxu0
        %v1980 = vpack.c.bf16 %v1945, %v1942
        %v1981 = vpack.c.bf16 %v1953, %v1950
        %v1982 = vpack.c.bf16 %v1961, %v1958
        %v1983 = vpack.c.bf16 %v1969, %v1966
        %v1984 = vpack.c.bf16 %v1977, %v1974
        %v1985 = vld [vmem:[%s5] sm:$0xf]
        %v1986 = vld [vmem:[%s5 + $0x4] sm:$0xf]
        %v1987 = vld [vmem:[%s5 + $0x8] sm:$0xf]
        %v1988 = vld [vmem:[%s5 + $0xc] sm:$0xf]
        %v1989 = vld [vmem:[%s5 + $0x10] sm:$0xf]
        %v1990 = vld [vmem:[%s5 + $0x14] sm:$0xf]
        %v1991 = vld [vmem:[%s5 + $0x18] sm:$0xf]
        %v1992 = vld [vmem:[%s5 + $0x1c] sm:$0xf]
        %v1993 = vld [vmem:[%s5 + $0x20] sm:$0xf]
        %v1994 = vld [vmem:[%s5 + $0x24] sm:$0xf]
        %s1995 = scalar_lea.vmem %s5, 40
        %v1996 = vld [vmem:[%s1995] sm:$0xf]
        %v1997 = vld [vmem:[%s1995 + $0x4] sm:$0xf]
        %v1998 = vld [vmem:[%s1995 + $0x8] sm:$0xf]
        %v1999 = vld [vmem:[%s1995 + $0xc] sm:$0xf]
        %v2000 = vld [vmem:[%s1995 + $0x10] sm:$0xf]
        %v2001 = vld [vmem:[%s1995 + $0x14] sm:$0xf]
        %v2002 = vld [vmem:[%s1995 + $0x18] sm:$0xf]
        %v2003 = vld [vmem:[%s1995 + $0x1c] sm:$0xf]
        %v2004 = vld [vmem:[%s1995 + $0x20] sm:$0xf]
        %v2005 = vld [vmem:[%s1995 + $0x24] sm:$0xf]
        %v2007 = vshrl.u32 %v1980, 16
        %v2009 = vshll.u32 %v1980, 16
        %v2011 = vrot.slane %v2009, 1
        %v2012 = vor.u32 %v2007, %v2011
        %v2014 = vshll.u32 %v1981, 16
        %v2016 = vrot.slane %v2014, 1
        %v2017 = vsel %vm648, %v2012, %v2016
        %v2018 = vshrl.u32 %v1981, 16
        %v2020 = vor.u32 %v2018, %v2016
        %v2022 = vshll.u32 %v1982, 16
        %v2024 = vrot.slane %v2022, 1
        %v2025 = vsel %vm648, %v2020, %v2024
        %v2026 = vshrl.u32 %v1982, 16
        %v2028 = vor.u32 %v2026, %v2024
        %v2030 = vshll.u32 %v1983, 16
        %v2032 = vrot.slane %v2030, 1
        %v2033 = vsel %vm648, %v2028, %v2032
        %v2034 = vshrl.u32 %v1983, 16
        %v2036 = vor.u32 %v2034, %v2032
        %v2038 = vshll.u32 %v1984, 16
        %v2040 = vrot.slane %v2038, 1
        %v2041 = vsel %vm648, %v2036, %v2040
        %v2042 = vshrl.u32 %v1984, 16
        %v2044 = vor.u32 %v2042, %v2040
        %v2055 = vunpack.c.l.b16 %v1996
        %v2056 = vunpack.c.l.b16 %v1997
        %v2057 = vunpack.c.l.b16 %v1998
        %v2058 = vunpack.c.l.b16 %v1999
        %v2059 = vunpack.c.l.b16 %v2000
        %v2060 = vunpack.c.l.b16 %v2001
        %v2061 = vunpack.c.l.b16 %v2002
        %v2062 = vunpack.c.l.b16 %v2003
        %v2063 = vunpack.c.l.b16 %v2004
        %v2064 = vunpack.c.l.b16 %v2005
        %v2065 = vpack.c.b16 %v2056, %v2055
        %v2066 = vpack.c.b16 %v2058, %v2057
        %v2067 = vpack.c.b16 %v2060, %v2059
        %v2068 = vpack.c.b16 %v2062, %v2061
        %v2069 = vpack.c.b16 %v2064, %v2063
        %vm2075 = vcmask 654336
        %v2077 = vsel %vm2075, %v2017, 0
        %v2080 = vsel %vm2075, %v2025, 0
        %v2083 = vsel %vm2075, %v2033, 0
        %v2086 = vsel %vm2075, %v2041, 0
        %v2089 = vsel %vm2075, %v2044, 0
        %2091 = vmatprep.subr.bf16.mxu0 0
        %2092 = vmatpush1.bf16.msra.mxu0 %v2065
        %2093 = vmatprep.subr.bf16.mxu0 0
        %2094 = vmatpush1.bf16.msra.mxu0 %v2066
        %2095 = vmatprep.subr.bf16.mxu0 0
        %2096 = vmatpush1.bf16.msra.mxu0 %v2067
        %2097 = vmatprep.subr.bf16.mxu0 0
        %2098 = vmatpush1.bf16.msra.mxu0 %v2068
        %2099 = vmatprep.subr.bf16.mxu0 0
        %2100 = vmatpush1.bf16.msra.mxu0 %v2069
        %2101 = vmatprep.subr.bf16.mxu0 0
        %2102 = vmatpush1.bf16.msra.mxu0 0
        %2103 = vmatprep.subr.bf16.mxu0 0
        %2104 = vmatpush1.bf16.msra.mxu0 0
        %2105 = vmatprep.subr.bf16.mxu0 0
        %2106 = vmatpush1.bf16.msra.mxu0 0
        %2107 = vmatprep.subr.bf16.mxu0 0
        %2108 = vmatpush1.bf16.msra.mxu0 0
        %2109 = vmatprep.subr.bf16.mxu0 0
        %2110 = vmatpush1.bf16.msra.mxu0 0
        %2111 = vmatprep.subr.bf16.mxu0 0
        %2112 = vmatpush1.bf16.msra.mxu0 0
        %2113 = vmatprep.subr.bf16.mxu0 0
        %2114 = vmatpush1.bf16.msra.mxu0 0
        %2115 = vmatprep.subr.bf16.mxu0 0
        %2116 = vmatpush1.bf16.msra.mxu0 0
        %2117 = vmatprep.subr.bf16.mxu0 0
        %2118 = vmatpush1.bf16.msra.mxu0 0
        %2119 = vmatprep.subr.bf16.mxu0 0
        %2120 = vmatpush1.bf16.msra.mxu0 0
        %2121 = vmatprep.subr.bf16.mxu0 0
        %2122 = vmatpush1.bf16.msra.mxu0 0
        %2123 = vmatprep.mubr.bf16.mxu0 0
        %2124 = vmatmul.mubr.bf16.gmra.mrb[0].mxu0 %v2077
        %v2125 = vpop.f32.mrb[0].mxu0
        %v2126 = vadd.f32 0.0, %v2125
        %v2127 = vpop.f32.mrb[0].mxu0
        %v2128 = vpop.f32.mrb[0].mxu0
        %v2129 = vadd.f32 0.0, %v2128
        %v2130 = vpop.f32.mrb[0].mxu0
        %2131 = vmatprep.mubr.bf16.mxu0 0
        %2132 = vmatmul.mubr.bf16.gmra.mrb[0].mxu0 %v2080
        %v2133 = vpop.f32.mrb[0].mxu0
        %v2134 = vadd.f32 0.0, %v2133
        %v2135 = vpop.f32.mrb[0].mxu0
        %v2136 = vpop.f32.mrb[0].mxu0
        %v2137 = vadd.f32 0.0, %v2136
        %v2138 = vpop.f32.mrb[0].mxu0
        %2139 = vmatprep.mubr.bf16.mxu0 0
        %2140 = vmatmul.mubr.bf16.gmra.mrb[0].mxu0 %v2083
        %v2141 = vpop.f32.mrb[0].mxu0
        %v2142 = vadd.f32 0.0, %v2141
        %v2143 = vpop.f32.mrb[0].mxu0
        %v2144 = vpop.f32.mrb[0].mxu0
        %v2145 = vadd.f32 0.0, %v2144
        %v2146 = vpop.f32.mrb[0].mxu0
        %2147 = vmatprep.mubr.bf16.mxu0 0
        %2148 = vmatmul.mubr.bf16.gmra.mrb[0].mxu0 %v2086
        %v2149 = vpop.f32.mrb[0].mxu0
        %v2150 = vadd.f32 0.0, %v2149
        %v2151 = vpop.f32.mrb[0].mxu0
        %v2152 = vpop.f32.mrb[0].mxu0
        %v2153 = vadd.f32 0.0, %v2152
        %v2154 = vpop.f32.mrb[0].mxu0
        %2155 = vmatprep.mubr.bf16.mxu0 0
        %2156 = vmatmul.mubr.bf16.gmra.mrb[0].mxu0 %v2089
        %v2157 = vpop.f32.mrb[0].mxu0
        %v2158 = vadd.f32 0.0, %v2157
        %v2159 = vpop.f32.mrb[0].mxu0
        %v2160 = vpop.f32.mrb[0].mxu0
        %v2161 = vadd.f32 0.0, %v2160
        %v2162 = vpop.f32.mrb[0].mxu0
        %2163 = vdwg.mxu0
        %v2174 = vunpack.c.l.b16 %v1985
        %v2175 = vunpack.c.l.b16 %v1986
        %v2176 = vunpack.c.l.b16 %v1987
        %v2177 = vunpack.c.l.b16 %v1988
        %v2178 = vunpack.c.l.b16 %v1989
        %v2179 = vunpack.c.l.b16 %v1990
        %v2180 = vunpack.c.l.b16 %v1991
        %v2181 = vunpack.c.l.b16 %v1992
        %v2182 = vunpack.c.l.b16 %v1993
        %v2183 = vunpack.c.l.b16 %v1994
        %v2184 = vpack.c.b16 %v2175, %v2174
        %v2185 = vpack.c.b16 %v2177, %v2176
        %v2186 = vpack.c.b16 %v2179, %v2178
        %v2187 = vpack.c.b16 %v2181, %v2180
        %v2188 = vpack.c.b16 %v2183, %v2182
        %v2194 = vsel %vm2075, %v1980, 0
        %v2196 = vsel %vm2075, %v1981, 0
        %v2198 = vsel %vm2075, %v1982, 0
        %v2200 = vsel %vm2075, %v1983, 0
        %v2202 = vsel %vm2075, %v1984, 0
        %2204 = vmatprep.subr.bf16.mxu0 0
        %2205 = vmatpush1.bf16.msra.mxu0 %v2184
        %2206 = vmatprep.subr.bf16.mxu0 0
        %2207 = vmatpush1.bf16.msra.mxu0 %v2185
        %2208 = vmatprep.subr.bf16.mxu0 0
        %2209 = vmatpush1.bf16.msra.mxu0 %v2186
        %2210 = vmatprep.subr.bf16.mxu0 0
        %2211 = vmatpush1.bf16.msra.mxu0 %v2187
        %2212 = vmatprep.subr.bf16.mxu0 0
        %2213 = vmatpush1.bf16.msra.mxu0 %v2188
        %2214 = vmatprep.subr.bf16.mxu0 0
        %2215 = vmatpush1.bf16.msra.mxu0 0
        %2216 = vmatprep.subr.bf16.mxu0 0
        %2217 = vmatpush1.bf16.msra.mxu0 0
        %2218 = vmatprep.subr.bf16.mxu0 0
        %2219 = vmatpush1.bf16.msra.mxu0 0
        %2220 = vmatprep.subr.bf16.mxu0 0
        %2221 = vmatpush1.bf16.msra.mxu0 0
        %2222 = vmatprep.subr.bf16.mxu0 0
        %2223 = vmatpush1.bf16.msra.mxu0 0
        %2224 = vmatprep.subr.bf16.mxu0 0
        %2225 = vmatpush1.bf16.msra.mxu0 0
        %2226 = vmatprep.subr.bf16.mxu0 0
        %2227 = vmatpush1.bf16.msra.mxu0 0
        %2228 = vmatprep.subr.bf16.mxu0 0
        %2229 = vmatpush1.bf16.msra.mxu0 0
        %2230 = vmatprep.subr.bf16.mxu0 0
        %2231 = vmatpush1.bf16.msra.mxu0 0
        %2232 = vmatprep.subr.bf16.mxu0 0
        %2233 = vmatpush1.bf16.msra.mxu0 0
        %2234 = vmatprep.subr.bf16.mxu0 0
        %2235 = vmatpush1.bf16.msra.mxu0 0
        %2236 = vmatprep.mubr.bf16.mxu0 0
        %2237 = vmatmul.mubr.bf16.gmra.mrb[0].mxu0 %v2194
        %v2238 = vpop.f32.mrb[0].mxu0
        %v2239 = vadd.f32 %v2126, %v2238
        %v2240 = vpop.f32.mrb[0].mxu0
        %v2241 = vpop.f32.mrb[0].mxu0
        %v2242 = vadd.f32 %v2129, %v2241
        %v2243 = vpop.f32.mrb[0].mxu0
        %2244 = vmatprep.mubr.bf16.mxu0 0
        %2245 = vmatmul.mubr.bf16.gmra.mrb[0].mxu0 %v2196
        %v2246 = vpop.f32.mrb[0].mxu0
        %v2247 = vadd.f32 %v2134, %v2246
        %v2248 = vpop.f32.mrb[0].mxu0
        %v2249 = vpop.f32.mrb[0].mxu0
        %v2250 = vadd.f32 %v2137, %v2249
        %v2251 = vpop.f32.mrb[0].mxu0
        %2252 = vmatprep.mubr.bf16.mxu0 0
        %2253 = vmatmul.mubr.bf16.gmra.mrb[0].mxu0 %v2198
        %v2254 = vpop.f32.mrb[0].mxu0
        %v2255 = vadd.f32 %v2142, %v2254
        %v2256 = vpop.f32.mrb[0].mxu0
        %v2257 = vpop.f32.mrb[0].mxu0
        %v2258 = vadd.f32 %v2145, %v2257
        %v2259 = vpop.f32.mrb[0].mxu0
        %2260 = vmatprep.mubr.bf16.mxu0 0
        %2261 = vmatmul.mubr.bf16.gmra.mrb[0].mxu0 %v2200
        %v2262 = vpop.f32.mrb[0].mxu0
        %v2263 = vadd.f32 %v2150, %v2262
        %v2264 = vpop.f32.mrb[0].mxu0
        %v2265 = vpop.f32.mrb[0].mxu0
        %v2266 = vadd.f32 %v2153, %v2265
        %v2267 = vpop.f32.mrb[0].mxu0
        %2268 = vmatprep.mubr.bf16.mxu0 0
        %2269 = vmatmul.mubr.bf16.gmra.mrb[0].mxu0 %v2202
        %v2270 = vpop.f32.mrb[0].mxu0
        %v2271 = vadd.f32 %v2158, %v2270
        %v2272 = vpop.f32.mrb[0].mxu0
        %v2273 = vpop.f32.mrb[0].mxu0
        %v2274 = vadd.f32 %v2161, %v2273
        %v2275 = vpop.f32.mrb[0].mxu0
        %2276 = vdwg.mxu0
        %s2277 = scalar_lea.vmem %s5, 80
        %v2278 = vld [vmem:[%s2277] sm:$0xf]
        %v2279 = vld [vmem:[%s2277 + $0x4] sm:$0xf]
        %v2280 = vld [vmem:[%s2277 + $0x8] sm:$0xf]
        %v2281 = vld [vmem:[%s2277 + $0xc] sm:$0xf]
        %v2282 = vld [vmem:[%s2277 + $0x10] sm:$0xf]
        %v2283 = vld [vmem:[%s2277 + $0x14] sm:$0xf]
        %v2284 = vld [vmem:[%s2277 + $0x18] sm:$0xf]
        %v2285 = vld [vmem:[%s2277 + $0x1c] sm:$0xf]
        %v2286 = vld [vmem:[%s2277 + $0x20] sm:$0xf]
        %v2287 = vld [vmem:[%s2277 + $0x24] sm:$0xf]
        %v2293 = vrot.slane %v1980, 1
        %v2294 = vrot.slane %v1981, 1
        %v2295 = vsel %vm1192, %v2293, %v2294
        %v2296 = vrot.slane %v1982, 1
        %v2297 = vsel %vm1192, %v2294, %v2296
        %v2298 = vrot.slane %v1983, 1
        %v2299 = vsel %vm1192, %v2296, %v2298
        %v2300 = vrot.slane %v1984, 1
        %v2301 = vsel %vm1192, %v2298, %v2300
        %v2312 = vunpack.c.l.b16 %v2278
        %v2313 = vunpack.c.l.b16 %v2279
        %v2314 = vunpack.c.l.b16 %v2280
        %v2315 = vunpack.c.l.b16 %v2281
        %v2316 = vunpack.c.l.b16 %v2282
        %v2317 = vunpack.c.l.b16 %v2283
        %v2318 = vunpack.c.l.b16 %v2284
        %v2319 = vunpack.c.l.b16 %v2285
        %v2320 = vunpack.c.l.b16 %v2286
        %v2321 = vunpack.c.l.b16 %v2287
        %v2322 = vpack.c.b16 %v2313, %v2312
        %v2323 = vpack.c.b16 %v2315, %v2314
        %v2324 = vpack.c.b16 %v2317, %v2316
        %v2325 = vpack.c.b16 %v2319, %v2318
        %v2326 = vpack.c.b16 %v2321, %v2320
        %v2333 = vsel %vm2075, %v2295, 0
        %v2336 = vsel %vm2075, %v2297, 0
        %v2339 = vsel %vm2075, %v2299, 0
        %v2342 = vsel %vm2075, %v2301, 0
        %v2345 = vsel %vm2075, %v2300, 0
        %2347 = vmatprep.subr.bf16.mxu0 0
        %2348 = vmatpush1.bf16.msra.mxu0 %v2322
        %2349 = vmatprep.subr.bf16.mxu0 0
        %2350 = vmatpush1.bf16.msra.mxu0 %v2323
        %2351 = vmatprep.subr.bf16.mxu0 0
        %2352 = vmatpush1.bf16.msra.mxu0 %v2324
        %2353 = vmatprep.subr.bf16.mxu0 0
        %2354 = vmatpush1.bf16.msra.mxu0 %v2325
        %2355 = vmatprep.subr.bf16.mxu0 0
        %2356 = vmatpush1.bf16.msra.mxu0 %v2326
        %2357 = vmatprep.subr.bf16.mxu0 0
        %2358 = vmatpush1.bf16.msra.mxu0 0
        %2359 = vmatprep.subr.bf16.mxu0 0
        %2360 = vmatpush1.bf16.msra.mxu0 0
        %2361 = vmatprep.subr.bf16.mxu0 0
        %2362 = vmatpush1.bf16.msra.mxu0 0
        %2363 = vmatprep.subr.bf16.mxu0 0
        %2364 = vmatpush1.bf16.msra.mxu0 0
        %2365 = vmatprep.subr.bf16.mxu0 0
        %2366 = vmatpush1.bf16.msra.mxu0 0
        %2367 = vmatprep.subr.bf16.mxu0 0
        %2368 = vmatpush1.bf16.msra.mxu0 0
        %2369 = vmatprep.subr.bf16.mxu0 0
        %2370 = vmatpush1.bf16.msra.mxu0 0
        %2371 = vmatprep.subr.bf16.mxu0 0
        %2372 = vmatpush1.bf16.msra.mxu0 0
        %2373 = vmatprep.subr.bf16.mxu0 0
        %2374 = vmatpush1.bf16.msra.mxu0 0
        %2375 = vmatprep.subr.bf16.mxu0 0
        %2376 = vmatpush1.bf16.msra.mxu0 0
        %2377 = vmatprep.subr.bf16.mxu0 0
        %2378 = vmatpush1.bf16.msra.mxu0 0
        %2379 = vmatprep.mubr.bf16.mxu0 0
        %2380 = vmatmul.mubr.bf16.gmra.mrb[0].mxu0 %v2333
        %v2381 = vpop.f32.mrb[0].mxu0
        %v2382 = vadd.f32 0.0, %v2381
        %v2383 = vpop.f32.mrb[0].mxu0
        %v2384 = vpop.f32.mrb[0].mxu0
        %v2385 = vadd.f32 0.0, %v2384
        %v2386 = vpop.f32.mrb[0].mxu0
        %2387 = vmatprep.mubr.bf16.mxu0 0
        %2388 = vmatmul.mubr.bf16.gmra.mrb[0].mxu0 %v2336
        %v2389 = vpop.f32.mrb[0].mxu0
        %v2390 = vadd.f32 0.0, %v2389
        %v2391 = vpop.f32.mrb[0].mxu0
        %v2392 = vpop.f32.mrb[0].mxu0
        %v2393 = vadd.f32 0.0, %v2392
        %v2394 = vpop.f32.mrb[0].mxu0
        %2395 = vmatprep.mubr.bf16.mxu0 0
        %2396 = vmatmul.mubr.bf16.gmra.mrb[0].mxu0 %v2339
        %v2397 = vpop.f32.mrb[0].mxu0
        %v2398 = vadd.f32 0.0, %v2397
        %v2399 = vpop.f32.mrb[0].mxu0
        %v2400 = vpop.f32.mrb[0].mxu0
        %v2401 = vadd.f32 0.0, %v2400
        %v2402 = vpop.f32.mrb[0].mxu0
        %2403 = vmatprep.mubr.bf16.mxu0 0
        %2404 = vmatmul.mubr.bf16.gmra.mrb[0].mxu0 %v2342
        %v2405 = vpop.f32.mrb[0].mxu0
        %v2406 = vadd.f32 0.0, %v2405
        %v2407 = vpop.f32.mrb[0].mxu0
        %v2408 = vpop.f32.mrb[0].mxu0
        %v2409 = vadd.f32 0.0, %v2408
        %v2410 = vpop.f32.mrb[0].mxu0
        %2411 = vmatprep.mubr.bf16.mxu0 0
        %2412 = vmatmul.mubr.bf16.gmra.mrb[0].mxu0 %v2345
        %v2413 = vpop.f32.mrb[0].mxu0
        %v2414 = vadd.f32 0.0, %v2413
        %v2415 = vpop.f32.mrb[0].mxu0
        %v2416 = vpop.f32.mrb[0].mxu0
        %v2417 = vadd.f32 0.0, %v2416
        %v2418 = vpop.f32.mrb[0].mxu0
        %2419 = vdwg.mxu0
        %v2420 = vadd.f32 %v2239, %v2382
        %v2421 = vadd.f32 %v2242, %v2385
        %v2422 = vadd.f32 %v2247, %v2390
        %v2423 = vadd.f32 %v2250, %v2393
        %v2424 = vadd.f32 %v2255, %v2398
        %v2425 = vadd.f32 %v2258, %v2401
        %v2426 = vadd.f32 %v2263, %v2406
        %v2427 = vadd.f32 %v2266, %v2409
        %v2428 = vadd.f32 %v2271, %v2414
        %v2429 = vadd.f32 %v2274, %v2417
        %v2430 = vld [vmem:[%s6] sm:$0x1]
        %v2432 = vlaneseq
        %v2433 = vshrl.u32 %v2432, 7
        %v2434 = vsub.s32 0, %v2433
        %v2435 = vrot.slane %v2430, %v2434
        %v2437 = vadd.f32 %v2420, %v2435
        %v2438 = vadd.f32 %v2421, %v2435
        %v2439 = vadd.f32 %v2422, %v2435
        %v2440 = vadd.f32 %v2423, %v2435
        %v2441 = vadd.f32 %v2424, %v2435
        %v2442 = vadd.f32 %v2425, %v2435
        %v2443 = vadd.f32 %v2426, %v2435
        %v2444 = vadd.f32 %v2427, %v2435
        %v2445 = vadd.f32 %v2428, %v2435
        %v2446 = vadd.f32 %v2429, %v2435
        %v2447 = vmax.f32 %v2437, 0.0
        %v2448 = vmax.f32 %v2438, 0.0
        %v2449 = vmax.f32 %v2439, 0.0
        %v2450 = vmax.f32 %v2440, 0.0
        %v2451 = vmax.f32 %v2441, 0.0
        %v2452 = vmax.f32 %v2442, 0.0
        %v2453 = vmax.f32 %v2443, 0.0
        %v2454 = vmax.f32 %v2444, 0.0
        %v2455 = vmax.f32 %v2445, 0.0
        %v2456 = vmax.f32 %v2446, 0.0
        %v2467 = vrot.slane %v2447, 1
        %v2468 = vrot.slane %v2448, 1
        %v2469 = vsel %vm1501, %v2467, %v2468
        %v2470 = vrot.slane %v2449, 1
        %v2471 = vsel %vm1501, %v2468, %v2470
        %v2472 = vrot.slane %v2450, 1
        %v2473 = vsel %vm1501, %v2470, %v2472
        %v2474 = vrot.slane %v2451, 1
        %v2475 = vsel %vm1501, %v2472, %v2474
        %v2476 = vrot.slane %v2452, 1
        %v2477 = vsel %vm1501, %v2474, %v2476
        %v2478 = vrot.slane %v2453, 1
        %v2479 = vsel %vm1501, %v2476, %v2478
        %v2480 = vrot.slane %v2454, 1
        %v2481 = vsel %vm1501, %v2478, %v2480
        %v2482 = vrot.slane %v2455, 1
        %v2483 = vsel %vm1501, %v2480, %v2482
        %v2484 = vrot.slane %v2456, 1
        %v2485 = vsel %vm1501, %v2482, %v2484
        %v2496 = vmax.f32 %v2447, %v2469
        %v2497 = vmax.f32 %v2448, %v2471
        %v2498 = vmax.f32 %v2449, %v2473
        %v2499 = vmax.f32 %v2450, %v2475
        %v2500 = vmax.f32 %v2451, %v2477
        %v2501 = vmax.f32 %v2452, %v2479
        %v2502 = vmax.f32 %v2453, %v2481
        %v2503 = vmax.f32 %v2454, %v2483
        %v2504 = vmax.f32 %v2455, %v2485
        %v2505 = vmax.f32 %v2456, %v2484
        %2516 = vrot.lane.b32.xlu0 %v2496, 112
        %v2517 = vpop.permute.xlu0 %2516
        %2518 = vrot.lane.b32.xlu0 %v2497, 112
        %v2519 = vpop.permute.xlu0 %2518
        %2520 = vrot.lane.b32.xlu0 %v2498, 112
        %v2521 = vpop.permute.xlu0 %2520
        %2522 = vrot.lane.b32.xlu0 %v2499, 112
        %v2523 = vpop.permute.xlu0 %2522
        %2524 = vrot.lane.b32.xlu0 %v2500, 112
        %v2525 = vpop.permute.xlu0 %2524
        %2526 = vrot.lane.b32.xlu0 %v2501, 112
        %v2527 = vpop.permute.xlu0 %2526
        %2528 = vrot.lane.b32.xlu0 %v2502, 112
        %v2529 = vpop.permute.xlu0 %2528
        %2530 = vrot.lane.b32.xlu0 %v2503, 112
        %v2531 = vpop.permute.xlu0 %2530
        %2532 = vrot.lane.b32.xlu0 %v2504, 112
        %v2533 = vpop.permute.xlu0 %2532
        %2534 = vrot.lane.b32.xlu0 %v2505, 112
        %v2535 = vpop.permute.xlu0 %2534
        %v2546 = vmax.f32 %v2496, %v2517
        %v2547 = vmax.f32 %v2497, %v2519
        %v2548 = vmax.f32 %v2498, %v2521
        %v2549 = vmax.f32 %v2499, %v2523
        %v2550 = vmax.f32 %v2500, %v2525
        %v2551 = vmax.f32 %v2501, %v2527
        %v2552 = vmax.f32 %v2502, %v2529
        %v2553 = vmax.f32 %v2503, %v2531
        %v2554 = vmax.f32 %v2504, %v2533
        %v2555 = vmax.f32 %v2505, %v2535
        %v2556 = vpack.c.bf16 %v2547, %v2546
        %v2557 = vpack.c.bf16 %v2549, %v2548
        %v2558 = vpack.c.bf16 %v2551, %v2550
        %v2559 = vpack.c.bf16 %v2553, %v2552
        %v2560 = vpack.c.bf16 %v2555, %v2554
        %v2561 = vld [vmem:[%s7] sm:$0xf]
        %v2562 = vld [vmem:[%s7 + $0x4] sm:$0xf]
        %v2563 = vld [vmem:[%s7 + $0x8] sm:$0xf]
        %v2564 = vld [vmem:[%s7 + $0xc] sm:$0xf]
        %v2565 = vld [vmem:[%s7 + $0x10] sm:$0xf]
        %v2566 = vld [vmem:[%s7 + $0x14] sm:$0xf]
        %v2573 = vunpack.c.l.b16 %v2561
        %v2574 = vunpack.c.l.b16 %v2562
        %v2575 = vunpack.c.l.b16 %v2563
        %v2576 = vunpack.c.l.b16 %v2564
        %v2577 = vunpack.c.l.b16 %v2565
        %v2578 = vunpack.c.l.b16 %v2566
        %v2579 = vpack.c.b16 %v2574, %v2573
        %v2580 = vpack.c.b16 %v2576, %v2575
        %v2581 = vpack.c.b16 %v2578, %v2577
        %vm2582 = vcmask 629760
        %v2584 = vsel %vm2582, %v2579, 0
        %v2587 = vsel %vm2582, %v2580, 0
        %v2590 = vsel %vm2582, %v2581, 0
        %v2593 = vand.u32 %v2560, %v1745
        %2595 = vmatprep.subr.bf16.mxu0 0
        %2596 = vmatpush1.bf16.msra.mxu0 %v2556
        %2597 = vmatprep.subr.bf16.mxu0 0
        %2598 = vmatpush1.bf16.msra.mxu0 %v2557
        %2599 = vmatprep.subr.bf16.mxu0 0
        %2600 = vmatpush1.bf16.msra.mxu0 %v2558
        %2601 = vmatprep.subr.bf16.mxu0 0
        %2602 = vmatpush1.bf16.msra.mxu0 %v2559
        %2603 = vmatprep.subr.bf16.mxu0 0
        %2604 = vmatpush1.bf16.msra.mxu0 %v2593
        %2605 = vmatprep.subr.bf16.mxu0 0
        %2606 = vmatpush1.bf16.msra.mxu0 0
        %2607 = vmatprep.subr.bf16.mxu0 0
        %2608 = vmatpush1.bf16.msra.mxu0 0
        %2609 = vmatprep.subr.bf16.mxu0 0
        %2610 = vmatpush1.bf16.msra.mxu0 0
        %2611 = vmatprep.subr.bf16.mxu0 0
        %2612 = vmatpush1.bf16.msra.mxu0 0
        %2613 = vmatprep.subr.bf16.mxu0 0
        %2614 = vmatpush1.bf16.msra.mxu0 0
        %2615 = vmatprep.subr.bf16.mxu0 0
        %2616 = vmatpush1.bf16.msra.mxu0 0
        %2617 = vmatprep.subr.bf16.mxu0 0
        %2618 = vmatpush1.bf16.msra.mxu0 0
        %2619 = vmatprep.subr.bf16.mxu0 0
        %2620 = vmatpush1.bf16.msra.mxu0 0
        %2621 = vmatprep.subr.bf16.mxu0 0
        %2622 = vmatpush1.bf16.msra.mxu0 0
        %2623 = vmatprep.subr.bf16.mxu0 0
        %2624 = vmatpush1.bf16.msra.mxu0 0
        %2625 = vmatprep.subr.bf16.mxu0 0
        %2626 = vmatpush1.bf16.msra.mxu0 0
        %2627 = vmatprep.mubr.bf16.mxu0 0
        %2628 = vmatmul.mubr.bf16.gmra.mrb[0].mxu0 %v2584
        %v2629 = vpop.f32.mrb[0].mxu0
        %v2630 = vadd.f32 0.0, %v2629
        %v2631 = vpop.f32.mrb[0].mxu0
        %v2632 = vpop.f32.mrb[0].mxu0
        %v2633 = vadd.f32 0.0, %v2632
        %v2634 = vpop.f32.mrb[0].mxu0
        %2635 = vmatprep.mubr.bf16.mxu0 0
        %2636 = vmatmul.mubr.bf16.gmra.mrb[0].mxu0 %v2587
        %v2637 = vpop.f32.mrb[0].mxu0
        %v2638 = vadd.f32 0.0, %v2637
        %v2639 = vpop.f32.mrb[0].mxu0
        %v2640 = vpop.f32.mrb[0].mxu0
        %v2641 = vadd.f32 0.0, %v2640
        %v2642 = vpop.f32.mrb[0].mxu0
        %2643 = vmatprep.mubr.bf16.mxu0 0
        %2644 = vmatmul.mubr.bf16.gmra.mrb[0].mxu0 %v2590
        %v2645 = vpop.f32.mrb[0].mxu0
        %v2646 = vadd.f32 0.0, %v2645
        %v2647 = vpop.f32.mrb[0].mxu0
        %v2648 = vpop.f32.mrb[0].mxu0
        %v2649 = vadd.f32 0.0, %v2648
        %v2650 = vpop.f32.mrb[0].mxu0
        %2651 = vdwg.mxu0
        %v2652 = vpack.c.bf16 %v2633, %v2630
        %v2653 = vpack.c.bf16 %v2641, %v2638
        %v2654 = vpack.c.bf16 %v2649, %v2646
        %v2655 = vld [vmem:[%s8] sm:$0xf]
        %v2656 = vld [vmem:[%s8 + $0x4] sm:$0xf]
        %v2657 = vld [vmem:[%s8 + $0x8] sm:$0xf]
        %v2658 = vld [vmem:[%s8 + $0xc] sm:$0xf]
        %v2659 = vld [vmem:[%s8 + $0x10] sm:$0xf]
        %v2660 = vld [vmem:[%s8 + $0x14] sm:$0xf]
        %v2661 = vld [vmem:[%s8 + $0x18] sm:$0xf]
        %v2662 = vld [vmem:[%s8 + $0x1c] sm:$0xf]
        %v2663 = vld [vmem:[%s8 + $0x20] sm:$0xf]
        %v2664 = vld [vmem:[%s8 + $0x24] sm:$0xf]
        %v2665 = vld [vmem:[%s8 + $0x28] sm:$0xf]
        %v2666 = vld [vmem:[%s8 + $0x2c] sm:$0xf]
        %v2667 = vld [vmem:[%s8 + $0x30] sm:$0xf]
        %v2668 = vld [vmem:[%s8 + $0x34] sm:$0xf]
        %v2683 = vunpack.c.l.b16 %v2655
        %v2684 = vunpack.c.l.b16 %v2656
        %v2685 = vunpack.c.l.b16 %v2657
        %v2686 = vunpack.c.l.b16 %v2658
        %v2687 = vunpack.c.l.b16 %v2659
        %v2688 = vunpack.c.l.b16 %v2660
        %v2689 = vunpack.c.l.b16 %v2661
        %v2690 = vunpack.c.l.b16 %v2662
        %v2691 = vunpack.c.l.b16 %v2663
        %v2692 = vunpack.c.l.b16 %v2664
        %v2693 = vunpack.c.l.b16 %v2665
        %v2694 = vunpack.c.l.b16 %v2666
        %v2695 = vunpack.c.l.b16 %v2667
        %v2696 = vunpack.c.l.b16 %v2668
        %v2697 = vpack.c.b16 %v2684, %v2683
        %v2698 = vpack.c.b16 %v2686, %v2685
        %v2699 = vpack.c.b16 %v2688, %v2687
        %v2700 = vpack.c.b16 %v2690, %v2689
        %v2701 = vpack.c.b16 %v2692, %v2691
        %v2702 = vpack.c.b16 %v2694, %v2693
        %v2703 = vpack.c.b16 %v2696, %v2695
        %vm2711 = vcmask 916480
        %v2713 = vsel %vm2711, %v2652, 0
        %v2716 = vsel %vm2711, %v2653, 0
        %v2719 = vsel %vm2711, %v2654, 0
        %2721 = vmatprep.subr.bf16.mxu0 0
        %2722 = vmatpush1.bf16.msra.mxu0 %v2697
        %2723 = vmatprep.subr.bf16.mxu0 0
        %2724 = vmatpush1.bf16.msra.mxu0 %v2698
        %2725 = vmatprep.subr.bf16.mxu0 0
        %2726 = vmatpush1.bf16.msra.mxu0 %v2699
        %2727 = vmatprep.subr.bf16.mxu0 0
        %2728 = vmatpush1.bf16.msra.mxu0 %v2700
        %2729 = vmatprep.subr.bf16.mxu0 0
        %2730 = vmatpush1.bf16.msra.mxu0 %v2701
        %2731 = vmatprep.subr.bf16.mxu0 0
        %2732 = vmatpush1.bf16.msra.mxu0 %v2702
        %2733 = vmatprep.subr.bf16.mxu0 0
        %2734 = vmatpush1.bf16.msra.mxu0 %v2703
        %2735 = vmatprep.subr.bf16.mxu0 0
        %2736 = vmatpush1.bf16.msra.mxu0 0
        %2737 = vmatprep.subr.bf16.mxu0 0
        %2738 = vmatpush1.bf16.msra.mxu0 0
        %2739 = vmatprep.subr.bf16.mxu0 0
        %2740 = vmatpush1.bf16.msra.mxu0 0
        %2741 = vmatprep.subr.bf16.mxu0 0
        %2742 = vmatpush1.bf16.msra.mxu0 0
        %2743 = vmatprep.subr.bf16.mxu0 0
        %2744 = vmatpush1.bf16.msra.mxu0 0
        %2745 = vmatprep.subr.bf16.mxu0 0
        %2746 = vmatpush1.bf16.msra.mxu0 0
        %2747 = vmatprep.subr.bf16.mxu0 0
        %2748 = vmatpush1.bf16.msra.mxu0 0
        %2749 = vmatprep.subr.bf16.mxu0 0
        %2750 = vmatpush1.bf16.msra.mxu0 0
        %2751 = vmatprep.subr.bf16.mxu0 0
        %2752 = vmatpush1.bf16.msra.mxu0 0
        %2753 = vmatprep.mubr.bf16.mxu0 0
        %2754 = vmatmul.mubr.bf16.gmra.mrb[0].mxu0 %v2713
        %v2755 = vpop.f32.mrb[0].mxu0
        %v2756 = vadd.f32 0.0, %v2755
        %v2757 = vpop.f32.mrb[0].mxu0
        %v2758 = vpop.f32.mrb[0].mxu0
        %v2759 = vadd.f32 0.0, %v2758
        %v2760 = vpop.f32.mrb[0].mxu0
        %2761 = vmatprep.mubr.bf16.mxu0 0
        %2762 = vmatmul.mubr.bf16.gmra.mrb[0].mxu0 %v2716
        %v2763 = vpop.f32.mrb[0].mxu0
        %v2764 = vadd.f32 0.0, %v2763
        %v2765 = vpop.f32.mrb[0].mxu0
        %v2766 = vpop.f32.mrb[0].mxu0
        %v2767 = vadd.f32 0.0, %v2766
        %v2768 = vpop.f32.mrb[0].mxu0
        %2769 = vmatprep.mubr.bf16.mxu0 0
        %2770 = vmatmul.mubr.bf16.gmra.mrb[0].mxu0 %v2719
        %v2771 = vpop.f32.mrb[0].mxu0
        %v2772 = vadd.f32 0.0, %v2771
        %v2773 = vpop.f32.mrb[0].mxu0
        %v2774 = vpop.f32.mrb[0].mxu0
        %v2775 = vadd.f32 0.0, %v2774
        %v2776 = vpop.f32.mrb[0].mxu0
        %2777 = vdwg.mxu0
        %v2778 = vpack.c.bf16 %v2759, %v2756
        %v2779 = vpack.c.bf16 %v2767, %v2764
        %v2780 = vpack.c.bf16 %v2775, %v2772
        %v2781 = vld [vmem:[%s9] sm:$0xf]
        %v2782 = vld [vmem:[%s9 + $0x4] sm:$0xf]
        %v2783 = vld [vmem:[%s9 + $0x8] sm:$0xf]
        %v2784 = vld [vmem:[%s9 + $0xc] sm:$0xf]
        %v2785 = vld [vmem:[%s9 + $0x10] sm:$0xf]
        %v2786 = vld [vmem:[%s9 + $0x14] sm:$0xf]
        %v2787 = vld [vmem:[%s9 + $0x18] sm:$0xf]
        %v2788 = vld [vmem:[%s9 + $0x1c] sm:$0xf]
        %v2789 = vld [vmem:[%s9 + $0x20] sm:$0xf]
        %v2790 = vld [vmem:[%s9 + $0x24] sm:$0xf]
        %v2791 = vld [vmem:[%s9 + $0x28] sm:$0xf]
        %v2792 = vld [vmem:[%s9 + $0x2c] sm:$0xf]
        %s2793 = scalar_lea.vmem %s9, 48
        %v2794 = vld [vmem:[%s2793] sm:$0xf]
        %v2795 = vld [vmem:[%s2793 + $0x4] sm:$0xf]
        %v2796 = vld [vmem:[%s2793 + $0x8] sm:$0xf]
        %v2797 = vld [vmem:[%s2793 + $0xc] sm:$0xf]
        %v2798 = vld [vmem:[%s2793 + $0x10] sm:$0xf]
        %v2799 = vld [vmem:[%s2793 + $0x14] sm:$0xf]
        %v2800 = vld [vmem:[%s2793 + $0x18] sm:$0xf]
        %v2801 = vld [vmem:[%s2793 + $0x1c] sm:$0xf]
        %v2802 = vld [vmem:[%s2793 + $0x20] sm:$0xf]
        %v2803 = vld [vmem:[%s2793 + $0x24] sm:$0xf]
        %v2804 = vld [vmem:[%s2793 + $0x28] sm:$0xf]
        %v2805 = vld [vmem:[%s2793 + $0x2c] sm:$0xf]
        %v2807 = vshrl.u32 %v2778, 16
        %v2809 = vshll.u32 %v2778, 16
        %v2811 = vrot.slane %v2809, 1
        %v2812 = vor.u32 %v2807, %v2811
        %v2814 = vshll.u32 %v2779, 16
        %v2816 = vrot.slane %v2814, 1
        %v2817 = vsel %vm648, %v2812, %v2816
        %v2818 = vshrl.u32 %v2779, 16
        %v2820 = vor.u32 %v2818, %v2816
        %v2822 = vshll.u32 %v2780, 16
        %v2824 = vrot.slane %v2822, 1
        %v2825 = vsel %vm648, %v2820, %v2824
        %v2826 = vshrl.u32 %v2780, 16
        %v2828 = vor.u32 %v2826, %v2824
        %v2841 = vunpack.c.l.b16 %v2794
        %v2842 = vunpack.c.l.b16 %v2795
        %v2843 = vunpack.c.l.b16 %v2796
        %v2844 = vunpack.c.l.b16 %v2797
        %v2845 = vunpack.c.l.b16 %v2798
        %v2846 = vunpack.c.l.b16 %v2799
        %v2847 = vunpack.c.l.b16 %v2800
        %v2848 = vunpack.c.l.b16 %v2801
        %v2849 = vunpack.c.l.b16 %v2802
        %v2850 = vunpack.c.l.b16 %v2803
        %v2851 = vunpack.c.l.b16 %v2804
        %v2852 = vunpack.c.l.b16 %v2805
        %v2853 = vpack.c.b16 %v2842, %v2841
        %v2854 = vpack.c.b16 %v2844, %v2843
        %v2855 = vpack.c.b16 %v2846, %v2845
        %v2856 = vpack.c.b16 %v2848, %v2847
        %v2857 = vpack.c.b16 %v2850, %v2849
        %v2858 = vpack.c.b16 %v2852, %v2851
        %vm2865 = vcmask 785408
        %v2867 = vsel %vm2865, %v2817, 0
        %v2870 = vsel %vm2865, %v2825, 0
        %v2873 = vsel %vm2865, %v2828, 0
        %2875 = vmatprep.subr.bf16.mxu0 0
        %2876 = vmatpush1.bf16.msra.mxu0 %v2853
        %2877 = vmatprep.subr.bf16.mxu0 0
        %2878 = vmatpush1.bf16.msra.mxu0 %v2854
        %2879 = vmatprep.subr.bf16.mxu0 0
        %2880 = vmatpush1.bf16.msra.mxu0 %v2855
        %2881 = vmatprep.subr.bf16.mxu0 0
        %2882 = vmatpush1.bf16.msra.mxu0 %v2856
        %2883 = vmatprep.subr.bf16.mxu0 0
        %2884 = vmatpush1.bf16.msra.mxu0 %v2857
        %2885 = vmatprep.subr.bf16.mxu0 0
        %2886 = vmatpush1.bf16.msra.mxu0 %v2858
        %2887 = vmatprep.subr.bf16.mxu0 0
        %2888 = vmatpush1.bf16.msra.mxu0 0
        %2889 = vmatprep.subr.bf16.mxu0 0
        %2890 = vmatpush1.bf16.msra.mxu0 0
        %2891 = vmatprep.subr.bf16.mxu0 0
        %2892 = vmatpush1.bf16.msra.mxu0 0
        %2893 = vmatprep.subr.bf16.mxu0 0
        %2894 = vmatpush1.bf16.msra.mxu0 0
        %2895 = vmatprep.subr.bf16.mxu0 0
        %2896 = vmatpush1.bf16.msra.mxu0 0
        %2897 = vmatprep.subr.bf16.mxu0 0
        %2898 = vmatpush1.bf16.msra.mxu0 0
        %2899 = vmatprep.subr.bf16.mxu0 0
        %2900 = vmatpush1.bf16.msra.mxu0 0
        %2901 = vmatprep.subr.bf16.mxu0 0
        %2902 = vmatpush1.bf16.msra.mxu0 0
        %2903 = vmatprep.subr.bf16.mxu0 0
        %2904 = vmatpush1.bf16.msra.mxu0 0
        %2905 = vmatprep.subr.bf16.mxu0 0
        %2906 = vmatpush1.bf16.msra.mxu0 0
        %2907 = vmatprep.mubr.bf16.mxu0 0
        %2908 = vmatmul.mubr.bf16.gmra.mrb[0].mxu0 %v2867
        %v2909 = vpop.f32.mrb[0].mxu0
        %v2910 = vadd.f32 0.0, %v2909
        %v2911 = vpop.f32.mrb[0].mxu0
        %v2912 = vpop.f32.mrb[0].mxu0
        %v2913 = vadd.f32 0.0, %v2912
        %v2914 = vpop.f32.mrb[0].mxu0
        %2915 = vmatprep.mubr.bf16.mxu0 0
        %2916 = vmatmul.mubr.bf16.gmra.mrb[0].mxu0 %v2870
        %v2917 = vpop.f32.mrb[0].mxu0
        %v2918 = vadd.f32 0.0, %v2917
        %v2919 = vpop.f32.mrb[0].mxu0
        %v2920 = vpop.f32.mrb[0].mxu0
        %v2921 = vadd.f32 0.0, %v2920
        %v2922 = vpop.f32.mrb[0].mxu0
        %2923 = vmatprep.mubr.bf16.mxu0 0
        %2924 = vmatmul.mubr.bf16.gmra.mrb[0].mxu0 %v2873
        %v2925 = vpop.f32.mrb[0].mxu0
        %v2926 = vadd.f32 0.0, %v2925
        %v2927 = vpop.f32.mrb[0].mxu0
        %v2928 = vpop.f32.mrb[0].mxu0
        %v2929 = vadd.f32 0.0, %v2928
        %v2930 = vpop.f32.mrb[0].mxu0
        %2931 = vdwg.mxu0
        %v2944 = vunpack.c.l.b16 %v2781
        %v2945 = vunpack.c.l.b16 %v2782
        %v2946 = vunpack.c.l.b16 %v2783
        %v2947 = vunpack.c.l.b16 %v2784
        %v2948 = vunpack.c.l.b16 %v2785
        %v2949 = vunpack.c.l.b16 %v2786
        %v2950 = vunpack.c.l.b16 %v2787
        %v2951 = vunpack.c.l.b16 %v2788
        %v2952 = vunpack.c.l.b16 %v2789
        %v2953 = vunpack.c.l.b16 %v2790
        %v2954 = vunpack.c.l.b16 %v2791
        %v2955 = vunpack.c.l.b16 %v2792
        %v2956 = vpack.c.b16 %v2945, %v2944
        %v2957 = vpack.c.b16 %v2947, %v2946
        %v2958 = vpack.c.b16 %v2949, %v2948
        %v2959 = vpack.c.b16 %v2951, %v2950
        %v2960 = vpack.c.b16 %v2953, %v2952
        %v2961 = vpack.c.b16 %v2955, %v2954
        %v2968 = vsel %vm2865, %v2778, 0
        %v2970 = vsel %vm2865, %v2779, 0
        %v2972 = vsel %vm2865, %v2780, 0
        %2974 = vmatprep.subr.bf16.mxu0 0
        %2975 = vmatpush1.bf16.msra.mxu0 %v2956
        %2976 = vmatprep.subr.bf16.mxu0 0
        %2977 = vmatpush1.bf16.msra.mxu0 %v2957
        %2978 = vmatprep.subr.bf16.mxu0 0
        %2979 = vmatpush1.bf16.msra.mxu0 %v2958
        %2980 = vmatprep.subr.bf16.mxu0 0
        %2981 = vmatpush1.bf16.msra.mxu0 %v2959
        %2982 = vmatprep.subr.bf16.mxu0 0
        %2983 = vmatpush1.bf16.msra.mxu0 %v2960
        %2984 = vmatprep.subr.bf16.mxu0 0
        %2985 = vmatpush1.bf16.msra.mxu0 %v2961
        %2986 = vmatprep.subr.bf16.mxu0 0
        %2987 = vmatpush1.bf16.msra.mxu0 0
        %2988 = vmatprep.subr.bf16.mxu0 0
        %2989 = vmatpush1.bf16.msra.mxu0 0
        %2990 = vmatprep.subr.bf16.mxu0 0
        %2991 = vmatpush1.bf16.msra.mxu0 0
        %2992 = vmatprep.subr.bf16.mxu0 0
        %2993 = vmatpush1.bf16.msra.mxu0 0
        %2994 = vmatprep.subr.bf16.mxu0 0
        %2995 = vmatpush1.bf16.msra.mxu0 0
        %2996 = vmatprep.subr.bf16.mxu0 0
        %2997 = vmatpush1.bf16.msra.mxu0 0
        %2998 = vmatprep.subr.bf16.mxu0 0
        %2999 = vmatpush1.bf16.msra.mxu0 0
        %3000 = vmatprep.subr.bf16.mxu0 0
        %3001 = vmatpush1.bf16.msra.mxu0 0
        %3002 = vmatprep.subr.bf16.mxu0 0
        %3003 = vmatpush1.bf16.msra.mxu0 0
        %3004 = vmatprep.subr.bf16.mxu0 0
        %3005 = vmatpush1.bf16.msra.mxu0 0
        %3006 = vmatprep.mubr.bf16.mxu0 0
        %3007 = vmatmul.mubr.bf16.gmra.mrb[0].mxu0 %v2968
        %v3008 = vpop.f32.mrb[0].mxu0
        %v3009 = vadd.f32 %v2910, %v3008
        %v3010 = vpop.f32.mrb[0].mxu0
        %v3011 = vpop.f32.mrb[0].mxu0
        %v3012 = vadd.f32 %v2913, %v3011
        %v3013 = vpop.f32.mrb[0].mxu0
        %3014 = vmatprep.mubr.bf16.mxu0 0
        %3015 = vmatmul.mubr.bf16.gmra.mrb[0].mxu0 %v2970
        %v3016 = vpop.f32.mrb[0].mxu0
        %v3017 = vadd.f32 %v2918, %v3016
        %v3018 = vpop.f32.mrb[0].mxu0
        %v3019 = vpop.f32.mrb[0].mxu0
        %v3020 = vadd.f32 %v2921, %v3019
        %v3021 = vpop.f32.mrb[0].mxu0
        %3022 = vmatprep.mubr.bf16.mxu0 0
        %3023 = vmatmul.mubr.bf16.gmra.mrb[0].mxu0 %v2972
        %v3024 = vpop.f32.mrb[0].mxu0
        %v3025 = vadd.f32 %v2926, %v3024
        %v3026 = vpop.f32.mrb[0].mxu0
        %v3027 = vpop.f32.mrb[0].mxu0
        %v3028 = vadd.f32 %v2929, %v3027
        %v3029 = vpop.f32.mrb[0].mxu0
        %3030 = vdwg.mxu0
        %s3031 = scalar_lea.vmem %s9, 96
        %v3032 = vld [vmem:[%s3031] sm:$0xf]
        %v3033 = vld [vmem:[%s3031 + $0x4] sm:$0xf]
        %v3034 = vld [vmem:[%s3031 + $0x8] sm:$0xf]
        %v3035 = vld [vmem:[%s3031 + $0xc] sm:$0xf]
        %v3036 = vld [vmem:[%s3031 + $0x10] sm:$0xf]
        %v3037 = vld [vmem:[%s3031 + $0x14] sm:$0xf]
        %v3038 = vld [vmem:[%s3031 + $0x18] sm:$0xf]
        %v3039 = vld [vmem:[%s3031 + $0x1c] sm:$0xf]
        %v3040 = vld [vmem:[%s3031 + $0x20] sm:$0xf]
        %v3041 = vld [vmem:[%s3031 + $0x24] sm:$0xf]
        %v3042 = vld [vmem:[%s3031 + $0x28] sm:$0xf]
        %v3043 = vld [vmem:[%s3031 + $0x2c] sm:$0xf]
        %v3047 = vrot.slane %v2778, 1
        %v3048 = vrot.slane %v2779, 1
        %v3049 = vsel %vm1192, %v3047, %v3048
        %v3050 = vrot.slane %v2780, 1
        %v3051 = vsel %vm1192, %v3048, %v3050
        %v3064 = vunpack.c.l.b16 %v3032
        %v3065 = vunpack.c.l.b16 %v3033
        %v3066 = vunpack.c.l.b16 %v3034
        %v3067 = vunpack.c.l.b16 %v3035
        %v3068 = vunpack.c.l.b16 %v3036
        %v3069 = vunpack.c.l.b16 %v3037
        %v3070 = vunpack.c.l.b16 %v3038
        %v3071 = vunpack.c.l.b16 %v3039
        %v3072 = vunpack.c.l.b16 %v3040
        %v3073 = vunpack.c.l.b16 %v3041
        %v3074 = vunpack.c.l.b16 %v3042
        %v3075 = vunpack.c.l.b16 %v3043
        %v3076 = vpack.c.b16 %v3065, %v3064
        %v3077 = vpack.c.b16 %v3067, %v3066
        %v3078 = vpack.c.b16 %v3069, %v3068
        %v3079 = vpack.c.b16 %v3071, %v3070
        %v3080 = vpack.c.b16 %v3073, %v3072
        %v3081 = vpack.c.b16 %v3075, %v3074
        %v3089 = vsel %vm2865, %v3049, 0
        %v3092 = vsel %vm2865, %v3051, 0
        %v3095 = vsel %vm2865, %v3050, 0
        %3097 = vmatprep.subr.bf16.mxu0 0
        %3098 = vmatpush1.bf16.msra.mxu0 %v3076
        %3099 = vmatprep.subr.bf16.mxu0 0
        %3100 = vmatpush1.bf16.msra.mxu0 %v3077
        %3101 = vmatprep.subr.bf16.mxu0 0
        %3102 = vmatpush1.bf16.msra.mxu0 %v3078
        %3103 = vmatprep.subr.bf16.mxu0 0
        %3104 = vmatpush1.bf16.msra.mxu0 %v3079
        %3105 = vmatprep.subr.bf16.mxu0 0
        %3106 = vmatpush1.bf16.msra.mxu0 %v3080
        %3107 = vmatprep.subr.bf16.mxu0 0
        %3108 = vmatpush1.bf16.msra.mxu0 %v3081
        %3109 = vmatprep.subr.bf16.mxu0 0
        %3110 = vmatpush1.bf16.msra.mxu0 0
        %3111 = vmatprep.subr.bf16.mxu0 0
        %3112 = vmatpush1.bf16.msra.mxu0 0
        %3113 = vmatprep.subr.bf16.mxu0 0
        %3114 = vmatpush1.bf16.msra.mxu0 0
        %3115 = vmatprep.subr.bf16.mxu0 0
        %3116 = vmatpush1.bf16.msra.mxu0 0
        %3117 = vmatprep.subr.bf16.mxu0 0
        %3118 = vmatpush1.bf16.msra.mxu0 0
        %3119 = vmatprep.subr.bf16.mxu0 0
        %3120 = vmatpush1.bf16.msra.mxu0 0
        %3121 = vmatprep.subr.bf16.mxu0 0
        %3122 = vmatpush1.bf16.msra.mxu0 0
        %3123 = vmatprep.subr.bf16.mxu0 0
        %3124 = vmatpush1.bf16.msra.mxu0 0
        %3125 = vmatprep.subr.bf16.mxu0 0
        %3126 = vmatpush1.bf16.msra.mxu0 0
        %3127 = vmatprep.subr.bf16.mxu0 0
        %3128 = vmatpush1.bf16.msra.mxu0 0
        %3129 = vmatprep.mubr.bf16.mxu0 0
        %3130 = vmatmul.mubr.bf16.gmra.mrb[0].mxu0 %v3089
        %v3131 = vpop.f32.mrb[0].mxu0
        %v3132 = vadd.f32 0.0, %v3131
        %v3133 = vpop.f32.mrb[0].mxu0
        %v3134 = vpop.f32.mrb[0].mxu0
        %v3135 = vadd.f32 0.0, %v3134
        %v3136 = vpop.f32.mrb[0].mxu0
        %3137 = vmatprep.mubr.bf16.mxu0 0
        %3138 = vmatmul.mubr.bf16.gmra.mrb[0].mxu0 %v3092
        %v3139 = vpop.f32.mrb[0].mxu0
        %v3140 = vadd.f32 0.0, %v3139
        %v3141 = vpop.f32.mrb[0].mxu0
        %v3142 = vpop.f32.mrb[0].mxu0
        %v3143 = vadd.f32 0.0, %v3142
        %v3144 = vpop.f32.mrb[0].mxu0
        %3145 = vmatprep.mubr.bf16.mxu0 0
        %3146 = vmatmul.mubr.bf16.gmra.mrb[0].mxu0 %v3095
        %v3147 = vpop.f32.mrb[0].mxu0
        %v3148 = vadd.f32 0.0, %v3147
        %v3149 = vpop.f32.mrb[0].mxu0
        %v3150 = vpop.f32.mrb[0].mxu0
        %v3151 = vadd.f32 0.0, %v3150
        %v3152 = vpop.f32.mrb[0].mxu0
        %3153 = vdwg.mxu0
        %v3154 = vadd.f32 %v3009, %v3132
        %v3155 = vadd.f32 %v3012, %v3135
        %v3156 = vadd.f32 %v3017, %v3140
        %v3157 = vadd.f32 %v3020, %v3143
        %v3158 = vadd.f32 %v3025, %v3148
        %v3159 = vadd.f32 %v3028, %v3151
        %v3160 = vld [vmem:[%s10] sm:$0x1]
        %v3162 = vlaneseq
        %v3163 = vshrl.u32 %v3162, 7
        %v3164 = vsub.s32 0, %v3163
        %v3165 = vrot.slane %v3160, %v3164
        %v3167 = vadd.f32 %v3154, %v3165
        %v3168 = vadd.f32 %v3155, %v3165
        %v3169 = vadd.f32 %v3156, %v3165
        %v3170 = vadd.f32 %v3157, %v3165
        %v3171 = vadd.f32 %v3158, %v3165
        %v3172 = vadd.f32 %v3159, %v3165
        %v3173 = vmax.f32 %v3167, 0.0
        %v3174 = vmax.f32 %v3168, 0.0
        %v3175 = vmax.f32 %v3169, 0.0
        %v3176 = vmax.f32 %v3170, 0.0
        %v3177 = vmax.f32 %v3171, 0.0
        %v3178 = vmax.f32 %v3172, 0.0
        %v3179 = vld [vmem:[%s11] sm:$0xf]
        %v3180 = vld [vmem:[%s11 + $0x4] sm:$0xf]
        %v3181 = vld [vmem:[%s11 + $0x8] sm:$0xf]
        %v3182 = vld [vmem:[%s11 + $0xc] sm:$0xf]
        %v3183 = vpack.c.bf16 %v3174, %v3173
        %v3184 = vpack.c.bf16 %v3176, %v3175
        %v3185 = vpack.c.bf16 %v3178, %v3177
        %v3190 = vunpack.c.l.b16 %v3179
        %v3191 = vunpack.c.l.b16 %v3180
        %v3192 = vunpack.c.l.b16 %v3181
        %v3193 = vunpack.c.l.b16 %v3182
        %v3194 = vpack.c.b16 %v3191, %v3190
        %v3195 = vpack.c.b16 %v3193, %v3192
        %vm3196 = vcmask 375808
        %v3198 = vsel %vm3196, %v3194, 0
        %v3201 = vsel %vm3196, %v3195, 0
        %v3204 = vsel %vm1501, %v3185, 0
        %3206 = vmatprep.subr.bf16.mxu0 0
        %3207 = vmatpush1.bf16.msra.mxu0 %v3183
        %3208 = vmatprep.subr.bf16.mxu0 0
        %3209 = vmatpush1.bf16.msra.mxu0 %v3184
        %3210 = vmatprep.subr.bf16.mxu0 0
        %3211 = vmatpush1.bf16.msra.mxu0 %v3204
        %3212 = vmatprep.subr.bf16.mxu0 0
        %3213 = vmatpush1.bf16.msra.mxu0 0
        %3214 = vmatprep.subr.bf16.mxu0 0
        %3215 = vmatpush1.bf16.msra.mxu0 0
        %3216 = vmatprep.subr.bf16.mxu0 0
        %3217 = vmatpush1.bf16.msra.mxu0 0
        %3218 = vmatprep.subr.bf16.mxu0 0
        %3219 = vmatpush1.bf16.msra.mxu0 0
        %3220 = vmatprep.subr.bf16.mxu0 0
        %3221 = vmatpush1.bf16.msra.mxu0 0
        %3222 = vmatprep.subr.bf16.mxu0 0
        %3223 = vmatpush1.bf16.msra.mxu0 0
        %3224 = vmatprep.subr.bf16.mxu0 0
        %3225 = vmatpush1.bf16.msra.mxu0 0
        %3226 = vmatprep.subr.bf16.mxu0 0
        %3227 = vmatpush1.bf16.msra.mxu0 0
        %3228 = vmatprep.subr.bf16.mxu0 0
        %3229 = vmatpush1.bf16.msra.mxu0 0
        %3230 = vmatprep.subr.bf16.mxu0 0
        %3231 = vmatpush1.bf16.msra.mxu0 0
        %3232 = vmatprep.subr.bf16.mxu0 0
        %3233 = vmatpush1.bf16.msra.mxu0 0
        %3234 = vmatprep.subr.bf16.mxu0 0
        %3235 = vmatpush1.bf16.msra.mxu0 0
        %3236 = vmatprep.subr.bf16.mxu0 0
        %3237 = vmatpush1.bf16.msra.mxu0 0
        %3238 = vmatprep.mubr.bf16.mxu0 0
        %3239 = vmatmul.mubr.bf16.gmra.mrb[0].mxu0 %v3198
        %v3240 = vpop.f32.mrb[0].mxu0
        %v3241 = vadd.f32 0.0, %v3240
        %v3242 = vpop.f32.mrb[0].mxu0
        %v3243 = vpop.f32.mrb[0].mxu0
        %v3244 = vadd.f32 0.0, %v3243
        %v3245 = vpop.f32.mrb[0].mxu0
        %3246 = vmatprep.mubr.bf16.mxu0 0
        %3247 = vmatmul.mubr.bf16.gmra.mrb[0].mxu0 %v3201
        %v3248 = vpop.f32.mrb[0].mxu0
        %v3249 = vadd.f32 0.0, %v3248
        %v3250 = vpop.f32.mrb[0].mxu0
        %v3251 = vpop.f32.mrb[0].mxu0
        %v3252 = vadd.f32 0.0, %v3251
        %v3253 = vpop.f32.mrb[0].mxu0
        %3254 = vdwg.mxu0
        %v3255 = vpack.c.bf16 %v3244, %v3241
        %v3256 = vpack.c.bf16 %v3252, %v3249
        %v3257 = vld [vmem:[%s12] sm:$0xf]
        %v3258 = vld [vmem:[%s12 + $0x4] sm:$0xf]
        %v3259 = vld [vmem:[%s12 + $0x8] sm:$0xf]
        %v3260 = vld [vmem:[%s12 + $0xc] sm:$0xf]
        %v3261 = vld [vmem:[%s12 + $0x10] sm:$0xf]
        %v3262 = vld [vmem:[%s12 + $0x14] sm:$0xf]
        %v3263 = vld [vmem:[%s12 + $0x18] sm:$0xf]
        %v3264 = vld [vmem:[%s12 + $0x1c] sm:$0xf]
        %v3265 = vld [vmem:[%s12 + $0x20] sm:$0xf]
        %v3266 = vld [vmem:[%s12 + $0x24] sm:$0xf]
        %v3267 = vld [vmem:[%s12 + $0x28] sm:$0xf]
        %v3268 = vld [vmem:[%s12 + $0x2c] sm:$0xf]
        %v3269 = vld [vmem:[%s12 + $0x30] sm:$0xf]
        %v3270 = vld [vmem:[%s12 + $0x34] sm:$0xf]
        %v3271 = vld [vmem:[%s12 + $0x38] sm:$0xf]
        %v3272 = vld [vmem:[%s12 + $0x3c] sm:$0xf]
        %s3273 = scalar_lea.vmem %s12, 64
        %v3274 = vld [vmem:[%s3273] sm:$0xf]
        %v3275 = vld [vmem:[%s3273 + $0x4] sm:$0xf]
        %v3276 = vld [vmem:[%s3273 + $0x8] sm:$0xf]
        %v3277 = vld [vmem:[%s3273 + $0xc] sm:$0xf]
        %v3278 = vld [vmem:[%s3273 + $0x10] sm:$0xf]
        %v3279 = vld [vmem:[%s3273 + $0x14] sm:$0xf]
        %v3280 = vld [vmem:[%s3273 + $0x18] sm:$0xf]
        %v3281 = vld [vmem:[%s3273 + $0x1c] sm:$0xf]
        %v3282 = vld [vmem:[%s3273 + $0x20] sm:$0xf]
        %v3283 = vld [vmem:[%s3273 + $0x24] sm:$0xf]
        %v3284 = vld [vmem:[%s3273 + $0x28] sm:$0xf]
        %v3285 = vld [vmem:[%s3273 + $0x2c] sm:$0xf]
        %v3286 = vld [vmem:[%s3273 + $0x30] sm:$0xf]
        %v3287 = vld [vmem:[%s3273 + $0x34] sm:$0xf]
        %v3288 = vld [vmem:[%s3273 + $0x38] sm:$0xf]
        %v3289 = vld [vmem:[%s3273 + $0x3c] sm:$0xf]
        %v3291 = vrot.slane %v3255, 4
        %v3309 = vunpack.c.l.b16 %v3274
        %v3310 = vunpack.c.l.b16 %v3275
        %v3311 = vunpack.c.l.b16 %v3276
        %v3312 = vunpack.c.l.b16 %v3277
        %v3313 = vunpack.c.l.b16 %v3278
        %v3314 = vunpack.c.l.b16 %v3279
        %v3315 = vunpack.c.l.b16 %v3280
        %v3316 = vunpack.c.l.b16 %v3281
        %v3317 = vunpack.c.l.b16 %v3282
        %v3318 = vunpack.c.l.b16 %v3283
        %v3319 = vunpack.c.l.b16 %v3284
        %v3320 = vunpack.c.l.b16 %v3285
        %v3321 = vunpack.c.l.b16 %v3286
        %v3322 = vunpack.c.l.b16 %v3287
        %v3323 = vunpack.c.l.b16 %v3288
        %v3324 = vunpack.c.l.b16 %v3289
        %v3325 = vpack.c.b16 %v3310, %v3309
        %v3326 = vpack.c.b16 %v3312, %v3311
        %v3327 = vpack.c.b16 %v3314, %v3313
        %v3328 = vpack.c.b16 %v3316, %v3315
        %v3329 = vpack.c.b16 %v3318, %v3317
        %v3330 = vpack.c.b16 %v3320, %v3319
        %v3331 = vpack.c.b16 %v3322, %v3321
        %v3332 = vpack.c.b16 %v3324, %v3323
        %3341 = vmatprep.subr.bf16.mxu0 0
        %3342 = vmatpush1.bf16.msra.mxu0 %v3325
        %3343 = vmatprep.subr.bf16.mxu0 0
        %3344 = vmatpush1.bf16.msra.mxu0 %v3326
        %3345 = vmatprep.subr.bf16.mxu0 0
        %3346 = vmatpush1.bf16.msra.mxu0 %v3327
        %3347 = vmatprep.subr.bf16.mxu0 0
        %3348 = vmatpush1.bf16.msra.mxu0 %v3328
        %3349 = vmatprep.subr.bf16.mxu0 0
        %3350 = vmatpush1.bf16.msra.mxu0 %v3329
        %3351 = vmatprep.subr.bf16.mxu0 0
        %3352 = vmatpush1.bf16.msra.mxu0 %v3330
        %3353 = vmatprep.subr.bf16.mxu0 0
        %3354 = vmatpush1.bf16.msra.mxu0 %v3331
        %3355 = vmatprep.subr.bf16.mxu0 0
        %3356 = vmatpush1.bf16.msra.mxu0 %v3332
        %3357 = vmatprep.subr.bf16.mxu0 0
        %3358 = vmatpush1.bf16.msra.mxu0 0
        %3359 = vmatprep.subr.bf16.mxu0 0
        %3360 = vmatpush1.bf16.msra.mxu0 0
        %3361 = vmatprep.subr.bf16.mxu0 0
        %3362 = vmatpush1.bf16.msra.mxu0 0
        %3363 = vmatprep.subr.bf16.mxu0 0
        %3364 = vmatpush1.bf16.msra.mxu0 0
        %3365 = vmatprep.subr.bf16.mxu0 0
        %3366 = vmatpush1.bf16.msra.mxu0 0
        %3367 = vmatprep.subr.bf16.mxu0 0
        %3368 = vmatpush1.bf16.msra.mxu0 0
        %3369 = vmatprep.subr.bf16.mxu0 0
        %3370 = vmatpush1.bf16.msra.mxu0 0
        %3371 = vmatprep.subr.bf16.mxu0 0
        %3372 = vmatpush1.bf16.msra.mxu0 0
        %3373 = vmatprep.mubr.bf16.mxu0 0
        %3374 = vmatmul.mubr.bf16.gmra.mrb[0].mxu0 %v3291
        %v3375 = vpop.f32.mrb[0].mxu0
        %v3376 = vadd.f32 0.0, %v3375
        %v3377 = vpop.f32.mrb[0].mxu0
        %v3378 = vpop.f32.mrb[0].mxu0
        %v3379 = vpop.f32.mrb[0].mxu0
        %3380 = vdwg.mxu0
        %v3397 = vunpack.c.l.b16 %v3257
        %v3398 = vunpack.c.l.b16 %v3258
        %v3399 = vunpack.c.l.b16 %v3259
        %v3400 = vunpack.c.l.b16 %v3260
        %v3401 = vunpack.c.l.b16 %v3261
        %v3402 = vunpack.c.l.b16 %v3262
        %v3403 = vunpack.c.l.b16 %v3263
        %v3404 = vunpack.c.l.b16 %v3264
        %v3405 = vunpack.c.l.b16 %v3265
        %v3406 = vunpack.c.l.b16 %v3266
        %v3407 = vunpack.c.l.b16 %v3267
        %v3408 = vunpack.c.l.b16 %v3268
        %v3409 = vunpack.c.l.b16 %v3269
        %v3410 = vunpack.c.l.b16 %v3270
        %v3411 = vunpack.c.l.b16 %v3271
        %v3412 = vunpack.c.l.b16 %v3272
        %v3413 = vpack.c.b16 %v3398, %v3397
        %v3414 = vpack.c.b16 %v3400, %v3399
        %v3415 = vpack.c.b16 %v3402, %v3401
        %v3416 = vpack.c.b16 %v3404, %v3403
        %v3417 = vpack.c.b16 %v3406, %v3405
        %v3418 = vpack.c.b16 %v3408, %v3407
        %v3419 = vpack.c.b16 %v3410, %v3409
        %v3420 = vpack.c.b16 %v3412, %v3411
        %3429 = vmatprep.subr.bf16.mxu0 0
        %3430 = vmatpush1.bf16.msra.mxu0 %v3413
        %3431 = vmatprep.subr.bf16.mxu0 0
        %3432 = vmatpush1.bf16.msra.mxu0 %v3414
        %3433 = vmatprep.subr.bf16.mxu0 0
        %3434 = vmatpush1.bf16.msra.mxu0 %v3415
        %3435 = vmatprep.subr.bf16.mxu0 0
        %3436 = vmatpush1.bf16.msra.mxu0 %v3416
        %3437 = vmatprep.subr.bf16.mxu0 0
        %3438 = vmatpush1.bf16.msra.mxu0 %v3417
        %3439 = vmatprep.subr.bf16.mxu0 0
        %3440 = vmatpush1.bf16.msra.mxu0 %v3418
        %3441 = vmatprep.subr.bf16.mxu0 0
        %3442 = vmatpush1.bf16.msra.mxu0 %v3419
        %3443 = vmatprep.subr.bf16.mxu0 0
        %3444 = vmatpush1.bf16.msra.mxu0 %v3420
        %3445 = vmatprep.subr.bf16.mxu0 0
        %3446 = vmatpush1.bf16.msra.mxu0 0
        %3447 = vmatprep.subr.bf16.mxu0 0
        %3448 = vmatpush1.bf16.msra.mxu0 0
        %3449 = vmatprep.subr.bf16.mxu0 0
        %3450 = vmatpush1.bf16.msra.mxu0 0
        %3451 = vmatprep.subr.bf16.mxu0 0
        %3452 = vmatpush1.bf16.msra.mxu0 0
        %3453 = vmatprep.subr.bf16.mxu0 0
        %3454 = vmatpush1.bf16.msra.mxu0 0
        %3455 = vmatprep.subr.bf16.mxu0 0
        %3456 = vmatpush1.bf16.msra.mxu0 0
        %3457 = vmatprep.subr.bf16.mxu0 0
        %3458 = vmatpush1.bf16.msra.mxu0 0
        %3459 = vmatprep.subr.bf16.mxu0 0
        %3460 = vmatpush1.bf16.msra.mxu0 0
        %3461 = vmatprep.mubr.bf16.mxu0 0
        %3462 = vmatmul.mubr.bf16.gmra.mrb[0].mxu0 %v3255
        %v3463 = vpop.f32.mrb[0].mxu0
        %v3464 = vadd.f32 %v3376, %v3463
        %v3465 = vpop.f32.mrb[0].mxu0
        %v3466 = vpop.f32.mrb[0].mxu0
        %v3467 = vpop.f32.mrb[0].mxu0
        %3468 = vdwg.mxu0
        %s3469 = scalar_lea.vmem %s12, 128
        %v3470 = vld [vmem:[%s3469] sm:$0xf]
        %v3471 = vld [vmem:[%s3469 + $0x4] sm:$0xf]
        %v3472 = vld [vmem:[%s3469 + $0x8] sm:$0xf]
        %v3473 = vld [vmem:[%s3469 + $0xc] sm:$0xf]
        %v3474 = vld [vmem:[%s3469 + $0x10] sm:$0xf]
        %v3475 = vld [vmem:[%s3469 + $0x14] sm:$0xf]
        %v3476 = vld [vmem:[%s3469 + $0x18] sm:$0xf]
        %v3477 = vld [vmem:[%s3469 + $0x1c] sm:$0xf]
        %v3478 = vld [vmem:[%s3469 + $0x20] sm:$0xf]
        %v3479 = vld [vmem:[%s3469 + $0x24] sm:$0xf]
        %v3480 = vld [vmem:[%s3469 + $0x28] sm:$0xf]
        %v3481 = vld [vmem:[%s3469 + $0x2c] sm:$0xf]
        %v3482 = vld [vmem:[%s3469 + $0x30] sm:$0xf]
        %v3483 = vld [vmem:[%s3469 + $0x34] sm:$0xf]
        %v3484 = vld [vmem:[%s3469 + $0x38] sm:$0xf]
        %v3485 = vld [vmem:[%s3469 + $0x3c] sm:$0xf]
        %v3502 = vunpack.c.l.b16 %v3470
        %v3503 = vunpack.c.l.b16 %v3471
        %v3504 = vunpack.c.l.b16 %v3472
        %v3505 = vunpack.c.l.b16 %v3473
        %v3506 = vunpack.c.l.b16 %v3474
        %v3507 = vunpack.c.l.b16 %v3475
        %v3508 = vunpack.c.l.b16 %v3476
        %v3509 = vunpack.c.l.b16 %v3477
        %v3510 = vunpack.c.l.b16 %v3478
        %v3511 = vunpack.c.l.b16 %v3479
        %v3512 = vunpack.c.l.b16 %v3480
        %v3513 = vunpack.c.l.b16 %v3481
        %v3514 = vunpack.c.l.b16 %v3482
        %v3515 = vunpack.c.l.b16 %v3483
        %v3516 = vunpack.c.l.b16 %v3484
        %v3517 = vunpack.c.l.b16 %v3485
        %v3518 = vpack.c.b16 %v3503, %v3502
        %v3519 = vpack.c.b16 %v3505, %v3504
        %v3520 = vpack.c.b16 %v3507, %v3506
        %v3521 = vpack.c.b16 %v3509, %v3508
        %v3522 = vpack.c.b16 %v3511, %v3510
        %v3523 = vpack.c.b16 %v3513, %v3512
        %v3524 = vpack.c.b16 %v3515, %v3514
        %v3525 = vpack.c.b16 %v3517, %v3516
        %3534 = vmatprep.subr.bf16.mxu0 0
        %3535 = vmatpush1.bf16.msra.mxu0 %v3518
        %3536 = vmatprep.subr.bf16.mxu0 0
        %3537 = vmatpush1.bf16.msra.mxu0 %v3519
        %3538 = vmatprep.subr.bf16.mxu0 0
        %3539 = vmatpush1.bf16.msra.mxu0 %v3520
        %3540 = vmatprep.subr.bf16.mxu0 0
        %3541 = vmatpush1.bf16.msra.mxu0 %v3521
        %3542 = vmatprep.subr.bf16.mxu0 0
        %3543 = vmatpush1.bf16.msra.mxu0 %v3522
        %3544 = vmatprep.subr.bf16.mxu0 0
        %3545 = vmatpush1.bf16.msra.mxu0 %v3523
        %3546 = vmatprep.subr.bf16.mxu0 0
        %3547 = vmatpush1.bf16.msra.mxu0 %v3524
        %3548 = vmatprep.subr.bf16.mxu0 0
        %3549 = vmatpush1.bf16.msra.mxu0 %v3525
        %3550 = vmatprep.subr.bf16.mxu0 0
        %3551 = vmatpush1.bf16.msra.mxu0 0
        %3552 = vmatprep.subr.bf16.mxu0 0
        %3553 = vmatpush1.bf16.msra.mxu0 0
        %3554 = vmatprep.subr.bf16.mxu0 0
        %3555 = vmatpush1.bf16.msra.mxu0 0
        %3556 = vmatprep.subr.bf16.mxu0 0
        %3557 = vmatpush1.bf16.msra.mxu0 0
        %3558 = vmatprep.subr.bf16.mxu0 0
        %3559 = vmatpush1.bf16.msra.mxu0 0
        %3560 = vmatprep.subr.bf16.mxu0 0
        %3561 = vmatpush1.bf16.msra.mxu0 0
        %3562 = vmatprep.subr.bf16.mxu0 0
        %3563 = vmatpush1.bf16.msra.mxu0 0
        %3564 = vmatprep.subr.bf16.mxu0 0
        %3565 = vmatpush1.bf16.msra.mxu0 0
        %3566 = vmatprep.mubr.bf16.mxu0 0
        %3567 = vmatmul.mubr.bf16.gmra.mrb[0].mxu0 %v3256
        %v3568 = vpop.f32.mrb[0].mxu0
        %v3569 = vadd.f32 0.0, %v3568
        %v3570 = vpop.f32.mrb[0].mxu0
        %v3571 = vpop.f32.mrb[0].mxu0
        %v3572 = vpop.f32.mrb[0].mxu0
        %3573 = vdwg.mxu0
        %v3574 = vadd.f32 %v3464, %v3569
        %s3575 = scalar_lea.vmem %s12, 192
        %v3576 = vld [vmem:[%s3575] sm:$0xf]
        %v3577 = vld [vmem:[%s3575 + $0x4] sm:$0xf]
        %v3578 = vld [vmem:[%s3575 + $0x8] sm:$0xf]
        %v3579 = vld [vmem:[%s3575 + $0xc] sm:$0xf]
        %v3580 = vld [vmem:[%s3575 + $0x10] sm:$0xf]
        %v3581 = vld [vmem:[%s3575 + $0x14] sm:$0xf]
        %v3582 = vld [vmem:[%s3575 + $0x18] sm:$0xf]
        %v3583 = vld [vmem:[%s3575 + $0x1c] sm:$0xf]
        %v3584 = vld [vmem:[%s3575 + $0x20] sm:$0xf]
        %v3585 = vld [vmem:[%s3575 + $0x24] sm:$0xf]
        %v3586 = vld [vmem:[%s3575 + $0x28] sm:$0xf]
        %v3587 = vld [vmem:[%s3575 + $0x2c] sm:$0xf]
        %v3588 = vld [vmem:[%s3575 + $0x30] sm:$0xf]
        %v3589 = vld [vmem:[%s3575 + $0x34] sm:$0xf]
        %v3590 = vld [vmem:[%s3575 + $0x38] sm:$0xf]
        %v3591 = vld [vmem:[%s3575 + $0x3c] sm:$0xf]
        %v3593 = vrot.slane %v3256, 4
        %v3611 = vunpack.c.l.b16 %v3576
        %v3612 = vunpack.c.l.b16 %v3577
        %v3613 = vunpack.c.l.b16 %v3578
        %v3614 = vunpack.c.l.b16 %v3579
        %v3615 = vunpack.c.l.b16 %v3580
        %v3616 = vunpack.c.l.b16 %v3581
        %v3617 = vunpack.c.l.b16 %v3582
        %v3618 = vunpack.c.l.b16 %v3583
        %v3619 = vunpack.c.l.b16 %v3584
        %v3620 = vunpack.c.l.b16 %v3585
        %v3621 = vunpack.c.l.b16 %v3586
        %v3622 = vunpack.c.l.b16 %v3587
        %v3623 = vunpack.c.l.b16 %v3588
        %v3624 = vunpack.c.l.b16 %v3589
        %v3625 = vunpack.c.l.b16 %v3590
        %v3626 = vunpack.c.l.b16 %v3591
        %v3627 = vpack.c.b16 %v3612, %v3611
        %v3628 = vpack.c.b16 %v3614, %v3613
        %v3629 = vpack.c.b16 %v3616, %v3615
        %v3630 = vpack.c.b16 %v3618, %v3617
        %v3631 = vpack.c.b16 %v3620, %v3619
        %v3632 = vpack.c.b16 %v3622, %v3621
        %v3633 = vpack.c.b16 %v3624, %v3623
        %v3634 = vpack.c.b16 %v3626, %v3625
        %3643 = vmatprep.subr.bf16.mxu0 0
        %3644 = vmatpush1.bf16.msra.mxu0 %v3627
        %3645 = vmatprep.subr.bf16.mxu0 0
        %3646 = vmatpush1.bf16.msra.mxu0 %v3628
        %3647 = vmatprep.subr.bf16.mxu0 0
        %3648 = vmatpush1.bf16.msra.mxu0 %v3629
        %3649 = vmatprep.subr.bf16.mxu0 0
        %3650 = vmatpush1.bf16.msra.mxu0 %v3630
        %3651 = vmatprep.subr.bf16.mxu0 0
        %3652 = vmatpush1.bf16.msra.mxu0 %v3631
        %3653 = vmatprep.subr.bf16.mxu0 0
        %3654 = vmatpush1.bf16.msra.mxu0 %v3632
        %3655 = vmatprep.subr.bf16.mxu0 0
        %3656 = vmatpush1.bf16.msra.mxu0 %v3633
        %3657 = vmatprep.subr.bf16.mxu0 0
        %3658 = vmatpush1.bf16.msra.mxu0 %v3634
        %3659 = vmatprep.subr.bf16.mxu0 0
        %3660 = vmatpush1.bf16.msra.mxu0 0
        %3661 = vmatprep.subr.bf16.mxu0 0
        %3662 = vmatpush1.bf16.msra.mxu0 0
        %3663 = vmatprep.subr.bf16.mxu0 0
        %3664 = vmatpush1.bf16.msra.mxu0 0
        %3665 = vmatprep.subr.bf16.mxu0 0
        %3666 = vmatpush1.bf16.msra.mxu0 0
        %3667 = vmatprep.subr.bf16.mxu0 0
        %3668 = vmatpush1.bf16.msra.mxu0 0
        %3669 = vmatprep.subr.bf16.mxu0 0
        %3670 = vmatpush1.bf16.msra.mxu0 0
        %3671 = vmatprep.subr.bf16.mxu0 0
        %3672 = vmatpush1.bf16.msra.mxu0 0
        %3673 = vmatprep.subr.bf16.mxu0 0
        %3674 = vmatpush1.bf16.msra.mxu0 0
        %3675 = vmatprep.mubr.bf16.mxu0 0
        %3676 = vmatmul.mubr.bf16.gmra.mrb[0].mxu0 %v3593
        %v3677 = vpop.f32.mrb[0].mxu0
        %v3678 = vadd.f32 0.0, %v3677
        %v3679 = vpop.f32.mrb[0].mxu0
        %v3680 = vpop.f32.mrb[0].mxu0
        %v3681 = vpop.f32.mrb[0].mxu0
        %3682 = vdwg.mxu0
        %v3683 = vadd.f32 %v3574, %v3678
        %v3684 = vld [vmem:[%s13] sm:$0x1]
        %v3686 = vlaneseq
        %v3687 = vshrl.u32 %v3686, 7
        %v3688 = vsub.s32 0, %v3687
        %v3689 = vrot.slane %v3684, %v3688
        %v3691 = vadd.f32 %v3683, %v3689
        %v3692 = vmax.f32 %v3691, 0.0
        %v3693 = vpack.c.bf16 %v3692, %v3692
        %v3694 = vld [vmem:[%s14] sm:$0xf]
        %v3695 = vld [vmem:[%s14 + $0x4] sm:$0xf]
        %v3696 = vld [vmem:[%s14 + $0x8] sm:$0xf]
        %v3697 = vld [vmem:[%s14 + $0xc] sm:$0xf]
        %v3698 = vld [vmem:[%s14 + $0x10] sm:$0xf]
        %v3699 = vld [vmem:[%s14 + $0x14] sm:$0xf]
        %v3700 = vld [vmem:[%s14 + $0x18] sm:$0xf]
        %v3701 = vld [vmem:[%s14 + $0x1c] sm:$0xf]
        %v3702 = vld [vmem:[%s14 + $0x20] sm:$0xf]
        %v3703 = vld [vmem:[%s14 + $0x24] sm:$0xf]
        %v3704 = vld [vmem:[%s14 + $0x28] sm:$0xf]
        %v3705 = vld [vmem:[%s14 + $0x2c] sm:$0xf]
        %v3706 = vld [vmem:[%s14 + $0x30] sm:$0xf]
        %v3707 = vld [vmem:[%s14 + $0x34] sm:$0xf]
        %v3708 = vld [vmem:[%s14 + $0x38] sm:$0xf]
        %v3709 = vld [vmem:[%s14 + $0x3c] sm:$0xf]
        %v3710 = vld [vmem:[%s15] sm:$0x1]
        %v3712 = vlaneseq
        %v3713 = vshrl.u32 %v3712, 7
        %v3714 = vsub.s32 0, %v3713
        %v3715 = vrot.slane %v3710, %v3714
        %v3733 = vunpack.c.l.b16 %v3694
        %v3734 = vunpack.c.l.b16 %v3695
        %v3735 = vunpack.c.l.b16 %v3696
        %v3736 = vunpack.c.l.b16 %v3697
        %v3737 = vunpack.c.l.b16 %v3698
        %v3738 = vunpack.c.l.b16 %v3699
        %v3739 = vunpack.c.l.b16 %v3700
        %v3740 = vunpack.c.l.b16 %v3701
        %v3741 = vunpack.c.l.b16 %v3702
        %v3742 = vunpack.c.l.b16 %v3703
        %v3743 = vunpack.c.l.b16 %v3704
        %v3744 = vunpack.c.l.b16 %v3705
        %v3745 = vunpack.c.l.b16 %v3706
        %v3746 = vunpack.c.l.b16 %v3707
        %v3747 = vunpack.c.l.b16 %v3708
        %v3748 = vunpack.c.l.b16 %v3709
        %v3749 = vpack.c.b16 %v3734, %v3733
        %v3750 = vpack.c.b16 %v3736, %v3735
        %v3751 = vpack.c.b16 %v3738, %v3737
        %v3752 = vpack.c.b16 %v3740, %v3739
        %v3753 = vpack.c.b16 %v3742, %v3741
        %v3754 = vpack.c.b16 %v3744, %v3743
        %v3755 = vpack.c.b16 %v3746, %v3745
        %v3756 = vpack.c.b16 %v3748, %v3747
        %3765 = vmatprep.subr.bf16.mxu0 0
        %3766 = vmatpush1.bf16.msra.mxu0 %v3749
        %3767 = vmatprep.subr.bf16.mxu0 0
        %3768 = vmatpush1.bf16.msra.mxu0 %v3750
        %3769 = vmatprep.subr.bf16.mxu0 0
        %3770 = vmatpush1.bf16.msra.mxu0 %v3751
        %3771 = vmatprep.subr.bf16.mxu0 0
        %3772 = vmatpush1.bf16.msra.mxu0 %v3752
        %3773 = vmatprep.subr.bf16.mxu0 0
        %3774 = vmatpush1.bf16.msra.mxu0 %v3753
        %3775 = vmatprep.subr.bf16.mxu0 0
        %3776 = vmatpush1.bf16.msra.mxu0 %v3754
        %3777 = vmatprep.subr.bf16.mxu0 0
        %3778 = vmatpush1.bf16.msra.mxu0 %v3755
        %3779 = vmatprep.subr.bf16.mxu0 0
        %3780 = vmatpush1.bf16.msra.mxu0 %v3756
        %3781 = vmatprep.subr.bf16.mxu0 0
        %3782 = vmatpush1.bf16.msra.mxu0 0
        %3783 = vmatprep.subr.bf16.mxu0 0
        %3784 = vmatpush1.bf16.msra.mxu0 0
        %3785 = vmatprep.subr.bf16.mxu0 0
        %3786 = vmatpush1.bf16.msra.mxu0 0
        %3787 = vmatprep.subr.bf16.mxu0 0
        %3788 = vmatpush1.bf16.msra.mxu0 0
        %3789 = vmatprep.subr.bf16.mxu0 0
        %3790 = vmatpush1.bf16.msra.mxu0 0
        %3791 = vmatprep.subr.bf16.mxu0 0
        %3792 = vmatpush1.bf16.msra.mxu0 0
        %3793 = vmatprep.subr.bf16.mxu0 0
        %3794 = vmatpush1.bf16.msra.mxu0 0
        %3795 = vmatprep.subr.bf16.mxu0 0
        %3796 = vmatpush1.bf16.msra.mxu0 0
        %3797 = vmatprep.mubr.bf16.mxu0 0
        %3798 = vmatmul.mubr.bf16.gmra.mrb[0].mxu0 %v3693
        %v3799 = vpop.f32.mrb[0].mxu0
        %v3800 = vadd.f32 %v3715, %v3799
        %v3801 = vpop.f32.mrb[0].mxu0
        %v3802 = vpop.f32.mrb[0].mxu0
        %v3803 = vpop.f32.mrb[0].mxu0
        %3804 = vdwg.mxu0
        %3805 = vst [vmem:[%s514] sm:$0xff] %v3800
        %s3806 = sand.u32 %s379, 1
        %s3807 = scalar_lea.sflag [#allocation3], %s3806
        %s3808 = sand.u32 %s379, 1
        %s3809 = smul.addr %s3808, 8
        %s3810 = scalar_lea.vmem [#allocation2], %s3809
        // Predicated region
        $region85: #{forward.1} parent=83 // pred_check
          %p3811 = pneg %p389
        $region86: #{forward.1} parent=83 // pred_check_branch
          %3813 = sbr.rel (%p3811) target = $region88
        $region87: #{forward.1} parent=83 // pred_region
          %s3815 = ssub.s32 128, 128
          %3816 = vsyncadd %s3807, %s3815
          %s3817 = smul.addr %s30, 128
          %s3818 = scalar_lea.hbm %s16, %s3817
          %s3820 = sshll.u32 %s3810, 4
          %s3821 = int_to_ptr.vmem [resolvable:$true] %s3820
          %3823 = dma.vmem_to_hbm [thread:$0]  %s3821, 128, %s3818, %s3807
        $region88: #{forward.1} parent=83 // pred_fallthru
          _
      $region84: #{forward.1} parent=5 // pred_fallthru
        _
      %p3824 = scmp.le.s32.totalorder 2, %s25
      // Predicated region
      $region89: #{forward.1} parent=5 // pred_check
        %p3825 = pneg %p3824
      $region90: #{forward.1} parent=5 // pred_check_branch
        %3827 = sbr.rel (%p3825) target = $region92
      $region91: #{forward.1} parent=5 // pred_region
        %s3828 = ssub.s32 %s25, 2
        // Predicated region
        $region93: #{forward.1} parent=91 // pred_check
          %p3829 = pneg %p395
        $region94: #{forward.1} parent=91 // pred_check_branch
          %3831 = sbr.rel (%p3829) target = $region96
        $region95: #{forward.1} parent=91 // pred_region
          %s3832 = sand.u32 %s380, 1
          %s3833 = scalar_lea.sflag [#allocation3], %s3832
          %s3834 = sand.u32 %s380, 1
          %s3835 = smul.addr %s3834, 8
          %s3836 = scalar_lea.vmem [#allocation2], %s3835
          %3837 = dma.done %s3833, 128
        $region96: #{forward.1} parent=91 // pred_fallthru
          _
      $region92: #{forward.1} parent=5 // pred_fallthru
        _
    $region6: #{forward.1} parent=1 // loop_footer
      %s29 = sadd.s32 1, %s25
    $region7: #{forward.1} parent=1 // loop_footer_branch
      %24 = sbr.rel target = $region3
    $region8: #{forward.1} parent=1 // loop_exit
      _
    %3838 = vsyncpa [#allocation3], 1
    %s3839 = scalar_lea.sflag [#allocation3], 1
    %3840 = vsyncpa %s3839, 1

</llo_original>
